<compile_context>
chip_gen: v6e
topology: v6e:2x2x1
jax: 0.10.0
libtpu: 0.0.40
codegen_flags: <defaults>
</compile_context>

<pallas_src>
import functools

import jax
import jax.numpy as jnp
from jax import lax
from jax.experimental import pallas as pl


def _round_up(x, m):
    return ((x + m - 1) // m) * m


# --------------------------------- fused kernel ---------------------------------

def _fused_kernel(origin_ref, local_ref, person_ref,
                  w_o_ref, b_o_ref, w_phim_ref,
                  w_l_ref, b_l_ref,
                  w_p_ref, b_p_ref,
                  yflat_ref, w_conv_ref, conv_bias_ref,
                  o_ref, *, ci_pad, feat_w, feat_wp, conv_rows, conv_ch):
    f32, bf16 = jnp.float32, jnp.bfloat16
    x, y, pf = origin_ref[...], local_ref[...], person_ref[...]      # bf16 [N, C]

    # --- ROI branches: one wide bf16 matmul per feature matrix -------------------
    # Each result is a single 128-lane tile; the 1-wide theta/phi projections live in
    # the tile's otherwise-dead padding lanes (cols ci_pad-2 / ci_pad-1).
    xo = jnp.dot(x, w_o_ref[...], preferred_element_type=f32) + b_o_ref[...]
    yl = jnp.dot(y, w_l_ref[...], preferred_element_type=f32) + b_l_ref[...]
    zp = jnp.dot(pf, w_p_ref[...], preferred_element_type=f32) + b_p_ref[...]

    ft_m = xo[:, ci_pad - 2:ci_pad - 1]     # multi theta proj (+ folded multi-phi bias)
    ft_p = xo[:, ci_pad - 1:ci_pad]         # pair theta proj
    fp_p = yl[:, ci_pad - 1:ci_pad]         # pair phi proj

    # multi phi projection directly as a row vector [1, N] (A @ B^T form, bf16 MXU;
    # avoids any in-kernel transpose).
    fp_m_row = lax.dot_general(w_phim_ref[...], x, (((1,), (1,)), ((), ())),
                               preferred_element_type=f32)

    # RelationBetweenMulti: z1 = relu(theta_i + phi_j) @ (g/N).  Projection/pad lanes of
    # xo feed junk into z's pad lanes only; the wrapper slices them off.
    f_multi = jnp.maximum(ft_m + fp_m_row, 0.0)                       # [N, N]
    z = jnp.dot(f_multi.astype(bf16), xo.astype(bf16), preferred_element_type=f32)

    # RelationBetweenPair (gamma folded into w_local/b_local) +
    # CompressPersonFeature (gamma folded into w_person/b_person).
    z = z + jnp.maximum(ft_p + fp_p, 0.0) * yl + zp

    # --- RelationOnSpatial: two 3x3 convs as 9 shifted [R,256]x[256,ci_pad] matmuls ---
    # over the halo-padded flattened global map (no 9x im2col).  gamma_spatial is folded
    # into the g-tap weights; col ci_pad-1 carries the rank-1-folded phi projection.
    acc = None
    for k in range(9):
        ky, kx = divmod(k, 3)
        off = ky * feat_wp + kx
        # TODO(synk): store yflat as bf16 and drop this per-tap cast once the strip-tiled
        # production variant guarantees pack-aligned (even-row) tap offsets.
        tap = yflat_ref[off:off + conv_rows, :].astype(bf16)          # [R, 256]
        wk = w_conv_ref[k * conv_ch:(k + 1) * conv_ch, :]             # [256, ci_pad] bf16
        part = jnp.dot(tap, wk, preferred_element_type=f32)
        acc = part if acc is None else acc + part
    conv = acc + conv_bias_ref[...]                                   # [R, ci_pad] f32

    fp_s = conv[:, ci_pad - 1:ci_pad]                                 # phi logits [R, 1]
    # Softmax over spatial rows.  concat_project has no ReLU, so the per-ROI theta shift
    # cancels (softmax shift invariance): one attention row shared by every ROI, the
    # theta branch is algebraically dead.
    row = lax.broadcasted_iota(jnp.int32, (conv_rows, 1), 0)
    valid = (row % feat_wp) < feat_w                                  # mask W-halo rows
    # max taken over all rows incl. masked ones: only shifts the exponent -- harmless
    # and keeps exp() in range; do not "fix" by masking first.
    m = jnp.max(fp_s, axis=0, keepdims=True)
    e = jnp.where(valid, jnp.exp(fp_s - m), 0.0)
    attn = e * pl.reciprocal(jnp.sum(e, axis=0, keepdims=True))       # exact reciprocal
    # TODO(synk): at production H*W, tile this branch over row strips (flash-style
    # running max / denominator / weighted-sum in VMEM scratch) and add an N-parallel
    # grid axis on v7x so both TensorCores are used.
    z3_row = jnp.sum(conv * attn, axis=0, keepdims=True)              # [1, ci_pad]

    o_ref[...] = z + z3_row                                           # one lane-dense store


# ------------------------------ parameter init -----------------------------------

def init_params(key, unit_nums, in_channels):
    ci = max(in_channels // unit_nums, 1)
    ci_person = in_channels // unit_nums   # no clamp in CompressPersonFeature
    std = 0.01
    ks = jax.random.split(key, 13)

    def w(k, shape):
        return std * jax.random.normal(k, shape, jnp.float32)

    z = lambda *s: jnp.zeros(s, jnp.float32)
    return {
        'multi': {
            'g_w': w(ks[0], (ci, in_channels)), 'g_b': z(ci),
            'theta_w': w(ks[1], (ci, in_channels)), 'theta_b': z(ci),
            'phi_w': w(ks[2], (ci, in_channels)), 'phi_b': z(ci),
            'proj_w': w(ks[3], (1, 2 * ci, 1, 1)),          # Conv2d(2ci,1,1) weight
        },
        'pair': {
            'g_w': w(ks[4], (ci, in_channels)), 'g_b': z(ci),
            'theta_w': w(ks[5], (ci, in_channels)), 'theta_b': z(ci),
            'phi_w': w(ks[6], (ci, in_channels)), 'phi_b': z(ci),
            'proj_w': w(ks[7], (1, 2 * ci)),                # Linear(2ci,1,bias=False)
            'gamma': jnp.asarray(0.5, jnp.float32),         # torch inits to 0; nonzero to exercise path
        },
        'spatial': {
            'g_w': w(ks[8], (ci, 256, 3, 3)), 'g_b': z(ci),
            'phi_w': w(ks[9], (ci, 256, 3, 3)), 'phi_b': z(ci),
            'theta_w': w(ks[10], (ci, in_channels)), 'theta_b': z(ci),
            'proj_w': w(ks[11], (1, 2 * ci, 1, 1)),
            'gamma': jnp.asarray(0.25, jnp.float32),
        },
        'person': {
            'fc_w': w(ks[12], (ci_person, in_channels)), 'fc_b': z(ci_person),
            'gamma': jnp.asarray(0.75, jnp.float32),
        },
    }


# ------------------------------- forward (jitted) ---------------------------------

def _forward(params, x, person_probs, person_features):
    del person_probs  # unused, matches the PyTorch module
    origin, local, glob = x
    n, c_in = origin.shape
    ci = params['multi']['g_w'].shape[0]
    assert params['person']['fc_w'].shape[0] == ci, "branch output widths must match"
    # need >= 2 spare lanes in the last 128-lane tile for the packed projection columns
    ci_pad = _round_up(ci + 2, 128)
    f32, bf16 = jnp.float32, jnp.bfloat16

    pm, pp, ps, pper = params['multi'], params['pair'], params['spatial'], params['person']

    # --- rank-1 fold of the 1x1 concat_project convs into the input weights --------
    wproj_m = pm['proj_w'].reshape(-1)
    wth_m, wph_m = wproj_m[:ci], wproj_m[ci:]
    v_theta_m = pm['theta_w'].T @ wth_m
    c_theta_m = pm['theta_b'] @ wth_m
    v_phi_m = pm['phi_w'].T @ wph_m
    c_phi_m = pm['phi_b'] @ wph_m

    wproj_p = pp['proj_w'].reshape(-1)
    wth_p, wph_p = wproj_p[:ci], wproj_p[ci:]
    v_theta_p = pp['theta_w'].T @ wth_p
    c_theta_p = pp['theta_b'] @ wth_p
    v_phi_p = pp['phi_w'].T @ wph_p
    c_phi_p = pp['phi_b'] @ wph_p

    # wide matmul for `origin`: [ g/N | 0...0 | theta_multi | theta_pair ]  (one 128-lane tile)
    w_origin = jnp.concatenate(
        [pm['g_w'].T / n, jnp.zeros((c_in, ci_pad - ci - 2), f32),
         v_theta_m[:, None], v_theta_p[:, None]], axis=1).astype(bf16)
    b_origin = jnp.concatenate(
        [(pm['g_b'] / n)[None, :], jnp.zeros((1, ci_pad - ci - 2), f32),
         (c_theta_m + c_phi_m).reshape(1, 1),     # multi phi bias folded into theta col
         c_theta_p.reshape(1, 1)], axis=1)
    w_phi_multi = v_phi_m.reshape(1, -1).astype(bf16)                 # [1, C]

    # wide matmul for `local`: [ gamma_pair * g_pair | 0...0 | phi_pair ]
    gamma_p = pp['gamma']
    w_local = jnp.concatenate(
        [gamma_p * pp['g_w'].T, jnp.zeros((c_in, ci_pad - ci - 1), f32),
         v_phi_p[:, None]], axis=1).astype(bf16)
    b_local = jnp.concatenate(
        [(gamma_p * pp['g_b'])[None, :], jnp.zeros((1, ci_pad - ci - 1), f32),
         c_phi_p.reshape(1, 1)], axis=1)

    # person prior (gamma folded into weight before the bf16 cast)
    w_person = jnp.pad(pper['gamma'] * pper['fc_w'].T,
                       ((0, 0), (0, ci_pad - ci))).astype(bf16)
    b_person = jnp.pad((pper['gamma'] * pper['fc_b'])[None, :],
                       ((0, 0), (0, ci_pad - ci)))

    # --- spatial branch prep: halo-padded flat map + per-tap combined conv weight ---
    conv_ch, h, wd = glob.shape[1], glob.shape[2], glob.shape[3]
    wdp = wd + 2
    conv_rows = h * wdp

    wproj_s = ps['proj_w'].reshape(-1)
    wph_s = wproj_s[ci:]                    # theta half is dead (softmax shift invariance)
    gamma_s = ps['gamma']

    ymap = jnp.pad(glob[0].transpose(1, 2, 0), ((1, 1), (1, 1), (0, 0)))   # [h+2, wdp, C]
    yflat = ymap.reshape((h + 2) * wdp, conv_ch)
    ypad_rows = _round_up((h + 2) * wdp + 2, 8)                            # + halo rows
    yflat = jnp.pad(yflat, ((0, ypad_rows - (h + 2) * wdp), (0, 0)))       # f32 (see TODO)

    w_g_taps = gamma_s * ps['g_w'].transpose(2, 3, 1, 0).reshape(9 * conv_ch, ci)
    w_phi_taps = jnp.einsum('ochw,o->hwc', ps['phi_w'], wph_s).reshape(9 * conv_ch, 1)
    w_conv = jnp.concatenate(
        [w_g_taps, jnp.zeros((9 * conv_ch, ci_pad - ci - 1), f32), w_phi_taps],
        axis=1).astype(bf16)
    conv_bias = jnp.concatenate(
        [(gamma_s * ps['g_b'])[None, :], jnp.zeros((1, ci_pad - ci - 1), f32),
         (ps['phi_b'] @ wph_s).reshape(1, 1)], axis=1)

    kernel = functools.partial(_fused_kernel, ci_pad=ci_pad, feat_w=wd, feat_wp=wdp,
                               conv_rows=conv_rows, conv_ch=conv_ch)
    args = (origin.astype(bf16), local.astype(bf16), person_features.astype(bf16),
            w_origin, b_origin, w_phi_multi,
            w_local, b_local, w_person, b_person,
            yflat, w_conv, conv_bias)

    # Grid-less pallas_call: whole-array VMEM blocks, no pipeline machinery, no
    # pointless double-buffering of a single-point grid.
    out = pl.pallas_call(
        kernel,
        out_shape=jax.ShapeDtypeStruct((n, ci_pad), jnp.float32),
    )(*args)
    return out[:, :ci]


concatenation_unit_forward = jax.jit(_forward)


# ------------------------------ pure-JAX reference ---------------------------------

def reference_forward(params, x, person_probs, person_features):
    """Faithful per-branch module math, mirroring the kernel's mixed precision:
    bf16 matmul/conv operands (scalar gammas folded into weights *before* the bf16
    cast, exactly as the kernel glue does), f32 accumulation everywhere."""
    del person_probs
    origin, local, glob = x
    ci = params['multi']['g_w'].shape[0]
    n = origin.shape[0]
    f32, bf16 = jnp.float32, jnp.bfloat16
    relu = lambda a: jnp.maximum(a, 0.0)

    def lin(a, w, b):                        # bf16 operands, f32 accumulation
        return jnp.dot(a.astype(bf16), w.astype(bf16).T,
                       preferred_element_type=f32) + b

    pm = params['multi']
    g_x = lin(origin, pm['g_w'], pm['g_b'])
    t = lin(origin, pm['theta_w'], pm['theta_b'])
    p = lin(origin, pm['phi_w'], pm['phi_b'])
    wproj = pm['proj_w'].reshape(-1)
    f = relu((t @ wproj[:ci])[:, None] + (p @ wproj[ci:])[None, :])
    z1 = (f / n) @ g_x

    pp = params['pair']
    g_y = lin(local, pp['gamma'] * pp['g_w'], pp['gamma'] * pp['g_b'])
    tt = lin(origin, pp['theta_w'], pp['theta_b'])
    ph = lin(local, pp['phi_w'], pp['phi_b'])
    fpair = relu(jnp.concatenate([tt, ph], axis=1) @ pp['proj_w'].reshape(-1))
    z2 = fpair[:, None] * g_y

    ps = params['spatial']
    glob_bf = glob.astype(bf16)

    def conv3x3(wgt, b):
        out = lax.conv_general_dilated(glob_bf, wgt.astype(bf16), (1, 1),
                                       ((1, 1), (1, 1)),
                                       dimension_numbers=('NCHW', 'OIHW', 'NCHW'),
                                       preferred_element_type=f32)
        return out + b[None, :, None, None]

    g_sp = conv3x3(ps['gamma'] * ps['g_w'], ps['gamma'] * ps['g_b'])   # gamma pre-folded
    phi_sp = conv3x3(ps['phi_w'], ps['phi_b'])
    theta = lin(origin, ps['theta_w'], ps['theta_b'])
    h, wd = glob.shape[2], glob.shape[3]
    wproj_s = ps['proj_w'].reshape(-1)
    ft = theta @ wproj_s[:ci]
    phi_flat = phi_sp[0].transpose(1, 2, 0).reshape(h * wd, ci)
    fp = phi_flat @ wproj_s[ci:]
    fsp = jax.nn.softmax(ft[:, None] + fp[None, :], axis=1)
    g_flat = g_sp[0].transpose(1, 2, 0).reshape(h * wd, ci)
    z3 = fsp @ g_flat

    pper = params['person']
    z4 = lin(person_features, pper['gamma'] * pper['fc_w'], pper['gamma'] * pper['fc_b'])

    return z1 + z2 + z3 + z4


# -------------------------------------- main ---------------------------------------

if __name__ == "__main__":
    N, IN_CH, UNITS, RES = 8, 32, 4, 8

    pkey, ikey = jax.random.split(jax.random.PRNGKey(0))
    params = init_params(pkey, UNITS, IN_CH)

    k1, k2, k3, k4, k5 = jax.random.split(ikey, 5)
    origin = jax.random.normal(k1, (N, IN_CH), jnp.float32)
    local = jax.random.normal(k2, (N, IN_CH), jnp.float32)
    glob = jax.random.normal(k3, (1, 256, RES, RES), jnp.float32)   # NCHW
    person_probs = jax.random.uniform(k4, (N, 2), jnp.float32)      # unused
    person_features = jax.random.normal(k5, (N, IN_CH), jnp.float32)

    out = concatenation_unit_forward(params, (origin, local, glob),
                                     person_probs, person_features)
    out = jax.block_until_ready(out)

    ref = reference_forward(params, (origin, local, glob),
                            person_probs, person_features)
    if not bool(jnp.allclose(out, ref, atol=2e-4, rtol=2e-3)):
        raise AssertionError(f"mismatch: max abs err = {jnp.max(jnp.abs(out - ref))}")

    print("KERNEL_OK")
</pallas_src>

<mosaic_0001>
module attributes {stable_mosaic.version = 11 : i64} {
  func.func @_fused_kernel(%arg0: memref<8x32xbf16, #tpu.memory_space<vmem>>, %arg1: memref<8x32xbf16, #tpu.memory_space<vmem>>, %arg2: memref<8x32xbf16, #tpu.memory_space<vmem>>, %arg3: memref<32x128xbf16, #tpu.memory_space<vmem>>, %arg4: memref<1x128xf32, #tpu.memory_space<vmem>>, %arg5: memref<1x32xbf16, #tpu.memory_space<vmem>>, %arg6: memref<32x128xbf16, #tpu.memory_space<vmem>>, %arg7: memref<1x128xf32, #tpu.memory_space<vmem>>, %arg8: memref<32x128xbf16, #tpu.memory_space<vmem>>, %arg9: memref<1x128xf32, #tpu.memory_space<vmem>>, %arg10: memref<104x256xf32, #tpu.memory_space<vmem>>, %arg11: memref<2304x128xbf16, #tpu.memory_space<vmem>>, %arg12: memref<1x128xf32, #tpu.memory_space<vmem>>, %arg13: memref<8x128xf32, #tpu.memory_space<vmem>>) attributes {dimension_semantics = [], scalar_prefetch = 0 : i64, scratch_operands = 0 : i64, tpu.core_type = #tpu.core_type<tc>} {
    %c0 = arith.constant 0 : index
    %c0_0 = arith.constant 0 : index
    %0 = vector.load %arg0[%c0, %c0_0] : memref<8x32xbf16, #tpu.memory_space<vmem>>, vector<8x32xbf16>
    %c0_1 = arith.constant 0 : index
    %c0_2 = arith.constant 0 : index
    %1 = vector.load %arg1[%c0_1, %c0_2] : memref<8x32xbf16, #tpu.memory_space<vmem>>, vector<8x32xbf16>
    %c0_3 = arith.constant 0 : index
    %c0_4 = arith.constant 0 : index
    %2 = vector.load %arg2[%c0_3, %c0_4] : memref<8x32xbf16, #tpu.memory_space<vmem>>, vector<8x32xbf16>
    %c0_5 = arith.constant 0 : index
    %c0_6 = arith.constant 0 : index
    %3 = vector.load %arg3[%c0_5, %c0_6] : memref<32x128xbf16, #tpu.memory_space<vmem>>, vector<32x128xbf16>
    %cst = arith.constant dense<0.000000e+00> : vector<8x128xf32>
    %4 = tpu.matmul %0, %3, %cst {dimension_numbers = #tpu.dot_dimension_numbers<[1], [0], [0], [1], [0, 0, 1, 1], [], []>} : vector<8x32xbf16>, vector<32x128xbf16>, vector<8x128xf32> -> vector<8x128xf32>
    %c0_7 = arith.constant 0 : index
    %c0_8 = arith.constant 0 : index
    %5 = vector.load %arg4[%c0_7, %c0_8] : memref<1x128xf32, #tpu.memory_space<vmem>>, vector<1x128xf32>
    %6 = vector.broadcast %5 : vector<1x128xf32> to vector<8x128xf32>
    %7 = arith.addf %4, %6 : vector<8x128xf32>
    %c0_9 = arith.constant 0 : index
    %c0_10 = arith.constant 0 : index
    %8 = vector.load %arg6[%c0_9, %c0_10] : memref<32x128xbf16, #tpu.memory_space<vmem>>, vector<32x128xbf16>
    %cst_11 = arith.constant dense<0.000000e+00> : vector<8x128xf32>
    %9 = tpu.matmul %1, %8, %cst_11 {dimension_numbers = #tpu.dot_dimension_numbers<[1], [0], [0], [1], [0, 0, 1, 1], [], []>} : vector<8x32xbf16>, vector<32x128xbf16>, vector<8x128xf32> -> vector<8x128xf32>
    %c0_12 = arith.constant 0 : index
    %c0_13 = arith.constant 0 : index
    %10 = vector.load %arg7[%c0_12, %c0_13] : memref<1x128xf32, #tpu.memory_space<vmem>>, vector<1x128xf32>
    %11 = vector.broadcast %10 : vector<1x128xf32> to vector<8x128xf32>
    %12 = arith.addf %9, %11 : vector<8x128xf32>
    %c0_14 = arith.constant 0 : index
    %c0_15 = arith.constant 0 : index
    %13 = vector.load %arg8[%c0_14, %c0_15] : memref<32x128xbf16, #tpu.memory_space<vmem>>, vector<32x128xbf16>
    %cst_16 = arith.constant dense<0.000000e+00> : vector<8x128xf32>
    %14 = tpu.matmul %2, %13, %cst_16 {dimension_numbers = #tpu.dot_dimension_numbers<[1], [0], [0], [1], [0, 0, 1, 1], [], []>} : vector<8x32xbf16>, vector<32x128xbf16>, vector<8x128xf32> -> vector<8x128xf32>
    %c0_17 = arith.constant 0 : index
    %c0_18 = arith.constant 0 : index
    %15 = vector.load %arg9[%c0_17, %c0_18] : memref<1x128xf32, #tpu.memory_space<vmem>>, vector<1x128xf32>
    %16 = vector.broadcast %15 : vector<1x128xf32> to vector<8x128xf32>
    %17 = arith.addf %14, %16 : vector<8x128xf32>
    %18 = vector.extract_strided_slice %7 {offsets = [0, 126], sizes = [8, 1], strides = [1, 1]} : vector<8x128xf32> to vector<8x1xf32>
    %19 = vector.extract_strided_slice %7 {offsets = [0, 127], sizes = [8, 1], strides = [1, 1]} : vector<8x128xf32> to vector<8x1xf32>
    %20 = vector.extract_strided_slice %12 {offsets = [0, 127], sizes = [8, 1], strides = [1, 1]} : vector<8x128xf32> to vector<8x1xf32>
    %c0_19 = arith.constant 0 : index
    %c0_20 = arith.constant 0 : index
    %21 = vector.load %arg5[%c0_19, %c0_20] : memref<1x32xbf16, #tpu.memory_space<vmem>>, vector<1x32xbf16>
    %cst_21 = arith.constant dense<0.000000e+00> : vector<1x8xf32>
    %22 = tpu.matmul %21, %0, %cst_21 {dimension_numbers = #tpu.dot_dimension_numbers<[1], [1], [0], [0], [0, 0, 1, 0], [], []>} : vector<1x32xbf16>, vector<8x32xbf16>, vector<1x8xf32> -> vector<1x8xf32>
    %23 = vector.broadcast %18 : vector<8x1xf32> to vector<8x8xf32>
    %24 = vector.broadcast %22 : vector<1x8xf32> to vector<8x8xf32>
    %25 = arith.addf %23, %24 : vector<8x8xf32>
    %cst_22 = arith.constant 0.000000e+00 : f32
    %26 = vector.broadcast %cst_22 : f32 to vector<8x8xf32>
    %27 = arith.maximumf %25, %26 : vector<8x8xf32>
    %28 = arith.truncf %27 : vector<8x8xf32> to vector<8x8xbf16>
    %29 = arith.truncf %7 : vector<8x128xf32> to vector<8x128xbf16>
    %cst_23 = arith.constant dense<0.000000e+00> : vector<8x128xf32>
    %30 = tpu.matmul %28, %29, %cst_23 {dimension_numbers = #tpu.dot_dimension_numbers<[1], [0], [0], [1], [0, 0, 1, 1], [], []>} : vector<8x8xbf16>, vector<8x128xbf16>, vector<8x128xf32> -> vector<8x128xf32>
    %31 = arith.addf %19, %20 : vector<8x1xf32>
    %cst_24 = arith.constant 0.000000e+00 : f32
    %32 = vector.broadcast %cst_24 : f32 to vector<8x1xf32>
    %33 = arith.maximumf %31, %32 : vector<8x1xf32>
    %34 = vector.broadcast %33 : vector<8x1xf32> to vector<8x128xf32>
    %35 = arith.mulf %34, %12 : vector<8x128xf32>
    %36 = arith.addf %30, %35 : vector<8x128xf32>
    %37 = arith.addf %36, %17 : vector<8x128xf32>
    %c0_25 = arith.constant 0 : index
    %c0_26 = arith.constant 0 : index
    %38 = vector.load %arg10[%c0_25, %c0_26] : memref<104x256xf32, #tpu.memory_space<vmem>>, vector<80x256xf32>
    %39 = arith.truncf %38 : vector<80x256xf32> to vector<80x256xbf16>
    %c0_27 = arith.constant 0 : index
    %c0_28 = arith.constant 0 : index
    %40 = vector.load %arg11[%c0_27, %c0_28] : memref<2304x128xbf16, #tpu.memory_space<vmem>>, vector<256x128xbf16>
    %cst_29 = arith.constant dense<0.000000e+00> : vector<80x128xf32>
    %41 = tpu.matmul %39, %40, %cst_29 {dimension_numbers = #tpu.dot_dimension_numbers<[1], [0], [0], [1], [0, 0, 1, 1], [], []>} : vector<80x256xbf16>, vector<256x128xbf16>, vector<80x128xf32> -> vector<80x128xf32>
    %c1 = arith.constant 1 : index
    %c0_30 = arith.constant 0 : index
    %42 = vector.load %arg10[%c1, %c0_30] : memref<104x256xf32, #tpu.memory_space<vmem>>, vector<80x256xf32>
    %43 = arith.truncf %42 : vector<80x256xf32> to vector<80x256xbf16>
    %c256 = arith.constant 256 : index
    %c0_31 = arith.constant 0 : index
    %44 = vector.load %arg11[%c256, %c0_31] : memref<2304x128xbf16, #tpu.memory_space<vmem>>, vector<256x128xbf16>
    %cst_32 = arith.constant dense<0.000000e+00> : vector<80x128xf32>
    %45 = tpu.matmul %43, %44, %cst_32 {dimension_numbers = #tpu.dot_dimension_numbers<[1], [0], [0], [1], [0, 0, 1, 1], [], []>} : vector<80x256xbf16>, vector<256x128xbf16>, vector<80x128xf32> -> vector<80x128xf32>
    %46 = arith.addf %41, %45 : vector<80x128xf32>
    %c2 = arith.constant 2 : index
    %c0_33 = arith.constant 0 : index
    %47 = vector.load %arg10[%c2, %c0_33] : memref<104x256xf32, #tpu.memory_space<vmem>>, vector<80x256xf32>
    %48 = arith.truncf %47 : vector<80x256xf32> to vector<80x256xbf16>
    %c512 = arith.constant 512 : index
    %c0_34 = arith.constant 0 : index
    %49 = vector.load %arg11[%c512, %c0_34] : memref<2304x128xbf16, #tpu.memory_space<vmem>>, vector<256x128xbf16>
    %cst_35 = arith.constant dense<0.000000e+00> : vector<80x128xf32>
    %50 = tpu.matmul %48, %49, %cst_35 {dimension_numbers = #tpu.dot_dimension_numbers<[1], [0], [0], [1], [0, 0, 1, 1], [], []>} : vector<80x256xbf16>, vector<256x128xbf16>, vector<80x128xf32> -> vector<80x128xf32>
    %51 = arith.addf %46, %50 : vector<80x128xf32>
    %c10 = arith.constant 10 : index
    %c0_36 = arith.constant 0 : index
    %52 = vector.load %arg10[%c10, %c0_36] : memref<104x256xf32, #tpu.memory_space<vmem>>, vector<80x256xf32>
    %53 = arith.truncf %52 : vector<80x256xf32> to vector<80x256xbf16>
    %c768 = arith.constant 768 : index
    %c0_37 = arith.constant 0 : index
    %54 = vector.load %arg11[%c768, %c0_37] : memref<2304x128xbf16, #tpu.memory_space<vmem>>, vector<256x128xbf16>
    %cst_38 = arith.constant dense<0.000000e+00> : vector<80x128xf32>
    %55 = tpu.matmul %53, %54, %cst_38 {dimension_numbers = #tpu.dot_dimension_numbers<[1], [0], [0], [1], [0, 0, 1, 1], [], []>} : vector<80x256xbf16>, vector<256x128xbf16>, vector<80x128xf32> -> vector<80x128xf32>
    %56 = arith.addf %51, %55 : vector<80x128xf32>
    %c11 = arith.constant 11 : index
    %c0_39 = arith.constant 0 : index
    %57 = vector.load %arg10[%c11, %c0_39] : memref<104x256xf32, #tpu.memory_space<vmem>>, vector<80x256xf32>
    %58 = arith.truncf %57 : vector<80x256xf32> to vector<80x256xbf16>
    %c1024 = arith.constant 1024 : index
    %c0_40 = arith.constant 0 : index
    %59 = vector.load %arg11[%c1024, %c0_40] : memref<2304x128xbf16, #tpu.memory_space<vmem>>, vector<256x128xbf16>
    %cst_41 = arith.constant dense<0.000000e+00> : vector<80x128xf32>
    %60 = tpu.matmul %58, %59, %cst_41 {dimension_numbers = #tpu.dot_dimension_numbers<[1], [0], [0], [1], [0, 0, 1, 1], [], []>} : vector<80x256xbf16>, vector<256x128xbf16>, vector<80x128xf32> -> vector<80x128xf32>
    %61 = arith.addf %56, %60 : vector<80x128xf32>
    %c12 = arith.constant 12 : index
    %c0_42 = arith.constant 0 : index
    %62 = vector.load %arg10[%c12, %c0_42] : memref<104x256xf32, #tpu.memory_space<vmem>>, vector<80x256xf32>
    %63 = arith.truncf %62 : vector<80x256xf32> to vector<80x256xbf16>
    %c1280 = arith.constant 1280 : index
    %c0_43 = arith.constant 0 : index
    %64 = vector.load %arg11[%c1280, %c0_43] : memref<2304x128xbf16, #tpu.memory_space<vmem>>, vector<256x128xbf16>
    %cst_44 = arith.constant dense<0.000000e+00> : vector<80x128xf32>
    %65 = tpu.matmul %63, %64, %cst_44 {dimension_numbers = #tpu.dot_dimension_numbers<[1], [0], [0], [1], [0, 0, 1, 1], [], []>} : vector<80x256xbf16>, vector<256x128xbf16>, vector<80x128xf32> -> vector<80x128xf32>
    %66 = arith.addf %61, %65 : vector<80x128xf32>
    %c20 = arith.constant 20 : index
    %c0_45 = arith.constant 0 : index
    %67 = vector.load %arg10[%c20, %c0_45] : memref<104x256xf32, #tpu.memory_space<vmem>>, vector<80x256xf32>
    %68 = arith.truncf %67 : vector<80x256xf32> to vector<80x256xbf16>
    %c1536 = arith.constant 1536 : index
    %c0_46 = arith.constant 0 : index
    %69 = vector.load %arg11[%c1536, %c0_46] : memref<2304x128xbf16, #tpu.memory_space<vmem>>, vector<256x128xbf16>
    %cst_47 = arith.constant dense<0.000000e+00> : vector<80x128xf32>
    %70 = tpu.matmul %68, %69, %cst_47 {dimension_numbers = #tpu.dot_dimension_numbers<[1], [0], [0], [1], [0, 0, 1, 1], [], []>} : vector<80x256xbf16>, vector<256x128xbf16>, vector<80x128xf32> -> vector<80x128xf32>
    %71 = arith.addf %66, %70 : vector<80x128xf32>
    %c21 = arith.constant 21 : index
    %c0_48 = arith.constant 0 : index
    %72 = vector.load %arg10[%c21, %c0_48] : memref<104x256xf32, #tpu.memory_space<vmem>>, vector<80x256xf32>
    %73 = arith.truncf %72 : vector<80x256xf32> to vector<80x256xbf16>
    %c1792 = arith.constant 1792 : index
    %c0_49 = arith.constant 0 : index
    %74 = vector.load %arg11[%c1792, %c0_49] : memref<2304x128xbf16, #tpu.memory_space<vmem>>, vector<256x128xbf16>
    %cst_50 = arith.constant dense<0.000000e+00> : vector<80x128xf32>
    %75 = tpu.matmul %73, %74, %cst_50 {dimension_numbers = #tpu.dot_dimension_numbers<[1], [0], [0], [1], [0, 0, 1, 1], [], []>} : vector<80x256xbf16>, vector<256x128xbf16>, vector<80x128xf32> -> vector<80x128xf32>
    %76 = arith.addf %71, %75 : vector<80x128xf32>
    %c22 = arith.constant 22 : index
    %c0_51 = arith.constant 0 : index
    %77 = vector.load %arg10[%c22, %c0_51] : memref<104x256xf32, #tpu.memory_space<vmem>>, vector<80x256xf32>
    %78 = arith.truncf %77 : vector<80x256xf32> to vector<80x256xbf16>
    %c2048 = arith.constant 2048 : index
    %c0_52 = arith.constant 0 : index
    %79 = vector.load %arg11[%c2048, %c0_52] : memref<2304x128xbf16, #tpu.memory_space<vmem>>, vector<256x128xbf16>
    %cst_53 = arith.constant dense<0.000000e+00> : vector<80x128xf32>
    %80 = tpu.matmul %78, %79, %cst_53 {dimension_numbers = #tpu.dot_dimension_numbers<[1], [0], [0], [1], [0, 0, 1, 1], [], []>} : vector<80x256xbf16>, vector<256x128xbf16>, vector<80x128xf32> -> vector<80x128xf32>
    %81 = arith.addf %76, %80 : vector<80x128xf32>
    %c0_54 = arith.constant 0 : index
    %c0_55 = arith.constant 0 : index
    %82 = vector.load %arg12[%c0_54, %c0_55] : memref<1x128xf32, #tpu.memory_space<vmem>>, vector<1x128xf32>
    %83 = vector.broadcast %82 : vector<1x128xf32> to vector<80x128xf32>
    %84 = arith.addf %81, %83 : vector<80x128xf32>
    %85 = vector.extract_strided_slice %84 {offsets = [0, 127], sizes = [80, 1], strides = [1, 1]} : vector<80x128xf32> to vector<80x1xf32>
    %86 = tpu.iota {dimensions = array<i32: 0>} : vector<80x1xi32>
    %c10_i32 = arith.constant 10 : i32
    %c0_i32 = arith.constant 0 : i32
    %87 = arith.cmpi eq, %c10_i32, %c0_i32 : i32
    %c1_i32 = arith.constant 1 : i32
    %88 = arith.select %87, %c1_i32, %c10_i32 : i32
    %89 = vector.broadcast %88 : i32 to vector<80x1xi32>
    %90 = arith.remsi %86, %89 : vector<80x1xi32>
    %c0_i32_56 = arith.constant 0 : i32
    %91 = vector.broadcast %c0_i32_56 : i32 to vector<80x1xi32>
    %92 = arith.cmpi ne, %90, %91 : vector<80x1xi32>
    %c0_i32_57 = arith.constant 0 : i32
    %93 = vector.broadcast %c0_i32_57 : i32 to vector<80x1xi32>
    %94 = arith.cmpi slt, %90, %93 : vector<80x1xi32>
    %c0_i32_58 = arith.constant 0 : i32
    %95 = arith.cmpi slt, %88, %c0_i32_58 : i32
    %96 = vector.broadcast %95 : i1 to vector<80x1xi1>
    %97 = vector.broadcast %96 : vector<80x1xi1> to vector<80x1xi1>
    %98 = arith.xori %94, %97 : vector<80x1xi1>
    %99 = arith.andi %98, %92 : vector<80x1xi1>
    %100 = vector.broadcast %88 : i32 to vector<80x1xi32>
    %101 = arith.addi %90, %100 : vector<80x1xi32>
    %102 = arith.select %99, %101, %90 : vector<80x1xi1>, vector<80x1xi32>
    %c8_i32 = arith.constant 8 : i32
    %103 = vector.broadcast %c8_i32 : i32 to vector<80x1xi32>
    %104 = arith.cmpi slt, %102, %103 : vector<80x1xi32>
    %cst_59 = arith.constant dense<0xFF800000> : vector<1xf32>
    %105 = vector.multi_reduction <maximumf>, %85, %cst_59 [0] : vector<80x1xf32> to vector<1xf32>
    %106 = vector.shape_cast %105 : vector<1xf32> to vector<1x1xf32>
    %107 = vector.broadcast %106 : vector<1x1xf32> to vector<80x1xf32>
    %108 = arith.subf %85, %107 : vector<80x1xf32>
    %109 = math.exp %108 : vector<80x1xf32>
    %cst_60 = arith.constant 0.000000e+00 : f32
    %110 = vector.broadcast %cst_60 : f32 to vector<80x1xf32>
    %111 = arith.select %104, %109, %110 : vector<80x1xi1>, vector<80x1xf32>
    %cst_61 = arith.constant dense<0.000000e+00> : vector<1xf32>
    %112 = vector.multi_reduction <add>, %111, %cst_61 [0] : vector<80x1xf32> to vector<1xf32>
    %113 = vector.shape_cast %112 : vector<1xf32> to vector<1x1xf32>
    %114 = tpu.reciprocal %113 : vector<1x1xf32> -> vector<1x1xf32>
    %115 = vector.broadcast %114 : vector<1x1xf32> to vector<80x1xf32>
    %116 = arith.mulf %111, %115 : vector<80x1xf32>
    %117 = vector.broadcast %116 : vector<80x1xf32> to vector<80x128xf32>
    %118 = arith.mulf %84, %117 : vector<80x128xf32>
    %cst_62 = arith.constant dense<0.000000e+00> : vector<128xf32>
    %119 = vector.multi_reduction <add>, %118, %cst_62 [0] : vector<80x128xf32> to vector<128xf32>
    %120 = vector.shape_cast %119 : vector<128xf32> to vector<1x128xf32>
    %121 = vector.broadcast %120 : vector<1x128xf32> to vector<8x128xf32>
    %122 = arith.addf %37, %121 : vector<8x128xf32>
    %c0_63 = arith.constant 0 : index
    %c0_64 = arith.constant 0 : index
    %123 = vector.load %arg13[%c0_63, %c0_64] : memref<8x128xf32, #tpu.memory_space<vmem>>, vector<8x128xf32>
    tpu.vector_store %arg13[%c0_63, %c0_64], %122 {strides = array<i32>} : memref<8x128xf32, #tpu.memory_space<vmem>>, vector<8x128xf32>,
    return
  }
}

</mosaic_0001>

<llo_original>
// kernel: _forward.1
$region0: #{_forward.1}
  #allocation0 [shape = 'u32[]', space=smem, size = 0x4, offset = 0x4, fixed_abs, tag = 'smem constant byte address 0x4 - core index']
  #allocation1 [shape = 'u32[144,128]{1,0:T(1,128)}', space=vmem, size = 0x12000, scoped, tag = 'internal scratch']
  %s0 = inlined_call_operand.vmem [shape: bf16[8,32], index: 0, kind: input, shape index: {}]
  %s1 = inlined_call_operand.vmem [shape: bf16[8,32], index: 1, kind: input, shape index: {}]
  %s2 = inlined_call_operand.vmem [shape: bf16[8,32], index: 2, kind: input, shape index: {}]
  %s3 = inlined_call_operand.vmem [shape: bf16[32,128], index: 3, kind: input, shape index: {}]
  %s4 = inlined_call_operand.vmem [shape: f32[1,128], index: 4, kind: input, shape index: {}]
  %s5 = inlined_call_operand.vmem [shape: bf16[1,32], index: 5, kind: input, shape index: {}]
  %s6 = inlined_call_operand.vmem [shape: bf16[32,128], index: 6, kind: input, shape index: {}]
  %s7 = inlined_call_operand.vmem [shape: f32[1,128], index: 7, kind: input, shape index: {}]
  %s8 = inlined_call_operand.vmem [shape: bf16[32,128], index: 8, kind: input, shape index: {}]
  %s9 = inlined_call_operand.vmem [shape: f32[1,128], index: 9, kind: input, shape index: {}]
  %s10 = inlined_call_operand.vmem [shape: f32[104,256], index: 10, kind: input, shape index: {}]
  %s11 = inlined_call_operand.vmem [shape: bf16[2304,128], index: 11, kind: input, shape index: {}]
  %s12 = inlined_call_operand.vmem [shape: f32[1,128], index: 12, kind: input, shape index: {}]
  %s13 = inlined_call_operand.hbm [shape: f32[8,128], index: 13, kind: output, shape index: {}]
  %s14 = sld [smem:[#allocation0]]
  $region62: #{_forward.1} parent=0
    _
  %s16 = ssub.s32 1, %s14
  %s17 = scalar_select 0, %s16, %s14
  $region1: #{_forward.1} parent=0
    #allocation2 [shape = 'u8[4096]{0}', space=vmem, size = 0x1000, scoped, tag = 'output window, operand 0, single buffered']
    #allocation3 [shape = 's32[1]{0}', space=sflag, size = 0x4, scoped, tag = 'scoped memory for _forward.1']
    %18 = vsyncpa [#allocation3], 0
    // Predicated region
    $region2: #{_forward.1} parent=1 // pred_check
      _
    $region3: #{_forward.1} parent=1 // pred_check_branch
      %20 = sbr.rel (0) target = $region5
    $region4: #{_forward.1} parent=1 // pred_region
      _
    $region5: #{_forward.1} parent=1 // pred_fallthru
      _
    // Predicated region
    $region6: #{_forward.1} parent=1 // pred_check
      _
    $region7: #{_forward.1} parent=1 // pred_check_branch
      %22 = sbr.rel (0) target = $region9
    $region8: #{_forward.1} parent=1 // pred_region
      _
    $region9: #{_forward.1} parent=1 // pred_fallthru
      _
    // Predicated region
    $region10: #{_forward.1} parent=1 // pred_check
      _
    $region11: #{_forward.1} parent=1 // pred_check_branch
      %24 = sbr.rel (0) target = $region13
    $region12: #{_forward.1} parent=1 // pred_region
      _
    $region13: #{_forward.1} parent=1 // pred_fallthru
      _
    // Predicated region
    $region14: #{_forward.1} parent=1 // pred_check
      _
    $region15: #{_forward.1} parent=1 // pred_check_branch
      %26 = sbr.rel (0) target = $region17
    $region16: #{_forward.1} parent=1 // pred_region
      _
    $region17: #{_forward.1} parent=1 // pred_fallthru
      _
    // Predicated region
    $region18: #{_forward.1} parent=1 // pred_check
      _
    $region19: #{_forward.1} parent=1 // pred_check_branch
      %28 = sbr.rel (0) target = $region21
    $region20: #{_forward.1} parent=1 // pred_region
      _
    $region21: #{_forward.1} parent=1 // pred_fallthru
      _
    // Predicated region
    $region22: #{_forward.1} parent=1 // pred_check
      _
    $region23: #{_forward.1} parent=1 // pred_check_branch
      %30 = sbr.rel (0) target = $region25
    $region24: #{_forward.1} parent=1 // pred_region
      _
    $region25: #{_forward.1} parent=1 // pred_fallthru
      _
    // Predicated region
    $region26: #{_forward.1} parent=1 // pred_check
      _
    $region27: #{_forward.1} parent=1 // pred_check_branch
      %32 = sbr.rel (0) target = $region29
    $region28: #{_forward.1} parent=1 // pred_region
      _
    $region29: #{_forward.1} parent=1 // pred_fallthru
      _
    // Predicated region
    $region30: #{_forward.1} parent=1 // pred_check
      _
    $region31: #{_forward.1} parent=1 // pred_check_branch
      %34 = sbr.rel (0) target = $region33
    $region32: #{_forward.1} parent=1 // pred_region
      _
    $region33: #{_forward.1} parent=1 // pred_fallthru
      _
    // Predicated region
    $region34: #{_forward.1} parent=1 // pred_check
      _
    $region35: #{_forward.1} parent=1 // pred_check_branch
      %36 = sbr.rel (0) target = $region37
    $region36: #{_forward.1} parent=1 // pred_region
      _
    $region37: #{_forward.1} parent=1 // pred_fallthru
      _
    // Predicated region
    $region38: #{_forward.1} parent=1 // pred_check
      _
    $region39: #{_forward.1} parent=1 // pred_check_branch
      %38 = sbr.rel (0) target = $region41
    $region40: #{_forward.1} parent=1 // pred_region
      _
    $region41: #{_forward.1} parent=1 // pred_fallthru
      _
    // Predicated region
    $region42: #{_forward.1} parent=1 // pred_check
      _
    $region43: #{_forward.1} parent=1 // pred_check_branch
      %40 = sbr.rel (0) target = $region45
    $region44: #{_forward.1} parent=1 // pred_region
      _
    $region45: #{_forward.1} parent=1 // pred_fallthru
      _
    // Predicated region
    $region46: #{_forward.1} parent=1 // pred_check
      _
    $region47: #{_forward.1} parent=1 // pred_check_branch
      %42 = sbr.rel (0) target = $region49
    $region48: #{_forward.1} parent=1 // pred_region
      _
    $region49: #{_forward.1} parent=1 // pred_fallthru
      _
    // Predicated region
    $region50: #{_forward.1} parent=1 // pred_check
      _
    $region51: #{_forward.1} parent=1 // pred_check_branch
      %44 = sbr.rel (0) target = $region53
    $region52: #{_forward.1} parent=1 // pred_region
      _
    $region53: #{_forward.1} parent=1 // pred_fallthru
      _
    %v46 = vld [vmem:[%s0] sm:$0xf]
    %v47 = vld [vmem:[%s1] sm:$0xf]
    %v48 = vld [vmem:[%s2] sm:$0xf]
    %v49 = vld [vmem:[%s3] sm:$0xf]
    %v50 = vld [vmem:[%s3 + $0x4] sm:$0xf]
    %v51 = vld [vmem:[%s3 + $0x8] sm:$0xf]
    %v52 = vld [vmem:[%s3 + $0xc] sm:$0xf]
    %v53 = vld [vmem:[%s4] sm:$0x1]
    %v55 = vlaneseq
    %v56 = vshrl.u32 %v55, 7
    %v57 = vsub.s32 0, %v56
    %v58 = vrot.slane %v53, %v57
    %v64 = vunpack.c.l.b16 %v49
    %v65 = vunpack.c.l.b16 %v50
    %v66 = vunpack.c.l.b16 %v51
    %v67 = vunpack.c.l.b16 %v52
    %v68 = vpack.c.b16 %v65, %v64
    %v69 = vpack.c.b16 %v67, %v66
    %vm72 = vcmask 261120
    %v74 = vsel %vm72, %v46, 0
    %76 = vmatprep.subr.bf16.mxu0 0
    %77 = vmatpush1.bf16.msra.mxu0 0
    %78 = vmatprep.subr.bf16.mxu0 0
    %79 = vmatpush1.bf16.msra.mxu0 0
    %80 = vmatprep.subr.bf16.mxu0 0
    %81 = vmatpush1.bf16.msra.mxu0 0
    %82 = vmatprep.subr.bf16.mxu0 0
    %83 = vmatpush1.bf16.msra.mxu0 0
    %84 = vmatprep.subr.bf16.mxu0 0
    %85 = vmatpush1.bf16.msra.mxu0 0
    %86 = vmatprep.subr.bf16.mxu0 0
    %87 = vmatpush1.bf16.msra.mxu0 0
    %88 = vmatprep.subr.bf16.mxu0 0
    %89 = vmatpush1.bf16.msra.mxu0 %v69
    %90 = vmatprep.subr.bf16.mxu0 0
    %91 = vmatpush1.bf16.msra.mxu0 %v68
    %92 = vmatprep.subr.bf16.mxu0 0
    %93 = vmatpush2.bf16.msra.mxu0 0
    %94 = vmatprep.subr.bf16.mxu0 0
    %95 = vmatpush2.bf16.msra.mxu0 0
    %96 = vmatprep.subr.bf16.mxu0 0
    %97 = vmatpush2.bf16.msra.mxu0 0
    %98 = vmatprep.subr.bf16.mxu0 0
    %99 = vmatpush2.bf16.msra.mxu0 0
    %100 = vmatprep.subr.bf16.mxu0 0
    %101 = vmatpush2.bf16.msra.mxu0 0
    %102 = vmatprep.subr.bf16.mxu0 0
    %103 = vmatpush2.bf16.msra.mxu0 0
    %104 = vmatprep.subr.bf16.mxu0 0
    %105 = vmatpush2.bf16.msra.mxu0 0
    %106 = vmatprep.subr.bf16.mxu0 0
    %107 = vmatpush2.bf16.msra.mxu0 0
    %108 = vmatprep.mubr.bf16.mxu0 0
    %109 = vmatmul.mubr.bf16.gmra.mxu0 %v74
    %v110 = vpop.f32.mrf.mxu0
    %v111 = vadd.f32 %v58, %v110
    %v112 = vpop.f32.mrf.mxu0
    %v113 = vpop.f32.mrf.mxu0
    %v114 = vpop.f32.mrf.mxu0
    %115 = vdwg.mxu0
    %v116 = vld [vmem:[%s6] sm:$0xf]
    %v117 = vld [vmem:[%s6 + $0x4] sm:$0xf]
    %v118 = vld [vmem:[%s6 + $0x8] sm:$0xf]
    %v119 = vld [vmem:[%s6 + $0xc] sm:$0xf]
    %v120 = vld [vmem:[%s7] sm:$0x1]
    %v122 = vlaneseq
    %v123 = vshrl.u32 %v122, 7
    %v124 = vsub.s32 0, %v123
    %v125 = vrot.slane %v120, %v124
    %v131 = vunpack.c.l.b16 %v116
    %v132 = vunpack.c.l.b16 %v117
    %v133 = vunpack.c.l.b16 %v118
    %v134 = vunpack.c.l.b16 %v119
    %v135 = vpack.c.b16 %v132, %v131
    %v136 = vpack.c.b16 %v134, %v133
    %v140 = vsel %vm72, %v47, 0
    %142 = vmatprep.subr.bf16.mxu0 0
    %143 = vmatpush1.bf16.msra.mxu0 0
    %144 = vmatprep.subr.bf16.mxu0 0
    %145 = vmatpush1.bf16.msra.mxu0 0
    %146 = vmatprep.subr.bf16.mxu0 0
    %147 = vmatpush1.bf16.msra.mxu0 0
    %148 = vmatprep.subr.bf16.mxu0 0
    %149 = vmatpush1.bf16.msra.mxu0 0
    %150 = vmatprep.subr.bf16.mxu0 0
    %151 = vmatpush1.bf16.msra.mxu0 0
    %152 = vmatprep.subr.bf16.mxu0 0
    %153 = vmatpush1.bf16.msra.mxu0 0
    %154 = vmatprep.subr.bf16.mxu0 0
    %155 = vmatpush1.bf16.msra.mxu0 %v136
    %156 = vmatprep.subr.bf16.mxu0 0
    %157 = vmatpush1.bf16.msra.mxu0 %v135
    %158 = vmatprep.subr.bf16.mxu0 0
    %159 = vmatpush2.bf16.msra.mxu0 0
    %160 = vmatprep.subr.bf16.mxu0 0
    %161 = vmatpush2.bf16.msra.mxu0 0
    %162 = vmatprep.subr.bf16.mxu0 0
    %163 = vmatpush2.bf16.msra.mxu0 0
    %164 = vmatprep.subr.bf16.mxu0 0
    %165 = vmatpush2.bf16.msra.mxu0 0
    %166 = vmatprep.subr.bf16.mxu0 0
    %167 = vmatpush2.bf16.msra.mxu0 0
    %168 = vmatprep.subr.bf16.mxu0 0
    %169 = vmatpush2.bf16.msra.mxu0 0
    %170 = vmatprep.subr.bf16.mxu0 0
    %171 = vmatpush2.bf16.msra.mxu0 0
    %172 = vmatprep.subr.bf16.mxu0 0
    %173 = vmatpush2.bf16.msra.mxu0 0
    %174 = vmatprep.mubr.bf16.mxu0 0
    %175 = vmatmul.mubr.bf16.gmra.mxu0 %v140
    %v176 = vpop.f32.mrf.mxu0
    %v177 = vadd.f32 %v125, %v176
    %v178 = vpop.f32.mrf.mxu0
    %v179 = vpop.f32.mrf.mxu0
    %v180 = vpop.f32.mrf.mxu0
    %181 = vdwg.mxu0
    %v182 = vld [vmem:[%s8] sm:$0xf]
    %v183 = vld [vmem:[%s8 + $0x4] sm:$0xf]
    %v184 = vld [vmem:[%s8 + $0x8] sm:$0xf]
    %v185 = vld [vmem:[%s8 + $0xc] sm:$0xf]
    %v186 = vld [vmem:[%s9] sm:$0x1]
    %v188 = vlaneseq
    %v189 = vshrl.u32 %v188, 7
    %v190 = vsub.s32 0, %v189
    %v191 = vrot.slane %v186, %v190
    %v197 = vunpack.c.l.b16 %v182
    %v198 = vunpack.c.l.b16 %v183
    %v199 = vunpack.c.l.b16 %v184
    %v200 = vunpack.c.l.b16 %v185
    %v201 = vpack.c.b16 %v198, %v197
    %v202 = vpack.c.b16 %v200, %v199
    %v206 = vsel %vm72, %v48, 0
    %208 = vmatprep.subr.bf16.mxu0 0
    %209 = vmatpush1.bf16.msra.mxu0 0
    %210 = vmatprep.subr.bf16.mxu0 0
    %211 = vmatpush1.bf16.msra.mxu0 0
    %212 = vmatprep.subr.bf16.mxu0 0
    %213 = vmatpush1.bf16.msra.mxu0 0
    %214 = vmatprep.subr.bf16.mxu0 0
    %215 = vmatpush1.bf16.msra.mxu0 0
    %216 = vmatprep.subr.bf16.mxu0 0
    %217 = vmatpush1.bf16.msra.mxu0 0
    %218 = vmatprep.subr.bf16.mxu0 0
    %219 = vmatpush1.bf16.msra.mxu0 0
    %220 = vmatprep.subr.bf16.mxu0 0
    %221 = vmatpush1.bf16.msra.mxu0 %v202
    %222 = vmatprep.subr.bf16.mxu0 0
    %223 = vmatpush1.bf16.msra.mxu0 %v201
    %224 = vmatprep.subr.bf16.mxu0 0
    %225 = vmatpush2.bf16.msra.mxu0 0
    %226 = vmatprep.subr.bf16.mxu0 0
    %227 = vmatpush2.bf16.msra.mxu0 0
    %228 = vmatprep.subr.bf16.mxu0 0
    %229 = vmatpush2.bf16.msra.mxu0 0
    %230 = vmatprep.subr.bf16.mxu0 0
    %231 = vmatpush2.bf16.msra.mxu0 0
    %232 = vmatprep.subr.bf16.mxu0 0
    %233 = vmatpush2.bf16.msra.mxu0 0
    %234 = vmatprep.subr.bf16.mxu0 0
    %235 = vmatpush2.bf16.msra.mxu0 0
    %236 = vmatprep.subr.bf16.mxu0 0
    %237 = vmatpush2.bf16.msra.mxu0 0
    %238 = vmatprep.subr.bf16.mxu0 0
    %239 = vmatpush2.bf16.msra.mxu0 0
    %240 = vmatprep.mubr.bf16.mxu0 0
    %241 = vmatmul.mubr.bf16.gmra.mxu0 %v206
    %v242 = vpop.f32.mrf.mxu0
    %v243 = vadd.f32 %v191, %v242
    %v244 = vpop.f32.mrf.mxu0
    %v245 = vpop.f32.mrf.mxu0
    %v246 = vpop.f32.mrf.mxu0
    %247 = vdwg.mxu0
    %v248 = vld [vmem:[%s5] sm:$0x1]
    %v250 = vsel %vm72, %v248, 0
    %252 = vmatprep.subr.bf16.mxu0 0
    %253 = vmatpush1.bf16.xpose.msra.mxu0 0
    %254 = vmatprep.subr.bf16.mxu0 0
    %255 = vmatpush1.bf16.xpose.msra.mxu0 0
    %256 = vmatprep.subr.bf16.mxu0 0
    %257 = vmatpush1.bf16.xpose.msra.mxu0 0
    %258 = vmatprep.subr.bf16.mxu0 0
    %259 = vmatpush1.bf16.xpose.msra.mxu0 0
    %260 = vmatprep.subr.bf16.mxu0 0
    %261 = vmatpush1.bf16.xpose.msra.mxu0 0
    %262 = vmatprep.subr.bf16.mxu0 0
    %263 = vmatpush1.bf16.xpose.msra.mxu0 0
    %264 = vmatprep.subr.bf16.mxu0 0
    %265 = vmatpush1.bf16.xpose.msra.mxu0 0
    %266 = vmatprep.subr.bf16.mxu0 0
    %267 = vmatpush1.bf16.xpose.msra.mxu0 %v74
    %268 = vmatprep.subr.bf16.mxu0 0
    %269 = vmatpush2.bf16.xpose.msra.mxu0 0
    %270 = vmatprep.subr.bf16.mxu0 0
    %271 = vmatpush2.bf16.xpose.msra.mxu0 0
    %272 = vmatprep.subr.bf16.mxu0 0
    %273 = vmatpush2.bf16.xpose.msra.mxu0 0
    %274 = vmatprep.subr.bf16.mxu0 0
    %275 = vmatpush2.bf16.xpose.msra.mxu0 0
    %276 = vmatprep.subr.bf16.mxu0 0
    %277 = vmatpush2.bf16.xpose.msra.mxu0 0
    %278 = vmatprep.subr.bf16.mxu0 0
    %279 = vmatpush2.bf16.xpose.msra.mxu0 0
    %280 = vmatprep.subr.bf16.mxu0 0
    %281 = vmatpush2.bf16.xpose.msra.mxu0 0
    %282 = vmatprep.subr.bf16.mxu0 0
    %283 = vmatpush2.bf16.xpose.msra.mxu0 0
    %284 = vmatprep.mubr.bf16.mxu0 0
    %285 = vmatmul.mubr.bf16.gmra.mxu0 %v250
    %v286 = vpop.f32.mrf.mxu0
    %v287 = vadd.f32 0.0, %v286
    %v288 = vpop.f32.mrf.mxu0
    %v289 = vpop.f32.mrf.mxu0
    %v290 = vpop.f32.mrf.mxu0
    %291 = vdwg.mxu0
    %293 = vset.pattern.permute.xlu0 126
    %294 = vperm.xlu0 %293, %v111
    %v295 = vpop.permute.xlu0 %294
    %v297 = vlaneseq
    %v298 = vshrl.u32 %v297, 7
    %v299 = vsub.s32 0, %v298
    %v300 = vrot.slane %v287, %v299
    %v301 = vadd.f32 %v295, %v300
    %v302 = vmax.f32 %v301, 0.0
    %v303 = vpack.c.bf16 %v302, %v302
    %v304 = vpack.c.bf16 %v111, %v111
    %v305 = vadd.f32 %v111, %v177
    %v306 = vmax.f32 %v305, 0.0
    %308 = vset.pattern.permute.xlu0 127
    %309 = vperm.xlu0 %308, %v306
    %v310 = vpop.permute.xlu0 %309
    %v312 = vmul.f32 %v310, %v177
    %vm313 = vcmask 64512
    %v315 = vsel %vm313, %v303, 0
    %vm317 = vcmask 1043456
    %v319 = vsel %vm317, %v304, 0
    %321 = vmatprep.subr.bf16.mxu0 0
    %322 = vmatpush1.bf16.msra.mxu0 0
    %323 = vmatprep.subr.bf16.mxu0 0
    %324 = vmatpush1.bf16.msra.mxu0 0
    %325 = vmatprep.subr.bf16.mxu0 0
    %326 = vmatpush1.bf16.msra.mxu0 0
    %327 = vmatprep.subr.bf16.mxu0 0
    %328 = vmatpush1.bf16.msra.mxu0 0
    %329 = vmatprep.subr.bf16.mxu0 0
    %330 = vmatpush1.bf16.msra.mxu0 0
    %331 = vmatprep.subr.bf16.mxu0 0
    %332 = vmatpush1.bf16.msra.mxu0 0
    %333 = vmatprep.subr.bf16.mxu0 0
    %334 = vmatpush1.bf16.msra.mxu0 0
    %335 = vmatprep.subr.bf16.mxu0 0
    %336 = vmatpush1.bf16.msra.mxu0 %v319
    %337 = vmatprep.subr.bf16.mxu0 0
    %338 = vmatpush2.bf16.msra.mxu0 0
    %339 = vmatprep.subr.bf16.mxu0 0
    %340 = vmatpush2.bf16.msra.mxu0 0
    %341 = vmatprep.subr.bf16.mxu0 0
    %342 = vmatpush2.bf16.msra.mxu0 0
    %343 = vmatprep.subr.bf16.mxu0 0
    %344 = vmatpush2.bf16.msra.mxu0 0
    %345 = vmatprep.subr.bf16.mxu0 0
    %346 = vmatpush2.bf16.msra.mxu0 0
    %347 = vmatprep.subr.bf16.mxu0 0
    %348 = vmatpush2.bf16.msra.mxu0 0
    %349 = vmatprep.subr.bf16.mxu0 0
    %350 = vmatpush2.bf16.msra.mxu0 0
    %351 = vmatprep.subr.bf16.mxu0 0
    %352 = vmatpush2.bf16.msra.mxu0 0
    %353 = vmatprep.mubr.bf16.mxu0 0
    %354 = vmatmul.mubr.bf16.gmra.mxu0 %v315
    %v355 = vpop.f32.mrf.mxu0
    %v356 = vadd.f32 %v312, %v355
    %v357 = vpop.f32.mrf.mxu0
    %v358 = vpop.f32.mrf.mxu0
    %v359 = vpop.f32.mrf.mxu0
    %360 = vdwg.mxu0
    %v361 = vadd.f32 %v356, %v243
    %v362 = vld [vmem:[%s10] sm:$0xff]
    %v363 = vld [vmem:[%s10 + $0x8] sm:$0xff]
    %v364 = vld [vmem:[%s10 + $0x10] sm:$0xff]
    %v365 = vld [vmem:[%s10 + $0x18] sm:$0xff]
    %v366 = vld [vmem:[%s10 + $0x20] sm:$0xff]
    %v367 = vld [vmem:[%s10 + $0x28] sm:$0xff]
    %v368 = vld [vmem:[%s10 + $0x30] sm:$0xff]
    %v369 = vld [vmem:[%s10 + $0x38] sm:$0xff]
    %v370 = vld [vmem:[%s10 + $0x40] sm:$0xff]
    %v371 = vld [vmem:[%s10 + $0x48] sm:$0xff]
    %v372 = vld [vmem:[%s10 + $0x50] sm:$0xff]
    %v373 = vld [vmem:[%s10 + $0x58] sm:$0xff]
    %v374 = vld [vmem:[%s10 + $0x60] sm:$0xff]
    %v375 = vld [vmem:[%s10 + $0x68] sm:$0xff]
    %v376 = vld [vmem:[%s10 + $0x70] sm:$0xff]
    %v377 = vld [vmem:[%s10 + $0x78] sm:$0xff]
    %v378 = vld [vmem:[%s10 + $0x80] sm:$0xff]
    %v379 = vld [vmem:[%s10 + $0x88] sm:$0xff]
    %v380 = vld [vmem:[%s10 + $0x90] sm:$0xff]
    %v381 = vld [vmem:[%s10 + $0x98] sm:$0xff]
    %v382 = vpack.c.bf16 %v364, %v362
    %v383 = vpack.c.bf16 %v365, %v363
    %v384 = vpack.c.bf16 %v368, %v366
    %v385 = vpack.c.bf16 %v369, %v367
    %v386 = vpack.c.bf16 %v372, %v370
    %v387 = vpack.c.bf16 %v373, %v371
    %v388 = vpack.c.bf16 %v376, %v374
    %v389 = vpack.c.bf16 %v377, %v375
    %v390 = vpack.c.bf16 %v380, %v378
    %v391 = vpack.c.bf16 %v381, %v379
    %v392 = vld [vmem:[%s11] sm:$0xf]
    %v393 = vld [vmem:[%s11 + $0x4] sm:$0xf]
    %v394 = vld [vmem:[%s11 + $0x8] sm:$0xf]
    %v395 = vld [vmem:[%s11 + $0xc] sm:$0xf]
    %v396 = vld [vmem:[%s11 + $0x10] sm:$0xf]
    %v397 = vld [vmem:[%s11 + $0x14] sm:$0xf]
    %v398 = vld [vmem:[%s11 + $0x18] sm:$0xf]
    %v399 = vld [vmem:[%s11 + $0x1c] sm:$0xf]
    %v400 = vld [vmem:[%s11 + $0x20] sm:$0xf]
    %v401 = vld [vmem:[%s11 + $0x24] sm:$0xf]
    %v402 = vld [vmem:[%s11 + $0x28] sm:$0xf]
    %v403 = vld [vmem:[%s11 + $0x2c] sm:$0xf]
    %v404 = vld [vmem:[%s11 + $0x30] sm:$0xf]
    %v405 = vld [vmem:[%s11 + $0x34] sm:$0xf]
    %v406 = vld [vmem:[%s11 + $0x38] sm:$0xf]
    %v407 = vld [vmem:[%s11 + $0x3c] sm:$0xf]
    %v408 = vld [vmem:[%s11 + $0x40] sm:$0xf]
    %v409 = vld [vmem:[%s11 + $0x44] sm:$0xf]
    %v410 = vld [vmem:[%s11 + $0x48] sm:$0xf]
    %v411 = vld [vmem:[%s11 + $0x4c] sm:$0xf]
    %v412 = vld [vmem:[%s11 + $0x50] sm:$0xf]
    %v413 = vld [vmem:[%s11 + $0x54] sm:$0xf]
    %v414 = vld [vmem:[%s11 + $0x58] sm:$0xf]
    %v415 = vld [vmem:[%s11 + $0x5c] sm:$0xf]
    %v416 = vld [vmem:[%s11 + $0x60] sm:$0xf]
    %v417 = vld [vmem:[%s11 + $0x64] sm:$0xf]
    %v418 = vld [vmem:[%s11 + $0x68] sm:$0xf]
    %v419 = vld [vmem:[%s11 + $0x6c] sm:$0xf]
    %v420 = vld [vmem:[%s11 + $0x70] sm:$0xf]
    %v421 = vld [vmem:[%s11 + $0x74] sm:$0xf]
    %v422 = vld [vmem:[%s11 + $0x78] sm:$0xf]
    %v423 = vld [vmem:[%s11 + $0x7c] sm:$0xf]
    %v424 = vld [vmem:[%s10] sm:$0xfe]
    %v425 = vld [vmem:[%s10 + $0x8] sm:$0xfe]
    %v426 = vld [vmem:[%s10 + $0xa0] sm:$0x1]
    %v427 = vld [vmem:[%s10 + $0xa8] sm:$0x1]
    %v428 = vpack.c.bf16 %v364, %v424
    %v429 = vpack.c.bf16 %v365, %v425
    %v430 = vpack.c.bf16 %v426, %v426
    %v431 = vpack.c.bf16 %v427, %v427
    %v432 = vld [vmem:[%s11 + $0x80] sm:$0xf]
    %v433 = vld [vmem:[%s11 + $0x84] sm:$0xf]
    %v434 = vld [vmem:[%s11 + $0x88] sm:$0xf]
    %v435 = vld [vmem:[%s11 + $0x8c] sm:$0xf]
    %v436 = vld [vmem:[%s11 + $0x90] sm:$0xf]
    %v437 = vld [vmem:[%s11 + $0x94] sm:$0xf]
    %v438 = vld [vmem:[%s11 + $0x98] sm:$0xf]
    %v439 = vld [vmem:[%s11 + $0x9c] sm:$0xf]
    %v440 = vld [vmem:[%s11 + $0xa0] sm:$0xf]
    %v441 = vld [vmem:[%s11 + $0xa4] sm:$0xf]
    %v442 = vld [vmem:[%s11 + $0xa8] sm:$0xf]
    %v443 = vld [vmem:[%s11 + $0xac] sm:$0xf]
    %v444 = vld [vmem:[%s11 + $0xb0] sm:$0xf]
    %v445 = vld [vmem:[%s11 + $0xb4] sm:$0xf]
    %v446 = vld [vmem:[%s11 + $0xb8] sm:$0xf]
    %v447 = vld [vmem:[%s11 + $0xbc] sm:$0xf]
    %v448 = vld [vmem:[%s11 + $0xc0] sm:$0xf]
    %v449 = vld [vmem:[%s11 + $0xc4] sm:$0xf]
    %v450 = vld [vmem:[%s11 + $0xc8] sm:$0xf]
    %v451 = vld [vmem:[%s11 + $0xcc] sm:$0xf]
    %v452 = vld [vmem:[%s11 + $0xd0] sm:$0xf]
    %v453 = vld [vmem:[%s11 + $0xd4] sm:$0xf]
    %v454 = vld [vmem:[%s11 + $0xd8] sm:$0xf]
    %v455 = vld [vmem:[%s11 + $0xdc] sm:$0xf]
    %v456 = vld [vmem:[%s11 + $0xe0] sm:$0xf]
    %v457 = vld [vmem:[%s11 + $0xe4] sm:$0xf]
    %v458 = vld [vmem:[%s11 + $0xe8] sm:$0xf]
    %v459 = vld [vmem:[%s11 + $0xec] sm:$0xf]
    %v460 = vld [vmem:[%s11 + $0xf0] sm:$0xf]
    %v461 = vld [vmem:[%s11 + $0xf4] sm:$0xf]
    %v462 = vld [vmem:[%s11 + $0xf8] sm:$0xf]
    %v463 = vld [vmem:[%s11 + $0xfc] sm:$0xf]
    %vm464 = vsmask.f32 7424
    %v466 = vshrl.u32 %v428, 16
    %v468 = vshll.u32 %v428, 16
    %v470 = vrot.slane %v468, 1
    %v471 = vor.u32 %v466, %v470
    %v473 = vshll.u32 %v384, 16
    %v475 = vrot.slane %v473, 1
    %v476 = vsel %vm464, %v471, %v475
    %v478 = vshrl.u32 %v429, 16
    %v480 = vshll.u32 %v429, 16
    %v482 = vrot.slane %v480, 1
    %v483 = vor.u32 %v478, %v482
    %v485 = vshll.u32 %v385, 16
    %v487 = vrot.slane %v485, 1
    %v488 = vsel %vm464, %v483, %v487
    %v489 = vshrl.u32 %v384, 16
    %v491 = vor.u32 %v489, %v475
    %v493 = vshll.u32 %v386, 16
    %v495 = vrot.slane %v493, 1
    %v496 = vsel %vm464, %v491, %v495
    %v497 = vshrl.u32 %v385, 16
    %v499 = vor.u32 %v497, %v487
    %v501 = vshll.u32 %v387, 16
    %v503 = vrot.slane %v501, 1
    %v504 = vsel %vm464, %v499, %v503
    %v505 = vshrl.u32 %v386, 16
    %v507 = vor.u32 %v505, %v495
    %v509 = vshll.u32 %v388, 16
    %v511 = vrot.slane %v509, 1
    %v512 = vsel %vm464, %v507, %v511
    %v513 = vshrl.u32 %v387, 16
    %v515 = vor.u32 %v513, %v503
    %v517 = vshll.u32 %v389, 16
    %v519 = vrot.slane %v517, 1
    %v520 = vsel %vm464, %v515, %v519
    %v521 = vshrl.u32 %v388, 16
    %v523 = vor.u32 %v521, %v511
    %v525 = vshll.u32 %v390, 16
    %v527 = vrot.slane %v525, 1
    %v528 = vsel %vm464, %v523, %v527
    %v529 = vshrl.u32 %v389, 16
    %v531 = vor.u32 %v529, %v519
    %v533 = vshll.u32 %v391, 16
    %v535 = vrot.slane %v533, 1
    %v536 = vsel %vm464, %v531, %v535
    %v537 = vshrl.u32 %v390, 16
    %v539 = vor.u32 %v537, %v527
    %v541 = vshll.u32 %v430, 16
    %v543 = vrot.slane %v541, 1
    %v544 = vsel %vm464, %v539, %v543
    %v545 = vshrl.u32 %v391, 16
    %v547 = vor.u32 %v545, %v535
    %v549 = vshll.u32 %v431, 16
    %v551 = vrot.slane %v549, 1
    %v552 = vsel %vm464, %v547, %v551
    %v595 = vunpack.c.l.b16 %v432
    %v596 = vunpack.c.l.b16 %v433
    %v597 = vunpack.c.l.b16 %v434
    %v598 = vunpack.c.l.b16 %v435
    %v599 = vunpack.c.l.b16 %v436
    %v600 = vunpack.c.l.b16 %v437
    %v601 = vunpack.c.l.b16 %v438
    %v602 = vunpack.c.l.b16 %v439
    %v603 = vunpack.c.l.b16 %v440
    %v604 = vunpack.c.l.b16 %v441
    %v605 = vunpack.c.l.b16 %v442
    %v606 = vunpack.c.l.b16 %v443
    %v607 = vunpack.c.l.b16 %v444
    %v608 = vunpack.c.l.b16 %v445
    %v609 = vunpack.c.l.b16 %v446
    %v610 = vunpack.c.l.b16 %v447
    %v611 = vunpack.c.l.b16 %v448
    %v612 = vunpack.c.l.b16 %v449
    %v613 = vunpack.c.l.b16 %v450
    %v614 = vunpack.c.l.b16 %v451
    %v615 = vunpack.c.l.b16 %v452
    %v616 = vunpack.c.l.b16 %v453
    %v617 = vunpack.c.l.b16 %v454
    %v618 = vunpack.c.l.b16 %v455
    %v619 = vunpack.c.l.b16 %v456
    %v620 = vunpack.c.l.b16 %v457
    %v621 = vunpack.c.l.b16 %v458
    %v622 = vunpack.c.l.b16 %v459
    %v623 = vunpack.c.l.b16 %v460
    %v624 = vunpack.c.l.b16 %v461
    %v625 = vunpack.c.l.b16 %v462
    %v626 = vunpack.c.l.b16 %v463
    %v627 = vpack.c.b16 %v596, %v595
    %v628 = vpack.c.b16 %v598, %v597
    %v629 = vpack.c.b16 %v600, %v599
    %v630 = vpack.c.b16 %v602, %v601
    %v631 = vpack.c.b16 %v604, %v603
    %v632 = vpack.c.b16 %v606, %v605
    %v633 = vpack.c.b16 %v608, %v607
    %v634 = vpack.c.b16 %v610, %v609
    %v635 = vpack.c.b16 %v612, %v611
    %v636 = vpack.c.b16 %v614, %v613
    %v637 = vpack.c.b16 %v616, %v615
    %v638 = vpack.c.b16 %v618, %v617
    %v639 = vpack.c.b16 %v620, %v619
    %v640 = vpack.c.b16 %v622, %v621
    %v641 = vpack.c.b16 %v624, %v623
    %v642 = vpack.c.b16 %v626, %v625
    %659 = vmatprep.subr.bf16.mxu0 0
    %660 = vmatpush1.bf16.msra.mxu0 %v634
    %661 = vmatprep.subr.bf16.mxu0 0
    %662 = vmatpush1.bf16.msra.mxu0 %v633
    %663 = vmatprep.subr.bf16.mxu0 0
    %664 = vmatpush1.bf16.msra.mxu0 %v632
    %665 = vmatprep.subr.bf16.mxu0 0
    %666 = vmatpush1.bf16.msra.mxu0 %v631
    %667 = vmatprep.subr.bf16.mxu0 0
    %668 = vmatpush1.bf16.msra.mxu0 %v630
    %669 = vmatprep.subr.bf16.mxu0 0
    %670 = vmatpush1.bf16.msra.mxu0 %v629
    %671 = vmatprep.subr.bf16.mxu0 0
    %672 = vmatpush1.bf16.msra.mxu0 %v628
    %673 = vmatprep.subr.bf16.mxu0 0
    %674 = vmatpush1.bf16.msra.mxu0 %v627
    %675 = vmatprep.subr.bf16.mxu0 0
    %676 = vmatpush2.bf16.msra.mxu0 %v642
    %677 = vmatprep.subr.bf16.mxu0 0
    %678 = vmatpush2.bf16.msra.mxu0 %v641
    %679 = vmatprep.subr.bf16.mxu0 0
    %680 = vmatpush2.bf16.msra.mxu0 %v640
    %681 = vmatprep.subr.bf16.mxu0 0
    %682 = vmatpush2.bf16.msra.mxu0 %v639
    %683 = vmatprep.subr.bf16.mxu0 0
    %684 = vmatpush2.bf16.msra.mxu0 %v638
    %685 = vmatprep.subr.bf16.mxu0 0
    %686 = vmatpush2.bf16.msra.mxu0 %v637
    %687 = vmatprep.subr.bf16.mxu0 0
    %688 = vmatpush2.bf16.msra.mxu0 %v636
    %689 = vmatprep.subr.bf16.mxu0 0
    %690 = vmatpush2.bf16.msra.mxu0 %v635
    %691 = vmatprep.mubr.bf16.mxu0 %v488
    %692 = vmatmul.mubr.bf16.gmra.mxu0 %v476
    %v693 = vpop.f32.mrf.mxu0
    %v694 = vadd.f32 0.0, %v693
    %v695 = vpop.f32.mrf.mxu0
    %v696 = vpop.f32.mrf.mxu0
    %v697 = vadd.f32 0.0, %v696
    %v698 = vpop.f32.mrf.mxu0
    %699 = vmatprep.mubr.bf16.mxu0 %v504
    %700 = vmatmul.mubr.bf16.gmra.mxu0 %v496
    %v701 = vpop.f32.mrf.mxu0
    %v702 = vadd.f32 0.0, %v701
    %v703 = vpop.f32.mrf.mxu0
    %v704 = vpop.f32.mrf.mxu0
    %v705 = vadd.f32 0.0, %v704
    %v706 = vpop.f32.mrf.mxu0
    %707 = vmatprep.mubr.bf16.mxu0 %v520
    %708 = vmatmul.mubr.bf16.gmra.mxu0 %v512
    %v709 = vpop.f32.mrf.mxu0
    %v710 = vadd.f32 0.0, %v709
    %v711 = vpop.f32.mrf.mxu0
    %v712 = vpop.f32.mrf.mxu0
    %v713 = vadd.f32 0.0, %v712
    %v714 = vpop.f32.mrf.mxu0
    %715 = vmatprep.mubr.bf16.mxu0 %v536
    %716 = vmatmul.mubr.bf16.gmra.mxu0 %v528
    %v717 = vpop.f32.mrf.mxu0
    %v718 = vadd.f32 0.0, %v717
    %v719 = vpop.f32.mrf.mxu0
    %v720 = vpop.f32.mrf.mxu0
    %v721 = vadd.f32 0.0, %v720
    %v722 = vpop.f32.mrf.mxu0
    %723 = vmatprep.mubr.bf16.mxu0 %v552
    %724 = vmatmul.mubr.bf16.gmra.mxu0 %v544
    %v725 = vpop.f32.mrf.mxu0
    %v726 = vadd.f32 0.0, %v725
    %v727 = vpop.f32.mrf.mxu0
    %v728 = vpop.f32.mrf.mxu0
    %v729 = vadd.f32 0.0, %v728
    %v730 = vpop.f32.mrf.mxu0
    %731 = vdwg.mxu0
    %v764 = vunpack.c.l.b16 %v392
    %v765 = vunpack.c.l.b16 %v393
    %v766 = vunpack.c.l.b16 %v394
    %v767 = vunpack.c.l.b16 %v395
    %v768 = vunpack.c.l.b16 %v396
    %v769 = vunpack.c.l.b16 %v397
    %v770 = vunpack.c.l.b16 %v398
    %v771 = vunpack.c.l.b16 %v399
    %v772 = vunpack.c.l.b16 %v400
    %v773 = vunpack.c.l.b16 %v401
    %v774 = vunpack.c.l.b16 %v402
    %v775 = vunpack.c.l.b16 %v403
    %v776 = vunpack.c.l.b16 %v404
    %v777 = vunpack.c.l.b16 %v405
    %v778 = vunpack.c.l.b16 %v406
    %v779 = vunpack.c.l.b16 %v407
    %v780 = vunpack.c.l.b16 %v408
    %v781 = vunpack.c.l.b16 %v409
    %v782 = vunpack.c.l.b16 %v410
    %v783 = vunpack.c.l.b16 %v411
    %v784 = vunpack.c.l.b16 %v412
    %v785 = vunpack.c.l.b16 %v413
    %v786 = vunpack.c.l.b16 %v414
    %v787 = vunpack.c.l.b16 %v415
    %v788 = vunpack.c.l.b16 %v416
    %v789 = vunpack.c.l.b16 %v417
    %v790 = vunpack.c.l.b16 %v418
    %v791 = vunpack.c.l.b16 %v419
    %v792 = vunpack.c.l.b16 %v420
    %v793 = vunpack.c.l.b16 %v421
    %v794 = vunpack.c.l.b16 %v422
    %v795 = vunpack.c.l.b16 %v423
    %v796 = vpack.c.b16 %v765, %v764
    %v797 = vpack.c.b16 %v767, %v766
    %v798 = vpack.c.b16 %v769, %v768
    %v799 = vpack.c.b16 %v771, %v770
    %v800 = vpack.c.b16 %v773, %v772
    %v801 = vpack.c.b16 %v775, %v774
    %v802 = vpack.c.b16 %v777, %v776
    %v803 = vpack.c.b16 %v779, %v778
    %v804 = vpack.c.b16 %v781, %v780
    %v805 = vpack.c.b16 %v783, %v782
    %v806 = vpack.c.b16 %v785, %v784
    %v807 = vpack.c.b16 %v787, %v786
    %v808 = vpack.c.b16 %v789, %v788
    %v809 = vpack.c.b16 %v791, %v790
    %v810 = vpack.c.b16 %v793, %v792
    %v811 = vpack.c.b16 %v795, %v794
    %828 = vmatprep.subr.bf16.mxu0 0
    %829 = vmatpush1.bf16.msra.mxu0 %v803
    %830 = vmatprep.subr.bf16.mxu0 0
    %831 = vmatpush1.bf16.msra.mxu0 %v802
    %832 = vmatprep.subr.bf16.mxu0 0
    %833 = vmatpush1.bf16.msra.mxu0 %v801
    %834 = vmatprep.subr.bf16.mxu0 0
    %835 = vmatpush1.bf16.msra.mxu0 %v800
    %836 = vmatprep.subr.bf16.mxu0 0
    %837 = vmatpush1.bf16.msra.mxu0 %v799
    %838 = vmatprep.subr.bf16.mxu0 0
    %839 = vmatpush1.bf16.msra.mxu0 %v798
    %840 = vmatprep.subr.bf16.mxu0 0
    %841 = vmatpush1.bf16.msra.mxu0 %v797
    %842 = vmatprep.subr.bf16.mxu0 0
    %843 = vmatpush1.bf16.msra.mxu0 %v796
    %844 = vmatprep.subr.bf16.mxu0 0
    %845 = vmatpush2.bf16.msra.mxu0 %v811
    %846 = vmatprep.subr.bf16.mxu0 0
    %847 = vmatpush2.bf16.msra.mxu0 %v810
    %848 = vmatprep.subr.bf16.mxu0 0
    %849 = vmatpush2.bf16.msra.mxu0 %v809
    %850 = vmatprep.subr.bf16.mxu0 0
    %851 = vmatpush2.bf16.msra.mxu0 %v808
    %852 = vmatprep.subr.bf16.mxu0 0
    %853 = vmatpush2.bf16.msra.mxu0 %v807
    %854 = vmatprep.subr.bf16.mxu0 0
    %855 = vmatpush2.bf16.msra.mxu0 %v806
    %856 = vmatprep.subr.bf16.mxu0 0
    %857 = vmatpush2.bf16.msra.mxu0 %v805
    %858 = vmatprep.subr.bf16.mxu0 0
    %859 = vmatpush2.bf16.msra.mxu0 %v804
    %860 = vmatprep.mubr.bf16.mxu0 %v383
    %861 = vmatmul.mubr.bf16.gmra.mxu0 %v382
    %v862 = vpop.f32.mrf.mxu0
    %v863 = vadd.f32 %v694, %v862
    %v864 = vpop.f32.mrf.mxu0
    %v865 = vpop.f32.mrf.mxu0
    %v866 = vadd.f32 %v697, %v865
    %v867 = vpop.f32.mrf.mxu0
    %868 = vmatprep.mubr.bf16.mxu0 %v385
    %869 = vmatmul.mubr.bf16.gmra.mxu0 %v384
    %v870 = vpop.f32.mrf.mxu0
    %v871 = vadd.f32 %v702, %v870
    %v872 = vpop.f32.mrf.mxu0
    %v873 = vpop.f32.mrf.mxu0
    %v874 = vadd.f32 %v705, %v873
    %v875 = vpop.f32.mrf.mxu0
    %876 = vmatprep.mubr.bf16.mxu0 %v387
    %877 = vmatmul.mubr.bf16.gmra.mxu0 %v386
    %v878 = vpop.f32.mrf.mxu0
    %v879 = vadd.f32 %v710, %v878
    %v880 = vpop.f32.mrf.mxu0
    %v881 = vpop.f32.mrf.mxu0
    %v882 = vadd.f32 %v713, %v881
    %v883 = vpop.f32.mrf.mxu0
    %884 = vmatprep.mubr.bf16.mxu0 %v389
    %885 = vmatmul.mubr.bf16.gmra.mxu0 %v388
    %v886 = vpop.f32.mrf.mxu0
    %v887 = vadd.f32 %v718, %v886
    %v888 = vpop.f32.mrf.mxu0
    %v889 = vpop.f32.mrf.mxu0
    %v890 = vadd.f32 %v721, %v889
    %v891 = vpop.f32.mrf.mxu0
    %892 = vmatprep.mubr.bf16.mxu0 %v391
    %893 = vmatmul.mubr.bf16.gmra.mxu0 %v390
    %v894 = vpop.f32.mrf.mxu0
    %v895 = vadd.f32 %v726, %v894
    %v896 = vpop.f32.mrf.mxu0
    %v897 = vpop.f32.mrf.mxu0
    %v898 = vadd.f32 %v729, %v897
    %v899 = vpop.f32.mrf.mxu0
    %900 = vdwg.mxu0
    %v901 = vld [vmem:[%s10] sm:$0xfc]
    %v902 = vld [vmem:[%s10 + $0x8] sm:$0xfc]
    %v903 = vld [vmem:[%s10 + $0xa0] sm:$0x3]
    %v904 = vld [vmem:[%s10 + $0xa8] sm:$0x3]
    %v905 = vpack.c.bf16 %v364, %v901
    %v906 = vpack.c.bf16 %v365, %v902
    %v907 = vpack.c.bf16 %v903, %v903
    %v908 = vpack.c.bf16 %v904, %v904
    %v909 = vld [vmem:[%s11 + $0x100] sm:$0xf]
    %v910 = vld [vmem:[%s11 + $0x104] sm:$0xf]
    %v911 = vld [vmem:[%s11 + $0x108] sm:$0xf]
    %v912 = vld [vmem:[%s11 + $0x10c] sm:$0xf]
    %v913 = vld [vmem:[%s11 + $0x110] sm:$0xf]
    %v914 = vld [vmem:[%s11 + $0x114] sm:$0xf]
    %v915 = vld [vmem:[%s11 + $0x118] sm:$0xf]
    %v916 = vld [vmem:[%s11 + $0x11c] sm:$0xf]
    %v917 = vld [vmem:[%s11 + $0x120] sm:$0xf]
    %v918 = vld [vmem:[%s11 + $0x124] sm:$0xf]
    %v919 = vld [vmem:[%s11 + $0x128] sm:$0xf]
    %v920 = vld [vmem:[%s11 + $0x12c] sm:$0xf]
    %v921 = vld [vmem:[%s11 + $0x130] sm:$0xf]
    %v922 = vld [vmem:[%s11 + $0x134] sm:$0xf]
    %v923 = vld [vmem:[%s11 + $0x138] sm:$0xf]
    %v924 = vld [vmem:[%s11 + $0x13c] sm:$0xf]
    %v925 = vld [vmem:[%s11 + $0x140] sm:$0xf]
    %v926 = vld [vmem:[%s11 + $0x144] sm:$0xf]
    %v927 = vld [vmem:[%s11 + $0x148] sm:$0xf]
    %v928 = vld [vmem:[%s11 + $0x14c] sm:$0xf]
    %v929 = vld [vmem:[%s11 + $0x150] sm:$0xf]
    %v930 = vld [vmem:[%s11 + $0x154] sm:$0xf]
    %v931 = vld [vmem:[%s11 + $0x158] sm:$0xf]
    %v932 = vld [vmem:[%s11 + $0x15c] sm:$0xf]
    %v933 = vld [vmem:[%s11 + $0x160] sm:$0xf]
    %v934 = vld [vmem:[%s11 + $0x164] sm:$0xf]
    %v935 = vld [vmem:[%s11 + $0x168] sm:$0xf]
    %v936 = vld [vmem:[%s11 + $0x16c] sm:$0xf]
    %v937 = vld [vmem:[%s11 + $0x170] sm:$0xf]
    %v938 = vld [vmem:[%s11 + $0x174] sm:$0xf]
    %v939 = vld [vmem:[%s11 + $0x178] sm:$0xf]
    %v940 = vld [vmem:[%s11 + $0x17c] sm:$0xf]
    %vm953 = vcmask 1046528
    %v954 = vrot.slane %v905, 1
    %v955 = vrot.slane %v384, 1
    %v956 = vsel %vm953, %v954, %v955
    %v957 = vrot.slane %v906, 1
    %v958 = vrot.slane %v385, 1
    %v959 = vsel %vm953, %v957, %v958
    %v960 = vrot.slane %v386, 1
    %v961 = vsel %vm953, %v955, %v960
    %v962 = vrot.slane %v387, 1
    %v963 = vsel %vm953, %v958, %v962
    %v964 = vrot.slane %v388, 1
    %v965 = vsel %vm953, %v960, %v964
    %v966 = vrot.slane %v389, 1
    %v967 = vsel %vm953, %v962, %v966
    %v968 = vrot.slane %v390, 1
    %v969 = vsel %vm953, %v964, %v968
    %v970 = vrot.slane %v391, 1
    %v971 = vsel %vm953, %v966, %v970
    %v972 = vrot.slane %v907, 1
    %v973 = vsel %vm953, %v968, %v972
    %v974 = vrot.slane %v908, 1
    %v975 = vsel %vm953, %v970, %v974
    %v1018 = vunpack.c.l.b16 %v909
    %v1019 = vunpack.c.l.b16 %v910
    %v1020 = vunpack.c.l.b16 %v911
    %v1021 = vunpack.c.l.b16 %v912
    %v1022 = vunpack.c.l.b16 %v913
    %v1023 = vunpack.c.l.b16 %v914
    %v1024 = vunpack.c.l.b16 %v915
    %v1025 = vunpack.c.l.b16 %v916
    %v1026 = vunpack.c.l.b16 %v917
    %v1027 = vunpack.c.l.b16 %v918
    %v1028 = vunpack.c.l.b16 %v919
    %v1029 = vunpack.c.l.b16 %v920
    %v1030 = vunpack.c.l.b16 %v921
    %v1031 = vunpack.c.l.b16 %v922
    %v1032 = vunpack.c.l.b16 %v923
    %v1033 = vunpack.c.l.b16 %v924
    %v1034 = vunpack.c.l.b16 %v925
    %v1035 = vunpack.c.l.b16 %v926
    %v1036 = vunpack.c.l.b16 %v927
    %v1037 = vunpack.c.l.b16 %v928
    %v1038 = vunpack.c.l.b16 %v929
    %v1039 = vunpack.c.l.b16 %v930
    %v1040 = vunpack.c.l.b16 %v931
    %v1041 = vunpack.c.l.b16 %v932
    %v1042 = vunpack.c.l.b16 %v933
    %v1043 = vunpack.c.l.b16 %v934
    %v1044 = vunpack.c.l.b16 %v935
    %v1045 = vunpack.c.l.b16 %v936
    %v1046 = vunpack.c.l.b16 %v937
    %v1047 = vunpack.c.l.b16 %v938
    %v1048 = vunpack.c.l.b16 %v939
    %v1049 = vunpack.c.l.b16 %v940
    %v1050 = vpack.c.b16 %v1019, %v1018
    %v1051 = vpack.c.b16 %v1021, %v1020
    %v1052 = vpack.c.b16 %v1023, %v1022
    %v1053 = vpack.c.b16 %v1025, %v1024
    %v1054 = vpack.c.b16 %v1027, %v1026
    %v1055 = vpack.c.b16 %v1029, %v1028
    %v1056 = vpack.c.b16 %v1031, %v1030
    %v1057 = vpack.c.b16 %v1033, %v1032
    %v1058 = vpack.c.b16 %v1035, %v1034
    %v1059 = vpack.c.b16 %v1037, %v1036
    %v1060 = vpack.c.b16 %v1039, %v1038
    %v1061 = vpack.c.b16 %v1041, %v1040
    %v1062 = vpack.c.b16 %v1043, %v1042
    %v1063 = vpack.c.b16 %v1045, %v1044
    %v1064 = vpack.c.b16 %v1047, %v1046
    %v1065 = vpack.c.b16 %v1049, %v1048
    %1082 = vmatprep.subr.bf16.mxu0 0
    %1083 = vmatpush1.bf16.msra.mxu0 %v1057
    %1084 = vmatprep.subr.bf16.mxu0 0
    %1085 = vmatpush1.bf16.msra.mxu0 %v1056
    %1086 = vmatprep.subr.bf16.mxu0 0
    %1087 = vmatpush1.bf16.msra.mxu0 %v1055
    %1088 = vmatprep.subr.bf16.mxu0 0
    %1089 = vmatpush1.bf16.msra.mxu0 %v1054
    %1090 = vmatprep.subr.bf16.mxu0 0
    %1091 = vmatpush1.bf16.msra.mxu0 %v1053
    %1092 = vmatprep.subr.bf16.mxu0 0
    %1093 = vmatpush1.bf16.msra.mxu0 %v1052
    %1094 = vmatprep.subr.bf16.mxu0 0
    %1095 = vmatpush1.bf16.msra.mxu0 %v1051
    %1096 = vmatprep.subr.bf16.mxu0 0
    %1097 = vmatpush1.bf16.msra.mxu0 %v1050
    %1098 = vmatprep.subr.bf16.mxu0 0
    %1099 = vmatpush2.bf16.msra.mxu0 %v1065
    %1100 = vmatprep.subr.bf16.mxu0 0
    %1101 = vmatpush2.bf16.msra.mxu0 %v1064
    %1102 = vmatprep.subr.bf16.mxu0 0
    %1103 = vmatpush2.bf16.msra.mxu0 %v1063
    %1104 = vmatprep.subr.bf16.mxu0 0
    %1105 = vmatpush2.bf16.msra.mxu0 %v1062
    %1106 = vmatprep.subr.bf16.mxu0 0
    %1107 = vmatpush2.bf16.msra.mxu0 %v1061
    %1108 = vmatprep.subr.bf16.mxu0 0
    %1109 = vmatpush2.bf16.msra.mxu0 %v1060
    %1110 = vmatprep.subr.bf16.mxu0 0
    %1111 = vmatpush2.bf16.msra.mxu0 %v1059
    %1112 = vmatprep.subr.bf16.mxu0 0
    %1113 = vmatpush2.bf16.msra.mxu0 %v1058
    %1114 = vmatprep.mubr.bf16.mxu0 %v959
    %1115 = vmatmul.mubr.bf16.gmra.mxu0 %v956
    %v1116 = vpop.f32.mrf.mxu0
    %v1117 = vadd.f32 0.0, %v1116
    %v1118 = vpop.f32.mrf.mxu0
    %v1119 = vpop.f32.mrf.mxu0
    %v1120 = vadd.f32 0.0, %v1119
    %v1121 = vpop.f32.mrf.mxu0
    %1122 = vmatprep.mubr.bf16.mxu0 %v963
    %1123 = vmatmul.mubr.bf16.gmra.mxu0 %v961
    %v1124 = vpop.f32.mrf.mxu0
    %v1125 = vadd.f32 0.0, %v1124
    %v1126 = vpop.f32.mrf.mxu0
    %v1127 = vpop.f32.mrf.mxu0
    %v1128 = vadd.f32 0.0, %v1127
    %v1129 = vpop.f32.mrf.mxu0
    %1130 = vmatprep.mubr.bf16.mxu0 %v967
    %1131 = vmatmul.mubr.bf16.gmra.mxu0 %v965
    %v1132 = vpop.f32.mrf.mxu0
    %v1133 = vadd.f32 0.0, %v1132
    %v1134 = vpop.f32.mrf.mxu0
    %v1135 = vpop.f32.mrf.mxu0
    %v1136 = vadd.f32 0.0, %v1135
    %v1137 = vpop.f32.mrf.mxu0
    %1138 = vmatprep.mubr.bf16.mxu0 %v971
    %1139 = vmatmul.mubr.bf16.gmra.mxu0 %v969
    %v1140 = vpop.f32.mrf.mxu0
    %v1141 = vadd.f32 0.0, %v1140
    %v1142 = vpop.f32.mrf.mxu0
    %v1143 = vpop.f32.mrf.mxu0
    %v1144 = vadd.f32 0.0, %v1143
    %v1145 = vpop.f32.mrf.mxu0
    %1146 = vmatprep.mubr.bf16.mxu0 %v975
    %1147 = vmatmul.mubr.bf16.gmra.mxu0 %v973
    %v1148 = vpop.f32.mrf.mxu0
    %v1149 = vadd.f32 0.0, %v1148
    %v1150 = vpop.f32.mrf.mxu0
    %v1151 = vpop.f32.mrf.mxu0
    %v1152 = vadd.f32 0.0, %v1151
    %v1153 = vpop.f32.mrf.mxu0
    %1154 = vdwg.mxu0
    %v1155 = vadd.f32 %v863, %v1117
    %v1156 = vadd.f32 %v866, %v1120
    %v1157 = vadd.f32 %v871, %v1125
    %v1158 = vadd.f32 %v874, %v1128
    %v1159 = vadd.f32 %v879, %v1133
    %v1160 = vadd.f32 %v882, %v1136
    %v1161 = vadd.f32 %v887, %v1141
    %v1162 = vadd.f32 %v890, %v1144
    %v1163 = vadd.f32 %v895, %v1149
    %v1164 = vadd.f32 %v898, %v1152
    %v1165 = vld [vmem:[%s10 + $0x10] sm:$0xfc]
    %v1166 = vld [vmem:[%s10 + $0x18] sm:$0xfc]
    %v1167 = vld [vmem:[%s10 + $0x20] sm:$0xff]
    %v1168 = vld [vmem:[%s10 + $0x28] sm:$0xff]
    %v1169 = vld [vmem:[%s10 + $0x30] sm:$0xff]
    %v1170 = vld [vmem:[%s10 + $0x38] sm:$0xff]
    %v1171 = vld [vmem:[%s10 + $0x40] sm:$0xff]
    %v1172 = vld [vmem:[%s10 + $0x48] sm:$0xff]
    %v1173 = vld [vmem:[%s10 + $0x50] sm:$0xff]
    %v1174 = vld [vmem:[%s10 + $0x58] sm:$0xff]
    %v1175 = vld [vmem:[%s10 + $0x60] sm:$0xff]
    %v1176 = vld [vmem:[%s10 + $0x68] sm:$0xff]
    %v1177 = vld [vmem:[%s10 + $0x70] sm:$0xff]
    %v1178 = vld [vmem:[%s10 + $0x78] sm:$0xff]
    %v1179 = vld [vmem:[%s10 + $0x80] sm:$0xff]
    %v1180 = vld [vmem:[%s10 + $0x88] sm:$0xff]
    %v1181 = vld [vmem:[%s10 + $0x90] sm:$0xff]
    %v1182 = vld [vmem:[%s10 + $0x98] sm:$0xff]
    %v1183 = vld [vmem:[%s10 + $0xa0] sm:$0xff]
    %v1184 = vld [vmem:[%s10 + $0xa8] sm:$0xff]
    %v1185 = vld [vmem:[%s10 + $0xb0] sm:$0x3]
    %v1186 = vld [vmem:[%s10 + $0xb8] sm:$0x3]
    %v1187 = vpack.c.bf16 %v1167, %v1165
    %v1188 = vpack.c.bf16 %v1168, %v1166
    %v1189 = vpack.c.bf16 %v1171, %v1169
    %v1190 = vpack.c.bf16 %v1172, %v1170
    %v1191 = vpack.c.bf16 %v1175, %v1173
    %v1192 = vpack.c.bf16 %v1176, %v1174
    %v1193 = vpack.c.bf16 %v1179, %v1177
    %v1194 = vpack.c.bf16 %v1180, %v1178
    %v1195 = vpack.c.bf16 %v1183, %v1181
    %v1196 = vpack.c.bf16 %v1184, %v1182
    %v1197 = vpack.c.bf16 %v1185, %v1185
    %v1198 = vpack.c.bf16 %v1186, %v1186
    %v1199 = vld [vmem:[%s11 + $0x180] sm:$0xf]
    %v1200 = vld [vmem:[%s11 + $0x184] sm:$0xf]
    %v1201 = vld [vmem:[%s11 + $0x188] sm:$0xf]
    %v1202 = vld [vmem:[%s11 + $0x18c] sm:$0xf]
    %v1203 = vld [vmem:[%s11 + $0x190] sm:$0xf]
    %v1204 = vld [vmem:[%s11 + $0x194] sm:$0xf]
    %v1205 = vld [vmem:[%s11 + $0x198] sm:$0xf]
    %v1206 = vld [vmem:[%s11 + $0x19c] sm:$0xf]
    %v1207 = vld [vmem:[%s11 + $0x1a0] sm:$0xf]
    %v1208 = vld [vmem:[%s11 + $0x1a4] sm:$0xf]
    %v1209 = vld [vmem:[%s11 + $0x1a8] sm:$0xf]
    %v1210 = vld [vmem:[%s11 + $0x1ac] sm:$0xf]
    %v1211 = vld [vmem:[%s11 + $0x1b0] sm:$0xf]
    %v1212 = vld [vmem:[%s11 + $0x1b4] sm:$0xf]
    %v1213 = vld [vmem:[%s11 + $0x1b8] sm:$0xf]
    %v1214 = vld [vmem:[%s11 + $0x1bc] sm:$0xf]
    %v1215 = vld [vmem:[%s11 + $0x1c0] sm:$0xf]
    %v1216 = vld [vmem:[%s11 + $0x1c4] sm:$0xf]
    %v1217 = vld [vmem:[%s11 + $0x1c8] sm:$0xf]
    %v1218 = vld [vmem:[%s11 + $0x1cc] sm:$0xf]
    %v1219 = vld [vmem:[%s11 + $0x1d0] sm:$0xf]
    %v1220 = vld [vmem:[%s11 + $0x1d4] sm:$0xf]
    %v1221 = vld [vmem:[%s11 + $0x1d8] sm:$0xf]
    %v1222 = vld [vmem:[%s11 + $0x1dc] sm:$0xf]
    %v1223 = vld [vmem:[%s11 + $0x1e0] sm:$0xf]
    %v1224 = vld [vmem:[%s11 + $0x1e4] sm:$0xf]
    %v1225 = vld [vmem:[%s11 + $0x1e8] sm:$0xf]
    %v1226 = vld [vmem:[%s11 + $0x1ec] sm:$0xf]
    %v1227 = vld [vmem:[%s11 + $0x1f0] sm:$0xf]
    %v1228 = vld [vmem:[%s11 + $0x1f4] sm:$0xf]
    %v1229 = vld [vmem:[%s11 + $0x1f8] sm:$0xf]
    %v1230 = vld [vmem:[%s11 + $0x1fc] sm:$0xf]
    %v1243 = vrot.slane %v1187, 1
    %v1244 = vrot.slane %v1189, 1
    %v1245 = vsel %vm953, %v1243, %v1244
    %v1246 = vrot.slane %v1188, 1
    %v1247 = vrot.slane %v1190, 1
    %v1248 = vsel %vm953, %v1246, %v1247
    %v1249 = vrot.slane %v1191, 1
    %v1250 = vsel %vm953, %v1244, %v1249
    %v1251 = vrot.slane %v1192, 1
    %v1252 = vsel %vm953, %v1247, %v1251
    %v1253 = vrot.slane %v1193, 1
    %v1254 = vsel %vm953, %v1249, %v1253
    %v1255 = vrot.slane %v1194, 1
    %v1256 = vsel %vm953, %v1251, %v1255
    %v1257 = vrot.slane %v1195, 1
    %v1258 = vsel %vm953, %v1253, %v1257
    %v1259 = vrot.slane %v1196, 1
    %v1260 = vsel %vm953, %v1255, %v1259
    %v1261 = vrot.slane %v1197, 1
    %v1262 = vsel %vm953, %v1257, %v1261
    %v1263 = vrot.slane %v1198, 1
    %v1264 = vsel %vm953, %v1259, %v1263
    %v1307 = vunpack.c.l.b16 %v1199
    %v1308 = vunpack.c.l.b16 %v1200
    %v1309 = vunpack.c.l.b16 %v1201
    %v1310 = vunpack.c.l.b16 %v1202
    %v1311 = vunpack.c.l.b16 %v1203
    %v1312 = vunpack.c.l.b16 %v1204
    %v1313 = vunpack.c.l.b16 %v1205
    %v1314 = vunpack.c.l.b16 %v1206
    %v1315 = vunpack.c.l.b16 %v1207
    %v1316 = vunpack.c.l.b16 %v1208
    %v1317 = vunpack.c.l.b16 %v1209
    %v1318 = vunpack.c.l.b16 %v1210
    %v1319 = vunpack.c.l.b16 %v1211
    %v1320 = vunpack.c.l.b16 %v1212
    %v1321 = vunpack.c.l.b16 %v1213
    %v1322 = vunpack.c.l.b16 %v1214
    %v1323 = vunpack.c.l.b16 %v1215
    %v1324 = vunpack.c.l.b16 %v1216
    %v1325 = vunpack.c.l.b16 %v1217
    %v1326 = vunpack.c.l.b16 %v1218
    %v1327 = vunpack.c.l.b16 %v1219
    %v1328 = vunpack.c.l.b16 %v1220
    %v1329 = vunpack.c.l.b16 %v1221
    %v1330 = vunpack.c.l.b16 %v1222
    %v1331 = vunpack.c.l.b16 %v1223
    %v1332 = vunpack.c.l.b16 %v1224
    %v1333 = vunpack.c.l.b16 %v1225
    %v1334 = vunpack.c.l.b16 %v1226
    %v1335 = vunpack.c.l.b16 %v1227
    %v1336 = vunpack.c.l.b16 %v1228
    %v1337 = vunpack.c.l.b16 %v1229
    %v1338 = vunpack.c.l.b16 %v1230
    %v1339 = vpack.c.b16 %v1308, %v1307
    %v1340 = vpack.c.b16 %v1310, %v1309
    %v1341 = vpack.c.b16 %v1312, %v1311
    %v1342 = vpack.c.b16 %v1314, %v1313
    %v1343 = vpack.c.b16 %v1316, %v1315
    %v1344 = vpack.c.b16 %v1318, %v1317
    %v1345 = vpack.c.b16 %v1320, %v1319
    %v1346 = vpack.c.b16 %v1322, %v1321
    %v1347 = vpack.c.b16 %v1324, %v1323
    %v1348 = vpack.c.b16 %v1326, %v1325
    %v1349 = vpack.c.b16 %v1328, %v1327
    %v1350 = vpack.c.b16 %v1330, %v1329
    %v1351 = vpack.c.b16 %v1332, %v1331
    %v1352 = vpack.c.b16 %v1334, %v1333
    %v1353 = vpack.c.b16 %v1336, %v1335
    %v1354 = vpack.c.b16 %v1338, %v1337
    %1371 = vmatprep.subr.bf16.mxu0 0
    %1372 = vmatpush1.bf16.msra.mxu0 %v1346
    %1373 = vmatprep.subr.bf16.mxu0 0
    %1374 = vmatpush1.bf16.msra.mxu0 %v1345
    %1375 = vmatprep.subr.bf16.mxu0 0
    %1376 = vmatpush1.bf16.msra.mxu0 %v1344
    %1377 = vmatprep.subr.bf16.mxu0 0
    %1378 = vmatpush1.bf16.msra.mxu0 %v1343
    %1379 = vmatprep.subr.bf16.mxu0 0
    %1380 = vmatpush1.bf16.msra.mxu0 %v1342
    %1381 = vmatprep.subr.bf16.mxu0 0
    %1382 = vmatpush1.bf16.msra.mxu0 %v1341
    %1383 = vmatprep.subr.bf16.mxu0 0
    %1384 = vmatpush1.bf16.msra.mxu0 %v1340
    %1385 = vmatprep.subr.bf16.mxu0 0
    %1386 = vmatpush1.bf16.msra.mxu0 %v1339
    %1387 = vmatprep.subr.bf16.mxu0 0
    %1388 = vmatpush2.bf16.msra.mxu0 %v1354
    %1389 = vmatprep.subr.bf16.mxu0 0
    %1390 = vmatpush2.bf16.msra.mxu0 %v1353
    %1391 = vmatprep.subr.bf16.mxu0 0
    %1392 = vmatpush2.bf16.msra.mxu0 %v1352
    %1393 = vmatprep.subr.bf16.mxu0 0
    %1394 = vmatpush2.bf16.msra.mxu0 %v1351
    %1395 = vmatprep.subr.bf16.mxu0 0
    %1396 = vmatpush2.bf16.msra.mxu0 %v1350
    %1397 = vmatprep.subr.bf16.mxu0 0
    %1398 = vmatpush2.bf16.msra.mxu0 %v1349
    %1399 = vmatprep.subr.bf16.mxu0 0
    %1400 = vmatpush2.bf16.msra.mxu0 %v1348
    %1401 = vmatprep.subr.bf16.mxu0 0
    %1402 = vmatpush2.bf16.msra.mxu0 %v1347
    %1403 = vmatprep.mubr.bf16.mxu0 %v1248
    %1404 = vmatmul.mubr.bf16.gmra.mxu0 %v1245
    %v1405 = vpop.f32.mrf.mxu0
    %v1406 = vadd.f32 0.0, %v1405
    %v1407 = vpop.f32.mrf.mxu0
    %v1408 = vpop.f32.mrf.mxu0
    %v1409 = vadd.f32 0.0, %v1408
    %v1410 = vpop.f32.mrf.mxu0
    %1411 = vmatprep.mubr.bf16.mxu0 %v1252
    %1412 = vmatmul.mubr.bf16.gmra.mxu0 %v1250
    %v1413 = vpop.f32.mrf.mxu0
    %v1414 = vadd.f32 0.0, %v1413
    %v1415 = vpop.f32.mrf.mxu0
    %v1416 = vpop.f32.mrf.mxu0
    %v1417 = vadd.f32 0.0, %v1416
    %v1418 = vpop.f32.mrf.mxu0
    %1419 = vmatprep.mubr.bf16.mxu0 %v1256
    %1420 = vmatmul.mubr.bf16.gmra.mxu0 %v1254
    %v1421 = vpop.f32.mrf.mxu0
    %v1422 = vadd.f32 0.0, %v1421
    %v1423 = vpop.f32.mrf.mxu0
    %v1424 = vpop.f32.mrf.mxu0
    %v1425 = vadd.f32 0.0, %v1424
    %v1426 = vpop.f32.mrf.mxu0
    %1427 = vmatprep.mubr.bf16.mxu0 %v1260
    %1428 = vmatmul.mubr.bf16.gmra.mxu0 %v1258
    %v1429 = vpop.f32.mrf.mxu0
    %v1430 = vadd.f32 0.0, %v1429
    %v1431 = vpop.f32.mrf.mxu0
    %v1432 = vpop.f32.mrf.mxu0
    %v1433 = vadd.f32 0.0, %v1432
    %v1434 = vpop.f32.mrf.mxu0
    %1435 = vmatprep.mubr.bf16.mxu0 %v1264
    %1436 = vmatmul.mubr.bf16.gmra.mxu0 %v1262
    %v1437 = vpop.f32.mrf.mxu0
    %v1438 = vadd.f32 0.0, %v1437
    %v1439 = vpop.f32.mrf.mxu0
    %v1440 = vpop.f32.mrf.mxu0
    %v1441 = vadd.f32 0.0, %v1440
    %v1442 = vpop.f32.mrf.mxu0
    %1443 = vdwg.mxu0
    %v1444 = vadd.f32 %v1155, %v1406
    %v1445 = vadd.f32 %v1156, %v1409
    %v1446 = vadd.f32 %v1157, %v1414
    %v1447 = vadd.f32 %v1158, %v1417
    %v1448 = vadd.f32 %v1159, %v1422
    %v1449 = vadd.f32 %v1160, %v1425
    %v1450 = vadd.f32 %v1161, %v1430
    %v1451 = vadd.f32 %v1162, %v1433
    %v1452 = vadd.f32 %v1163, %v1438
    %v1453 = vadd.f32 %v1164, %v1441
    %v1454 = vld [vmem:[%s10 + $0x10] sm:$0xf8]
    %v1455 = vld [vmem:[%s10 + $0x18] sm:$0xf8]
    %v1456 = vld [vmem:[%s10 + $0xb0] sm:$0x7]
    %v1457 = vld [vmem:[%s10 + $0xb8] sm:$0x7]
    %v1458 = vpack.c.bf16 %v1167, %v1454
    %v1459 = vpack.c.bf16 %v1168, %v1455
    %v1460 = vpack.c.bf16 %v1456, %v1456
    %v1461 = vpack.c.bf16 %v1457, %v1457
    %v1462 = vld [vmem:[%s11 + $0x200] sm:$0xf]
    %v1463 = vld [vmem:[%s11 + $0x204] sm:$0xf]
    %v1464 = vld [vmem:[%s11 + $0x208] sm:$0xf]
    %v1465 = vld [vmem:[%s11 + $0x20c] sm:$0xf]
    %v1466 = vld [vmem:[%s11 + $0x210] sm:$0xf]
    %v1467 = vld [vmem:[%s11 + $0x214] sm:$0xf]
    %v1468 = vld [vmem:[%s11 + $0x218] sm:$0xf]
    %v1469 = vld [vmem:[%s11 + $0x21c] sm:$0xf]
    %v1470 = vld [vmem:[%s11 + $0x220] sm:$0xf]
    %v1471 = vld [vmem:[%s11 + $0x224] sm:$0xf]
    %v1472 = vld [vmem:[%s11 + $0x228] sm:$0xf]
    %v1473 = vld [vmem:[%s11 + $0x22c] sm:$0xf]
    %v1474 = vld [vmem:[%s11 + $0x230] sm:$0xf]
    %v1475 = vld [vmem:[%s11 + $0x234] sm:$0xf]
    %v1476 = vld [vmem:[%s11 + $0x238] sm:$0xf]
    %v1477 = vld [vmem:[%s11 + $0x23c] sm:$0xf]
    %v1478 = vld [vmem:[%s11 + $0x240] sm:$0xf]
    %v1479 = vld [vmem:[%s11 + $0x244] sm:$0xf]
    %v1480 = vld [vmem:[%s11 + $0x248] sm:$0xf]
    %v1481 = vld [vmem:[%s11 + $0x24c] sm:$0xf]
    %v1482 = vld [vmem:[%s11 + $0x250] sm:$0xf]
    %v1483 = vld [vmem:[%s11 + $0x254] sm:$0xf]
    %v1484 = vld [vmem:[%s11 + $0x258] sm:$0xf]
    %v1485 = vld [vmem:[%s11 + $0x25c] sm:$0xf]
    %v1486 = vld [vmem:[%s11 + $0x260] sm:$0xf]
    %v1487 = vld [vmem:[%s11 + $0x264] sm:$0xf]
    %v1488 = vld [vmem:[%s11 + $0x268] sm:$0xf]
    %v1489 = vld [vmem:[%s11 + $0x26c] sm:$0xf]
    %v1490 = vld [vmem:[%s11 + $0x270] sm:$0xf]
    %v1491 = vld [vmem:[%s11 + $0x274] sm:$0xf]
    %v1492 = vld [vmem:[%s11 + $0x278] sm:$0xf]
    %v1493 = vld [vmem:[%s11 + $0x27c] sm:$0xf]
    %vm1494 = vsmask.f32 6400
    %v1496 = vshrl.u32 %v1458, 16
    %v1498 = vrot.slane %v1496, 1
    %v1499 = vshll.u32 %v1458, 16
    %v1501 = vrot.slane %v1499, 2
    %v1502 = vor.u32 %v1498, %v1501
    %v1504 = vshrl.u32 %v1189, 16
    %v1506 = vrot.slane %v1504, 1
    %v1507 = vshll.u32 %v1189, 16
    %v1509 = vrot.slane %v1507, 2
    %v1510 = vor.u32 %v1506, %v1509
    %v1511 = vsel %vm1494, %v1502, %v1510
    %v1513 = vshrl.u32 %v1459, 16
    %v1515 = vrot.slane %v1513, 1
    %v1516 = vshll.u32 %v1459, 16
    %v1518 = vrot.slane %v1516, 2
    %v1519 = vor.u32 %v1515, %v1518
    %v1521 = vshrl.u32 %v1190, 16
    %v1523 = vrot.slane %v1521, 1
    %v1524 = vshll.u32 %v1190, 16
    %v1526 = vrot.slane %v1524, 2
    %v1527 = vor.u32 %v1523, %v1526
    %v1528 = vsel %vm1494, %v1519, %v1527
    %v1530 = vshrl.u32 %v1191, 16
    %v1532 = vrot.slane %v1530, 1
    %v1533 = vshll.u32 %v1191, 16
    %v1535 = vrot.slane %v1533, 2
    %v1536 = vor.u32 %v1532, %v1535
    %v1537 = vsel %vm1494, %v1510, %v1536
    %v1539 = vshrl.u32 %v1192, 16
    %v1541 = vrot.slane %v1539, 1
    %v1542 = vshll.u32 %v1192, 16
    %v1544 = vrot.slane %v1542, 2
    %v1545 = vor.u32 %v1541, %v1544
    %v1546 = vsel %vm1494, %v1527, %v1545
    %v1548 = vshrl.u32 %v1193, 16
    %v1550 = vrot.slane %v1548, 1
    %v1551 = vshll.u32 %v1193, 16
    %v1553 = vrot.slane %v1551, 2
    %v1554 = vor.u32 %v1550, %v1553
    %v1555 = vsel %vm1494, %v1536, %v1554
    %v1557 = vshrl.u32 %v1194, 16
    %v1559 = vrot.slane %v1557, 1
    %v1560 = vshll.u32 %v1194, 16
    %v1562 = vrot.slane %v1560, 2
    %v1563 = vor.u32 %v1559, %v1562
    %v1564 = vsel %vm1494, %v1545, %v1563
    %v1566 = vshrl.u32 %v1195, 16
    %v1568 = vrot.slane %v1566, 1
    %v1569 = vshll.u32 %v1195, 16
    %v1571 = vrot.slane %v1569, 2
    %v1572 = vor.u32 %v1568, %v1571
    %v1573 = vsel %vm1494, %v1554, %v1572
    %v1575 = vshrl.u32 %v1196, 16
    %v1577 = vrot.slane %v1575, 1
    %v1578 = vshll.u32 %v1196, 16
    %v1580 = vrot.slane %v1578, 2
    %v1581 = vor.u32 %v1577, %v1580
    %v1582 = vsel %vm1494, %v1563, %v1581
    %v1584 = vshrl.u32 %v1460, 16
    %v1586 = vrot.slane %v1584, 1
    %v1587 = vshll.u32 %v1460, 16
    %v1589 = vrot.slane %v1587, 2
    %v1590 = vor.u32 %v1586, %v1589
    %v1591 = vsel %vm1494, %v1572, %v1590
    %v1593 = vshrl.u32 %v1461, 16
    %v1595 = vrot.slane %v1593, 1
    %v1596 = vshll.u32 %v1461, 16
    %v1598 = vrot.slane %v1596, 2
    %v1599 = vor.u32 %v1595, %v1598
    %v1600 = vsel %vm1494, %v1581, %v1599
    %v1643 = vunpack.c.l.b16 %v1462
    %v1644 = vunpack.c.l.b16 %v1463
    %v1645 = vunpack.c.l.b16 %v1464
    %v1646 = vunpack.c.l.b16 %v1465
    %v1647 = vunpack.c.l.b16 %v1466
    %v1648 = vunpack.c.l.b16 %v1467
    %v1649 = vunpack.c.l.b16 %v1468
    %v1650 = vunpack.c.l.b16 %v1469
    %v1651 = vunpack.c.l.b16 %v1470
    %v1652 = vunpack.c.l.b16 %v1471
    %v1653 = vunpack.c.l.b16 %v1472
    %v1654 = vunpack.c.l.b16 %v1473
    %v1655 = vunpack.c.l.b16 %v1474
    %v1656 = vunpack.c.l.b16 %v1475
    %v1657 = vunpack.c.l.b16 %v1476
    %v1658 = vunpack.c.l.b16 %v1477
    %v1659 = vunpack.c.l.b16 %v1478
    %v1660 = vunpack.c.l.b16 %v1479
    %v1661 = vunpack.c.l.b16 %v1480
    %v1662 = vunpack.c.l.b16 %v1481
    %v1663 = vunpack.c.l.b16 %v1482
    %v1664 = vunpack.c.l.b16 %v1483
    %v1665 = vunpack.c.l.b16 %v1484
    %v1666 = vunpack.c.l.b16 %v1485
    %v1667 = vunpack.c.l.b16 %v1486
    %v1668 = vunpack.c.l.b16 %v1487
    %v1669 = vunpack.c.l.b16 %v1488
    %v1670 = vunpack.c.l.b16 %v1489
    %v1671 = vunpack.c.l.b16 %v1490
    %v1672 = vunpack.c.l.b16 %v1491
    %v1673 = vunpack.c.l.b16 %v1492
    %v1674 = vunpack.c.l.b16 %v1493
    %v1675 = vpack.c.b16 %v1644, %v1643
    %v1676 = vpack.c.b16 %v1646, %v1645
    %v1677 = vpack.c.b16 %v1648, %v1647
    %v1678 = vpack.c.b16 %v1650, %v1649
    %v1679 = vpack.c.b16 %v1652, %v1651
    %v1680 = vpack.c.b16 %v1654, %v1653
    %v1681 = vpack.c.b16 %v1656, %v1655
    %v1682 = vpack.c.b16 %v1658, %v1657
    %v1683 = vpack.c.b16 %v1660, %v1659
    %v1684 = vpack.c.b16 %v1662, %v1661
    %v1685 = vpack.c.b16 %v1664, %v1663
    %v1686 = vpack.c.b16 %v1666, %v1665
    %v1687 = vpack.c.b16 %v1668, %v1667
    %v1688 = vpack.c.b16 %v1670, %v1669
    %v1689 = vpack.c.b16 %v1672, %v1671
    %v1690 = vpack.c.b16 %v1674, %v1673
    %1707 = vmatprep.subr.bf16.mxu0 0
    %1708 = vmatpush1.bf16.msra.mxu0 %v1682
    %1709 = vmatprep.subr.bf16.mxu0 0
    %1710 = vmatpush1.bf16.msra.mxu0 %v1681
    %1711 = vmatprep.subr.bf16.mxu0 0
    %1712 = vmatpush1.bf16.msra.mxu0 %v1680
    %1713 = vmatprep.subr.bf16.mxu0 0
    %1714 = vmatpush1.bf16.msra.mxu0 %v1679
    %1715 = vmatprep.subr.bf16.mxu0 0
    %1716 = vmatpush1.bf16.msra.mxu0 %v1678
    %1717 = vmatprep.subr.bf16.mxu0 0
    %1718 = vmatpush1.bf16.msra.mxu0 %v1677
    %1719 = vmatprep.subr.bf16.mxu0 0
    %1720 = vmatpush1.bf16.msra.mxu0 %v1676
    %1721 = vmatprep.subr.bf16.mxu0 0
    %1722 = vmatpush1.bf16.msra.mxu0 %v1675
    %1723 = vmatprep.subr.bf16.mxu0 0
    %1724 = vmatpush2.bf16.msra.mxu0 %v1690
    %1725 = vmatprep.subr.bf16.mxu0 0
    %1726 = vmatpush2.bf16.msra.mxu0 %v1689
    %1727 = vmatprep.subr.bf16.mxu0 0
    %1728 = vmatpush2.bf16.msra.mxu0 %v1688
    %1729 = vmatprep.subr.bf16.mxu0 0
    %1730 = vmatpush2.bf16.msra.mxu0 %v1687
    %1731 = vmatprep.subr.bf16.mxu0 0
    %1732 = vmatpush2.bf16.msra.mxu0 %v1686
    %1733 = vmatprep.subr.bf16.mxu0 0
    %1734 = vmatpush2.bf16.msra.mxu0 %v1685
    %1735 = vmatprep.subr.bf16.mxu0 0
    %1736 = vmatpush2.bf16.msra.mxu0 %v1684
    %1737 = vmatprep.subr.bf16.mxu0 0
    %1738 = vmatpush2.bf16.msra.mxu0 %v1683
    %1739 = vmatprep.mubr.bf16.mxu0 %v1528
    %1740 = vmatmul.mubr.bf16.gmra.mxu0 %v1511
    %v1741 = vpop.f32.mrf.mxu0
    %v1742 = vadd.f32 0.0, %v1741
    %v1743 = vpop.f32.mrf.mxu0
    %v1744 = vpop.f32.mrf.mxu0
    %v1745 = vadd.f32 0.0, %v1744
    %v1746 = vpop.f32.mrf.mxu0
    %1747 = vmatprep.mubr.bf16.mxu0 %v1546
    %1748 = vmatmul.mubr.bf16.gmra.mxu0 %v1537
    %v1749 = vpop.f32.mrf.mxu0
    %v1750 = vadd.f32 0.0, %v1749
    %v1751 = vpop.f32.mrf.mxu0
    %v1752 = vpop.f32.mrf.mxu0
    %v1753 = vadd.f32 0.0, %v1752
    %v1754 = vpop.f32.mrf.mxu0
    %1755 = vmatprep.mubr.bf16.mxu0 %v1564
    %1756 = vmatmul.mubr.bf16.gmra.mxu0 %v1555
    %v1757 = vpop.f32.mrf.mxu0
    %v1758 = vadd.f32 0.0, %v1757
    %v1759 = vpop.f32.mrf.mxu0
    %v1760 = vpop.f32.mrf.mxu0
    %v1761 = vadd.f32 0.0, %v1760
    %v1762 = vpop.f32.mrf.mxu0
    %1763 = vmatprep.mubr.bf16.mxu0 %v1582
    %1764 = vmatmul.mubr.bf16.gmra.mxu0 %v1573
    %v1765 = vpop.f32.mrf.mxu0
    %v1766 = vadd.f32 0.0, %v1765
    %v1767 = vpop.f32.mrf.mxu0
    %v1768 = vpop.f32.mrf.mxu0
    %v1769 = vadd.f32 0.0, %v1768
    %v1770 = vpop.f32.mrf.mxu0
    %1771 = vmatprep.mubr.bf16.mxu0 %v1600
    %1772 = vmatmul.mubr.bf16.gmra.mxu0 %v1591
    %v1773 = vpop.f32.mrf.mxu0
    %v1774 = vadd.f32 0.0, %v1773
    %v1775 = vpop.f32.mrf.mxu0
    %v1776 = vpop.f32.mrf.mxu0
    %v1777 = vadd.f32 0.0, %v1776
    %v1778 = vpop.f32.mrf.mxu0
    %1779 = vdwg.mxu0
    %v1780 = vadd.f32 %v1444, %v1742
    %v1781 = vadd.f32 %v1445, %v1745
    %v1782 = vadd.f32 %v1446, %v1750
    %v1783 = vadd.f32 %v1447, %v1753
    %v1784 = vadd.f32 %v1448, %v1758
    %v1785 = vadd.f32 %v1449, %v1761
    %v1786 = vadd.f32 %v1450, %v1766
    %v1787 = vadd.f32 %v1451, %v1769
    %v1788 = vadd.f32 %v1452, %v1774
    %v1789 = vadd.f32 %v1453, %v1777
    %v1790 = vld [vmem:[%s10 + $0x10] sm:$0xf0]
    %v1791 = vld [vmem:[%s10 + $0x18] sm:$0xf0]
    %v1792 = vld [vmem:[%s10 + $0xb0] sm:$0xf]
    %v1793 = vld [vmem:[%s10 + $0xb8] sm:$0xf]
    %v1794 = vpack.c.bf16 %v1167, %v1790
    %v1795 = vpack.c.bf16 %v1168, %v1791
    %v1796 = vpack.c.bf16 %v1792, %v1792
    %v1797 = vpack.c.bf16 %v1793, %v1793
    %v1798 = vld [vmem:[%s11 + $0x280] sm:$0xf]
    %v1799 = vld [vmem:[%s11 + $0x284] sm:$0xf]
    %v1800 = vld [vmem:[%s11 + $0x288] sm:$0xf]
    %v1801 = vld [vmem:[%s11 + $0x28c] sm:$0xf]
    %v1802 = vld [vmem:[%s11 + $0x290] sm:$0xf]
    %v1803 = vld [vmem:[%s11 + $0x294] sm:$0xf]
    %v1804 = vld [vmem:[%s11 + $0x298] sm:$0xf]
    %v1805 = vld [vmem:[%s11 + $0x29c] sm:$0xf]
    %v1806 = vld [vmem:[%s11 + $0x2a0] sm:$0xf]
    %v1807 = vld [vmem:[%s11 + $0x2a4] sm:$0xf]
    %v1808 = vld [vmem:[%s11 + $0x2a8] sm:$0xf]
    %v1809 = vld [vmem:[%s11 + $0x2ac] sm:$0xf]
    %v1810 = vld [vmem:[%s11 + $0x2b0] sm:$0xf]
    %v1811 = vld [vmem:[%s11 + $0x2b4] sm:$0xf]
    %v1812 = vld [vmem:[%s11 + $0x2b8] sm:$0xf]
    %v1813 = vld [vmem:[%s11 + $0x2bc] sm:$0xf]
    %v1814 = vld [vmem:[%s11 + $0x2c0] sm:$0xf]
    %v1815 = vld [vmem:[%s11 + $0x2c4] sm:$0xf]
    %v1816 = vld [vmem:[%s11 + $0x2c8] sm:$0xf]
    %v1817 = vld [vmem:[%s11 + $0x2cc] sm:$0xf]
    %v1818 = vld [vmem:[%s11 + $0x2d0] sm:$0xf]
    %v1819 = vld [vmem:[%s11 + $0x2d4] sm:$0xf]
    %v1820 = vld [vmem:[%s11 + $0x2d8] sm:$0xf]
    %v1821 = vld [vmem:[%s11 + $0x2dc] sm:$0xf]
    %v1822 = vld [vmem:[%s11 + $0x2e0] sm:$0xf]
    %v1823 = vld [vmem:[%s11 + $0x2e4] sm:$0xf]
    %v1824 = vld [vmem:[%s11 + $0x2e8] sm:$0xf]
    %v1825 = vld [vmem:[%s11 + $0x2ec] sm:$0xf]
    %v1826 = vld [vmem:[%s11 + $0x2f0] sm:$0xf]
    %v1827 = vld [vmem:[%s11 + $0x2f4] sm:$0xf]
    %v1828 = vld [vmem:[%s11 + $0x2f8] sm:$0xf]
    %v1829 = vld [vmem:[%s11 + $0x2fc] sm:$0xf]
    %vm1834 = vcmask 1045504
    %v1835 = vrot.slane %v1794, 2
    %v1836 = vrot.slane %v1189, 2
    %v1837 = vsel %vm1834, %v1835, %v1836
    %v1838 = vrot.slane %v1795, 2
    %v1839 = vrot.slane %v1190, 2
    %v1840 = vsel %vm1834, %v1838, %v1839
    %v1841 = vrot.slane %v1191, 2
    %v1842 = vsel %vm1834, %v1836, %v1841
    %v1843 = vrot.slane %v1192, 2
    %v1844 = vsel %vm1834, %v1839, %v1843
    %v1845 = vrot.slane %v1193, 2
    %v1846 = vsel %vm1834, %v1841, %v1845
    %v1847 = vrot.slane %v1194, 2
    %v1848 = vsel %vm1834, %v1843, %v1847
    %v1849 = vrot.slane %v1195, 2
    %v1850 = vsel %vm1834, %v1845, %v1849
    %v1851 = vrot.slane %v1196, 2
    %v1852 = vsel %vm1834, %v1847, %v1851
    %v1853 = vrot.slane %v1796, 2
    %v1854 = vsel %vm1834, %v1849, %v1853
    %v1855 = vrot.slane %v1797, 2
    %v1856 = vsel %vm1834, %v1851, %v1855
    %v1899 = vunpack.c.l.b16 %v1798
    %v1900 = vunpack.c.l.b16 %v1799
    %v1901 = vunpack.c.l.b16 %v1800
    %v1902 = vunpack.c.l.b16 %v1801
    %v1903 = vunpack.c.l.b16 %v1802
    %v1904 = vunpack.c.l.b16 %v1803
    %v1905 = vunpack.c.l.b16 %v1804
    %v1906 = vunpack.c.l.b16 %v1805
    %v1907 = vunpack.c.l.b16 %v1806
    %v1908 = vunpack.c.l.b16 %v1807
    %v1909 = vunpack.c.l.b16 %v1808
    %v1910 = vunpack.c.l.b16 %v1809
    %v1911 = vunpack.c.l.b16 %v1810
    %v1912 = vunpack.c.l.b16 %v1811
    %v1913 = vunpack.c.l.b16 %v1812
    %v1914 = vunpack.c.l.b16 %v1813
    %v1915 = vunpack.c.l.b16 %v1814
    %v1916 = vunpack.c.l.b16 %v1815
    %v1917 = vunpack.c.l.b16 %v1816
    %v1918 = vunpack.c.l.b16 %v1817
    %v1919 = vunpack.c.l.b16 %v1818
    %v1920 = vunpack.c.l.b16 %v1819
    %v1921 = vunpack.c.l.b16 %v1820
    %v1922 = vunpack.c.l.b16 %v1821
    %v1923 = vunpack.c.l.b16 %v1822
    %v1924 = vunpack.c.l.b16 %v1823
    %v1925 = vunpack.c.l.b16 %v1824
    %v1926 = vunpack.c.l.b16 %v1825
    %v1927 = vunpack.c.l.b16 %v1826
    %v1928 = vunpack.c.l.b16 %v1827
    %v1929 = vunpack.c.l.b16 %v1828
    %v1930 = vunpack.c.l.b16 %v1829
    %v1931 = vpack.c.b16 %v1900, %v1899
    %v1932 = vpack.c.b16 %v1902, %v1901
    %v1933 = vpack.c.b16 %v1904, %v1903
    %v1934 = vpack.c.b16 %v1906, %v1905
    %v1935 = vpack.c.b16 %v1908, %v1907
    %v1936 = vpack.c.b16 %v1910, %v1909
    %v1937 = vpack.c.b16 %v1912, %v1911
    %v1938 = vpack.c.b16 %v1914, %v1913
    %v1939 = vpack.c.b16 %v1916, %v1915
    %v1940 = vpack.c.b16 %v1918, %v1917
    %v1941 = vpack.c.b16 %v1920, %v1919
    %v1942 = vpack.c.b16 %v1922, %v1921
    %v1943 = vpack.c.b16 %v1924, %v1923
    %v1944 = vpack.c.b16 %v1926, %v1925
    %v1945 = vpack.c.b16 %v1928, %v1927
    %v1946 = vpack.c.b16 %v1930, %v1929
    %1963 = vmatprep.subr.bf16.mxu0 0
    %1964 = vmatpush1.bf16.msra.mxu0 %v1938
    %1965 = vmatprep.subr.bf16.mxu0 0
    %1966 = vmatpush1.bf16.msra.mxu0 %v1937
    %1967 = vmatprep.subr.bf16.mxu0 0
    %1968 = vmatpush1.bf16.msra.mxu0 %v1936
    %1969 = vmatprep.subr.bf16.mxu0 0
    %1970 = vmatpush1.bf16.msra.mxu0 %v1935
    %1971 = vmatprep.subr.bf16.mxu0 0
    %1972 = vmatpush1.bf16.msra.mxu0 %v1934
    %1973 = vmatprep.subr.bf16.mxu0 0
    %1974 = vmatpush1.bf16.msra.mxu0 %v1933
    %1975 = vmatprep.subr.bf16.mxu0 0
    %1976 = vmatpush1.bf16.msra.mxu0 %v1932
    %1977 = vmatprep.subr.bf16.mxu0 0
    %1978 = vmatpush1.bf16.msra.mxu0 %v1931
    %1979 = vmatprep.subr.bf16.mxu0 0
    %1980 = vmatpush2.bf16.msra.mxu0 %v1946
    %1981 = vmatprep.subr.bf16.mxu0 0
    %1982 = vmatpush2.bf16.msra.mxu0 %v1945
    %1983 = vmatprep.subr.bf16.mxu0 0
    %1984 = vmatpush2.bf16.msra.mxu0 %v1944
    %1985 = vmatprep.subr.bf16.mxu0 0
    %1986 = vmatpush2.bf16.msra.mxu0 %v1943
    %1987 = vmatprep.subr.bf16.mxu0 0
    %1988 = vmatpush2.bf16.msra.mxu0 %v1942
    %1989 = vmatprep.subr.bf16.mxu0 0
    %1990 = vmatpush2.bf16.msra.mxu0 %v1941
    %1991 = vmatprep.subr.bf16.mxu0 0
    %1992 = vmatpush2.bf16.msra.mxu0 %v1940
    %1993 = vmatprep.subr.bf16.mxu0 0
    %1994 = vmatpush2.bf16.msra.mxu0 %v1939
    %1995 = vmatprep.mubr.bf16.mxu0 %v1840
    %1996 = vmatmul.mubr.bf16.gmra.mxu0 %v1837
    %v1997 = vpop.f32.mrf.mxu0
    %v1998 = vadd.f32 0.0, %v1997
    %v1999 = vpop.f32.mrf.mxu0
    %v2000 = vpop.f32.mrf.mxu0
    %v2001 = vadd.f32 0.0, %v2000
    %v2002 = vpop.f32.mrf.mxu0
    %2003 = vmatprep.mubr.bf16.mxu0 %v1844
    %2004 = vmatmul.mubr.bf16.gmra.mxu0 %v1842
    %v2005 = vpop.f32.mrf.mxu0
    %v2006 = vadd.f32 0.0, %v2005
    %v2007 = vpop.f32.mrf.mxu0
    %v2008 = vpop.f32.mrf.mxu0
    %v2009 = vadd.f32 0.0, %v2008
    %v2010 = vpop.f32.mrf.mxu0
    %2011 = vmatprep.mubr.bf16.mxu0 %v1848
    %2012 = vmatmul.mubr.bf16.gmra.mxu0 %v1846
    %v2013 = vpop.f32.mrf.mxu0
    %v2014 = vadd.f32 0.0, %v2013
    %v2015 = vpop.f32.mrf.mxu0
    %v2016 = vpop.f32.mrf.mxu0
    %v2017 = vadd.f32 0.0, %v2016
    %v2018 = vpop.f32.mrf.mxu0
    %2019 = vmatprep.mubr.bf16.mxu0 %v1852
    %2020 = vmatmul.mubr.bf16.gmra.mxu0 %v1850
    %v2021 = vpop.f32.mrf.mxu0
    %v2022 = vadd.f32 0.0, %v2021
    %v2023 = vpop.f32.mrf.mxu0
    %v2024 = vpop.f32.mrf.mxu0
    %v2025 = vadd.f32 0.0, %v2024
    %v2026 = vpop.f32.mrf.mxu0
    %2027 = vmatprep.mubr.bf16.mxu0 %v1856
    %2028 = vmatmul.mubr.bf16.gmra.mxu0 %v1854
    %v2029 = vpop.f32.mrf.mxu0
    %v2030 = vadd.f32 0.0, %v2029
    %v2031 = vpop.f32.mrf.mxu0
    %v2032 = vpop.f32.mrf.mxu0
    %v2033 = vadd.f32 0.0, %v2032
    %v2034 = vpop.f32.mrf.mxu0
    %2035 = vdwg.mxu0
    %v2036 = vadd.f32 %v1780, %v1998
    %v2037 = vadd.f32 %v1781, %v2001
    %v2038 = vadd.f32 %v1782, %v2006
    %v2039 = vadd.f32 %v1783, %v2009
    %v2040 = vadd.f32 %v1784, %v2014
    %v2041 = vadd.f32 %v1785, %v2017
    %v2042 = vadd.f32 %v1786, %v2022
    %v2043 = vadd.f32 %v1787, %v2025
    %v2044 = vadd.f32 %v1788, %v2030
    %v2045 = vadd.f32 %v1789, %v2033
    %v2046 = vld [vmem:[%s10 + $0x20] sm:$0xf0]
    %v2047 = vld [vmem:[%s10 + $0x28] sm:$0xf0]
    %v2048 = vld [vmem:[%s10 + $0x30] sm:$0xff]
    %v2049 = vld [vmem:[%s10 + $0x38] sm:$0xff]
    %v2050 = vld [vmem:[%s10 + $0x40] sm:$0xff]
    %v2051 = vld [vmem:[%s10 + $0x48] sm:$0xff]
    %v2052 = vld [vmem:[%s10 + $0x50] sm:$0xff]
    %v2053 = vld [vmem:[%s10 + $0x58] sm:$0xff]
    %v2054 = vld [vmem:[%s10 + $0x60] sm:$0xff]
    %v2055 = vld [vmem:[%s10 + $0x68] sm:$0xff]
    %v2056 = vld [vmem:[%s10 + $0x70] sm:$0xff]
    %v2057 = vld [vmem:[%s10 + $0x78] sm:$0xff]
    %v2058 = vld [vmem:[%s10 + $0x80] sm:$0xff]
    %v2059 = vld [vmem:[%s10 + $0x88] sm:$0xff]
    %v2060 = vld [vmem:[%s10 + $0x90] sm:$0xff]
    %v2061 = vld [vmem:[%s10 + $0x98] sm:$0xff]
    %v2062 = vld [vmem:[%s10 + $0xa0] sm:$0xff]
    %v2063 = vld [vmem:[%s10 + $0xa8] sm:$0xff]
    %v2064 = vld [vmem:[%s10 + $0xb0] sm:$0xff]
    %v2065 = vld [vmem:[%s10 + $0xb8] sm:$0xff]
    %v2066 = vld [vmem:[%s10 + $0xc0] sm:$0xf]
    %v2067 = vld [vmem:[%s10 + $0xc8] sm:$0xf]
    %v2068 = vpack.c.bf16 %v2048, %v2046
    %v2069 = vpack.c.bf16 %v2049, %v2047
    %v2070 = vpack.c.bf16 %v2052, %v2050
    %v2071 = vpack.c.bf16 %v2053, %v2051
    %v2072 = vpack.c.bf16 %v2056, %v2054
    %v2073 = vpack.c.bf16 %v2057, %v2055
    %v2074 = vpack.c.bf16 %v2060, %v2058
    %v2075 = vpack.c.bf16 %v2061, %v2059
    %v2076 = vpack.c.bf16 %v2064, %v2062
    %v2077 = vpack.c.bf16 %v2065, %v2063
    %v2078 = vpack.c.bf16 %v2066, %v2066
    %v2079 = vpack.c.bf16 %v2067, %v2067
    %v2080 = vld [vmem:[%s11 + $0x300] sm:$0xf]
    %v2081 = vld [vmem:[%s11 + $0x304] sm:$0xf]
    %v2082 = vld [vmem:[%s11 + $0x308] sm:$0xf]
    %v2083 = vld [vmem:[%s11 + $0x30c] sm:$0xf]
    %v2084 = vld [vmem:[%s11 + $0x310] sm:$0xf]
    %v2085 = vld [vmem:[%s11 + $0x314] sm:$0xf]
    %v2086 = vld [vmem:[%s11 + $0x318] sm:$0xf]
    %v2087 = vld [vmem:[%s11 + $0x31c] sm:$0xf]
    %v2088 = vld [vmem:[%s11 + $0x320] sm:$0xf]
    %v2089 = vld [vmem:[%s11 + $0x324] sm:$0xf]
    %v2090 = vld [vmem:[%s11 + $0x328] sm:$0xf]
    %v2091 = vld [vmem:[%s11 + $0x32c] sm:$0xf]
    %v2092 = vld [vmem:[%s11 + $0x330] sm:$0xf]
    %v2093 = vld [vmem:[%s11 + $0x334] sm:$0xf]
    %v2094 = vld [vmem:[%s11 + $0x338] sm:$0xf]
    %v2095 = vld [vmem:[%s11 + $0x33c] sm:$0xf]
    %v2096 = vld [vmem:[%s11 + $0x340] sm:$0xf]
    %v2097 = vld [vmem:[%s11 + $0x344] sm:$0xf]
    %v2098 = vld [vmem:[%s11 + $0x348] sm:$0xf]
    %v2099 = vld [vmem:[%s11 + $0x34c] sm:$0xf]
    %v2100 = vld [vmem:[%s11 + $0x350] sm:$0xf]
    %v2101 = vld [vmem:[%s11 + $0x354] sm:$0xf]
    %v2102 = vld [vmem:[%s11 + $0x358] sm:$0xf]
    %v2103 = vld [vmem:[%s11 + $0x35c] sm:$0xf]
    %v2104 = vld [vmem:[%s11 + $0x360] sm:$0xf]
    %v2105 = vld [vmem:[%s11 + $0x364] sm:$0xf]
    %v2106 = vld [vmem:[%s11 + $0x368] sm:$0xf]
    %v2107 = vld [vmem:[%s11 + $0x36c] sm:$0xf]
    %v2108 = vld [vmem:[%s11 + $0x370] sm:$0xf]
    %v2109 = vld [vmem:[%s11 + $0x374] sm:$0xf]
    %v2110 = vld [vmem:[%s11 + $0x378] sm:$0xf]
    %v2111 = vld [vmem:[%s11 + $0x37c] sm:$0xf]
    %v2124 = vrot.slane %v2068, 2
    %v2125 = vrot.slane %v2070, 2
    %v2126 = vsel %vm1834, %v2124, %v2125
    %v2127 = vrot.slane %v2069, 2
    %v2128 = vrot.slane %v2071, 2
    %v2129 = vsel %vm1834, %v2127, %v2128
    %v2130 = vrot.slane %v2072, 2
    %v2131 = vsel %vm1834, %v2125, %v2130
    %v2132 = vrot.slane %v2073, 2
    %v2133 = vsel %vm1834, %v2128, %v2132
    %v2134 = vrot.slane %v2074, 2
    %v2135 = vsel %vm1834, %v2130, %v2134
    %v2136 = vrot.slane %v2075, 2
    %v2137 = vsel %vm1834, %v2132, %v2136
    %v2138 = vrot.slane %v2076, 2
    %v2139 = vsel %vm1834, %v2134, %v2138
    %v2140 = vrot.slane %v2077, 2
    %v2141 = vsel %vm1834, %v2136, %v2140
    %v2142 = vrot.slane %v2078, 2
    %v2143 = vsel %vm1834, %v2138, %v2142
    %v2144 = vrot.slane %v2079, 2
    %v2145 = vsel %vm1834, %v2140, %v2144
    %v2188 = vunpack.c.l.b16 %v2080
    %v2189 = vunpack.c.l.b16 %v2081
    %v2190 = vunpack.c.l.b16 %v2082
    %v2191 = vunpack.c.l.b16 %v2083
    %v2192 = vunpack.c.l.b16 %v2084
    %v2193 = vunpack.c.l.b16 %v2085
    %v2194 = vunpack.c.l.b16 %v2086
    %v2195 = vunpack.c.l.b16 %v2087
    %v2196 = vunpack.c.l.b16 %v2088
    %v2197 = vunpack.c.l.b16 %v2089
    %v2198 = vunpack.c.l.b16 %v2090
    %v2199 = vunpack.c.l.b16 %v2091
    %v2200 = vunpack.c.l.b16 %v2092
    %v2201 = vunpack.c.l.b16 %v2093
    %v2202 = vunpack.c.l.b16 %v2094
    %v2203 = vunpack.c.l.b16 %v2095
    %v2204 = vunpack.c.l.b16 %v2096
    %v2205 = vunpack.c.l.b16 %v2097
    %v2206 = vunpack.c.l.b16 %v2098
    %v2207 = vunpack.c.l.b16 %v2099
    %v2208 = vunpack.c.l.b16 %v2100
    %v2209 = vunpack.c.l.b16 %v2101
    %v2210 = vunpack.c.l.b16 %v2102
    %v2211 = vunpack.c.l.b16 %v2103
    %v2212 = vunpack.c.l.b16 %v2104
    %v2213 = vunpack.c.l.b16 %v2105
    %v2214 = vunpack.c.l.b16 %v2106
    %v2215 = vunpack.c.l.b16 %v2107
    %v2216 = vunpack.c.l.b16 %v2108
    %v2217 = vunpack.c.l.b16 %v2109
    %v2218 = vunpack.c.l.b16 %v2110
    %v2219 = vunpack.c.l.b16 %v2111
    %v2220 = vpack.c.b16 %v2189, %v2188
    %v2221 = vpack.c.b16 %v2191, %v2190
    %v2222 = vpack.c.b16 %v2193, %v2192
    %v2223 = vpack.c.b16 %v2195, %v2194
    %v2224 = vpack.c.b16 %v2197, %v2196
    %v2225 = vpack.c.b16 %v2199, %v2198
    %v2226 = vpack.c.b16 %v2201, %v2200
    %v2227 = vpack.c.b16 %v2203, %v2202
    %v2228 = vpack.c.b16 %v2205, %v2204
    %v2229 = vpack.c.b16 %v2207, %v2206
    %v2230 = vpack.c.b16 %v2209, %v2208
    %v2231 = vpack.c.b16 %v2211, %v2210
    %v2232 = vpack.c.b16 %v2213, %v2212
    %v2233 = vpack.c.b16 %v2215, %v2214
    %v2234 = vpack.c.b16 %v2217, %v2216
    %v2235 = vpack.c.b16 %v2219, %v2218
    %2252 = vmatprep.subr.bf16.mxu0 0
    %2253 = vmatpush1.bf16.msra.mxu0 %v2227
    %2254 = vmatprep.subr.bf16.mxu0 0
    %2255 = vmatpush1.bf16.msra.mxu0 %v2226
    %2256 = vmatprep.subr.bf16.mxu0 0
    %2257 = vmatpush1.bf16.msra.mxu0 %v2225
    %2258 = vmatprep.subr.bf16.mxu0 0
    %2259 = vmatpush1.bf16.msra.mxu0 %v2224
    %2260 = vmatprep.subr.bf16.mxu0 0
    %2261 = vmatpush1.bf16.msra.mxu0 %v2223
    %2262 = vmatprep.subr.bf16.mxu0 0
    %2263 = vmatpush1.bf16.msra.mxu0 %v2222
    %2264 = vmatprep.subr.bf16.mxu0 0
    %2265 = vmatpush1.bf16.msra.mxu0 %v2221
    %2266 = vmatprep.subr.bf16.mxu0 0
    %2267 = vmatpush1.bf16.msra.mxu0 %v2220
    %2268 = vmatprep.subr.bf16.mxu0 0
    %2269 = vmatpush2.bf16.msra.mxu0 %v2235
    %2270 = vmatprep.subr.bf16.mxu0 0
    %2271 = vmatpush2.bf16.msra.mxu0 %v2234
    %2272 = vmatprep.subr.bf16.mxu0 0
    %2273 = vmatpush2.bf16.msra.mxu0 %v2233
    %2274 = vmatprep.subr.bf16.mxu0 0
    %2275 = vmatpush2.bf16.msra.mxu0 %v2232
    %2276 = vmatprep.subr.bf16.mxu0 0
    %2277 = vmatpush2.bf16.msra.mxu0 %v2231
    %2278 = vmatprep.subr.bf16.mxu0 0
    %2279 = vmatpush2.bf16.msra.mxu0 %v2230
    %2280 = vmatprep.subr.bf16.mxu0 0
    %2281 = vmatpush2.bf16.msra.mxu0 %v2229
    %2282 = vmatprep.subr.bf16.mxu0 0
    %2283 = vmatpush2.bf16.msra.mxu0 %v2228
    %2284 = vmatprep.mubr.bf16.mxu0 %v2129
    %2285 = vmatmul.mubr.bf16.gmra.mxu0 %v2126
    %v2286 = vpop.f32.mrf.mxu0
    %v2287 = vadd.f32 0.0, %v2286
    %v2288 = vpop.f32.mrf.mxu0
    %v2289 = vpop.f32.mrf.mxu0
    %v2290 = vadd.f32 0.0, %v2289
    %v2291 = vpop.f32.mrf.mxu0
    %2292 = vmatprep.mubr.bf16.mxu0 %v2133
    %2293 = vmatmul.mubr.bf16.gmra.mxu0 %v2131
    %v2294 = vpop.f32.mrf.mxu0
    %v2295 = vadd.f32 0.0, %v2294
    %v2296 = vpop.f32.mrf.mxu0
    %v2297 = vpop.f32.mrf.mxu0
    %v2298 = vadd.f32 0.0, %v2297
    %v2299 = vpop.f32.mrf.mxu0
    %2300 = vmatprep.mubr.bf16.mxu0 %v2137
    %2301 = vmatmul.mubr.bf16.gmra.mxu0 %v2135
    %v2302 = vpop.f32.mrf.mxu0
    %v2303 = vadd.f32 0.0, %v2302
    %v2304 = vpop.f32.mrf.mxu0
    %v2305 = vpop.f32.mrf.mxu0
    %v2306 = vadd.f32 0.0, %v2305
    %v2307 = vpop.f32.mrf.mxu0
    %2308 = vmatprep.mubr.bf16.mxu0 %v2141
    %2309 = vmatmul.mubr.bf16.gmra.mxu0 %v2139
    %v2310 = vpop.f32.mrf.mxu0
    %v2311 = vadd.f32 0.0, %v2310
    %v2312 = vpop.f32.mrf.mxu0
    %v2313 = vpop.f32.mrf.mxu0
    %v2314 = vadd.f32 0.0, %v2313
    %v2315 = vpop.f32.mrf.mxu0
    %2316 = vmatprep.mubr.bf16.mxu0 %v2145
    %2317 = vmatmul.mubr.bf16.gmra.mxu0 %v2143
    %v2318 = vpop.f32.mrf.mxu0
    %v2319 = vadd.f32 0.0, %v2318
    %v2320 = vpop.f32.mrf.mxu0
    %v2321 = vpop.f32.mrf.mxu0
    %v2322 = vadd.f32 0.0, %v2321
    %v2323 = vpop.f32.mrf.mxu0
    %2324 = vdwg.mxu0
    %v2325 = vadd.f32 %v2036, %v2287
    %v2326 = vadd.f32 %v2037, %v2290
    %v2327 = vadd.f32 %v2038, %v2295
    %v2328 = vadd.f32 %v2039, %v2298
    %v2329 = vadd.f32 %v2040, %v2303
    %v2330 = vadd.f32 %v2041, %v2306
    %v2331 = vadd.f32 %v2042, %v2311
    %v2332 = vadd.f32 %v2043, %v2314
    %v2333 = vadd.f32 %v2044, %v2319
    %v2334 = vadd.f32 %v2045, %v2322
    %v2335 = vld [vmem:[%s10 + $0x20] sm:$0xe0]
    %v2336 = vld [vmem:[%s10 + $0x28] sm:$0xe0]
    %v2337 = vld [vmem:[%s10 + $0xc0] sm:$0x1f]
    %v2338 = vld [vmem:[%s10 + $0xc8] sm:$0x1f]
    %v2339 = vpack.c.bf16 %v2048, %v2335
    %v2340 = vpack.c.bf16 %v2049, %v2336
    %v2341 = vpack.c.bf16 %v2337, %v2337
    %v2342 = vpack.c.bf16 %v2338, %v2338
    %v2343 = vld [vmem:[%s11 + $0x380] sm:$0xf]
    %v2344 = vld [vmem:[%s11 + $0x384] sm:$0xf]
    %v2345 = vld [vmem:[%s11 + $0x388] sm:$0xf]
    %v2346 = vld [vmem:[%s11 + $0x38c] sm:$0xf]
    %v2347 = vld [vmem:[%s11 + $0x390] sm:$0xf]
    %v2348 = vld [vmem:[%s11 + $0x394] sm:$0xf]
    %v2349 = vld [vmem:[%s11 + $0x398] sm:$0xf]
    %v2350 = vld [vmem:[%s11 + $0x39c] sm:$0xf]
    %v2351 = vld [vmem:[%s11 + $0x3a0] sm:$0xf]
    %v2352 = vld [vmem:[%s11 + $0x3a4] sm:$0xf]
    %v2353 = vld [vmem:[%s11 + $0x3a8] sm:$0xf]
    %v2354 = vld [vmem:[%s11 + $0x3ac] sm:$0xf]
    %v2355 = vld [vmem:[%s11 + $0x3b0] sm:$0xf]
    %v2356 = vld [vmem:[%s11 + $0x3b4] sm:$0xf]
    %v2357 = vld [vmem:[%s11 + $0x3b8] sm:$0xf]
    %v2358 = vld [vmem:[%s11 + $0x3bc] sm:$0xf]
    %v2359 = vld [vmem:[%s11 + $0x3c0] sm:$0xf]
    %v2360 = vld [vmem:[%s11 + $0x3c4] sm:$0xf]
    %v2361 = vld [vmem:[%s11 + $0x3c8] sm:$0xf]
    %v2362 = vld [vmem:[%s11 + $0x3cc] sm:$0xf]
    %v2363 = vld [vmem:[%s11 + $0x3d0] sm:$0xf]
    %v2364 = vld [vmem:[%s11 + $0x3d4] sm:$0xf]
    %v2365 = vld [vmem:[%s11 + $0x3d8] sm:$0xf]
    %v2366 = vld [vmem:[%s11 + $0x3dc] sm:$0xf]
    %v2367 = vld [vmem:[%s11 + $0x3e0] sm:$0xf]
    %v2368 = vld [vmem:[%s11 + $0x3e4] sm:$0xf]
    %v2369 = vld [vmem:[%s11 + $0x3e8] sm:$0xf]
    %v2370 = vld [vmem:[%s11 + $0x3ec] sm:$0xf]
    %v2371 = vld [vmem:[%s11 + $0x3f0] sm:$0xf]
    %v2372 = vld [vmem:[%s11 + $0x3f4] sm:$0xf]
    %v2373 = vld [vmem:[%s11 + $0x3f8] sm:$0xf]
    %v2374 = vld [vmem:[%s11 + $0x3fc] sm:$0xf]
    %vm2375 = vsmask.f32 5376
    %v2377 = vshrl.u32 %v2339, 16
    %v2379 = vrot.slane %v2377, 2
    %v2380 = vshll.u32 %v2339, 16
    %v2382 = vrot.slane %v2380, 3
    %v2383 = vor.u32 %v2379, %v2382
    %v2385 = vshrl.u32 %v2070, 16
    %v2387 = vrot.slane %v2385, 2
    %v2388 = vshll.u32 %v2070, 16
    %v2390 = vrot.slane %v2388, 3
    %v2391 = vor.u32 %v2387, %v2390
    %v2392 = vsel %vm2375, %v2383, %v2391
    %v2394 = vshrl.u32 %v2340, 16
    %v2396 = vrot.slane %v2394, 2
    %v2397 = vshll.u32 %v2340, 16
    %v2399 = vrot.slane %v2397, 3
    %v2400 = vor.u32 %v2396, %v2399
    %v2402 = vshrl.u32 %v2071, 16
    %v2404 = vrot.slane %v2402, 2
    %v2405 = vshll.u32 %v2071, 16
    %v2407 = vrot.slane %v2405, 3
    %v2408 = vor.u32 %v2404, %v2407
    %v2409 = vsel %vm2375, %v2400, %v2408
    %v2411 = vshrl.u32 %v2072, 16
    %v2413 = vrot.slane %v2411, 2
    %v2414 = vshll.u32 %v2072, 16
    %v2416 = vrot.slane %v2414, 3
    %v2417 = vor.u32 %v2413, %v2416
    %v2418 = vsel %vm2375, %v2391, %v2417
    %v2420 = vshrl.u32 %v2073, 16
    %v2422 = vrot.slane %v2420, 2
    %v2423 = vshll.u32 %v2073, 16
    %v2425 = vrot.slane %v2423, 3
    %v2426 = vor.u32 %v2422, %v2425
    %v2427 = vsel %vm2375, %v2408, %v2426
    %v2429 = vshrl.u32 %v2074, 16
    %v2431 = vrot.slane %v2429, 2
    %v2432 = vshll.u32 %v2074, 16
    %v2434 = vrot.slane %v2432, 3
    %v2435 = vor.u32 %v2431, %v2434
    %v2436 = vsel %vm2375, %v2417, %v2435
    %v2438 = vshrl.u32 %v2075, 16
    %v2440 = vrot.slane %v2438, 2
    %v2441 = vshll.u32 %v2075, 16
    %v2443 = vrot.slane %v2441, 3
    %v2444 = vor.u32 %v2440, %v2443
    %v2445 = vsel %vm2375, %v2426, %v2444
    %v2447 = vshrl.u32 %v2076, 16
    %v2449 = vrot.slane %v2447, 2
    %v2450 = vshll.u32 %v2076, 16
    %v2452 = vrot.slane %v2450, 3
    %v2453 = vor.u32 %v2449, %v2452
    %v2454 = vsel %vm2375, %v2435, %v2453
    %v2456 = vshrl.u32 %v2077, 16
    %v2458 = vrot.slane %v2456, 2
    %v2459 = vshll.u32 %v2077, 16
    %v2461 = vrot.slane %v2459, 3
    %v2462 = vor.u32 %v2458, %v2461
    %v2463 = vsel %vm2375, %v2444, %v2462
    %v2465 = vshrl.u32 %v2341, 16
    %v2467 = vrot.slane %v2465, 2
    %v2468 = vshll.u32 %v2341, 16
    %v2470 = vrot.slane %v2468, 3
    %v2471 = vor.u32 %v2467, %v2470
    %v2472 = vsel %vm2375, %v2453, %v2471
    %v2474 = vshrl.u32 %v2342, 16
    %v2476 = vrot.slane %v2474, 2
    %v2477 = vshll.u32 %v2342, 16
    %v2479 = vrot.slane %v2477, 3
    %v2480 = vor.u32 %v2476, %v2479
    %v2481 = vsel %vm2375, %v2462, %v2480
    %v2524 = vunpack.c.l.b16 %v2343
    %v2525 = vunpack.c.l.b16 %v2344
    %v2526 = vunpack.c.l.b16 %v2345
    %v2527 = vunpack.c.l.b16 %v2346
    %v2528 = vunpack.c.l.b16 %v2347
    %v2529 = vunpack.c.l.b16 %v2348
    %v2530 = vunpack.c.l.b16 %v2349
    %v2531 = vunpack.c.l.b16 %v2350
    %v2532 = vunpack.c.l.b16 %v2351
    %v2533 = vunpack.c.l.b16 %v2352
    %v2534 = vunpack.c.l.b16 %v2353
    %v2535 = vunpack.c.l.b16 %v2354
    %v2536 = vunpack.c.l.b16 %v2355
    %v2537 = vunpack.c.l.b16 %v2356
    %v2538 = vunpack.c.l.b16 %v2357
    %v2539 = vunpack.c.l.b16 %v2358
    %v2540 = vunpack.c.l.b16 %v2359
    %v2541 = vunpack.c.l.b16 %v2360
    %v2542 = vunpack.c.l.b16 %v2361
    %v2543 = vunpack.c.l.b16 %v2362
    %v2544 = vunpack.c.l.b16 %v2363
    %v2545 = vunpack.c.l.b16 %v2364
    %v2546 = vunpack.c.l.b16 %v2365
    %v2547 = vunpack.c.l.b16 %v2366
    %v2548 = vunpack.c.l.b16 %v2367
    %v2549 = vunpack.c.l.b16 %v2368
    %v2550 = vunpack.c.l.b16 %v2369
    %v2551 = vunpack.c.l.b16 %v2370
    %v2552 = vunpack.c.l.b16 %v2371
    %v2553 = vunpack.c.l.b16 %v2372
    %v2554 = vunpack.c.l.b16 %v2373
    %v2555 = vunpack.c.l.b16 %v2374
    %v2556 = vpack.c.b16 %v2525, %v2524
    %v2557 = vpack.c.b16 %v2527, %v2526
    %v2558 = vpack.c.b16 %v2529, %v2528
    %v2559 = vpack.c.b16 %v2531, %v2530
    %v2560 = vpack.c.b16 %v2533, %v2532
    %v2561 = vpack.c.b16 %v2535, %v2534
    %v2562 = vpack.c.b16 %v2537, %v2536
    %v2563 = vpack.c.b16 %v2539, %v2538
    %v2564 = vpack.c.b16 %v2541, %v2540
    %v2565 = vpack.c.b16 %v2543, %v2542
    %v2566 = vpack.c.b16 %v2545, %v2544
    %v2567 = vpack.c.b16 %v2547, %v2546
    %v2568 = vpack.c.b16 %v2549, %v2548
    %v2569 = vpack.c.b16 %v2551, %v2550
    %v2570 = vpack.c.b16 %v2553, %v2552
    %v2571 = vpack.c.b16 %v2555, %v2554
    %2588 = vmatprep.subr.bf16.mxu0 0
    %2589 = vmatpush1.bf16.msra.mxu0 %v2563
    %2590 = vmatprep.subr.bf16.mxu0 0
    %2591 = vmatpush1.bf16.msra.mxu0 %v2562
    %2592 = vmatprep.subr.bf16.mxu0 0
    %2593 = vmatpush1.bf16.msra.mxu0 %v2561
    %2594 = vmatprep.subr.bf16.mxu0 0
    %2595 = vmatpush1.bf16.msra.mxu0 %v2560
    %2596 = vmatprep.subr.bf16.mxu0 0
    %2597 = vmatpush1.bf16.msra.mxu0 %v2559
    %2598 = vmatprep.subr.bf16.mxu0 0
    %2599 = vmatpush1.bf16.msra.mxu0 %v2558
    %2600 = vmatprep.subr.bf16.mxu0 0
    %2601 = vmatpush1.bf16.msra.mxu0 %v2557
    %2602 = vmatprep.subr.bf16.mxu0 0
    %2603 = vmatpush1.bf16.msra.mxu0 %v2556
    %2604 = vmatprep.subr.bf16.mxu0 0
    %2605 = vmatpush2.bf16.msra.mxu0 %v2571
    %2606 = vmatprep.subr.bf16.mxu0 0
    %2607 = vmatpush2.bf16.msra.mxu0 %v2570
    %2608 = vmatprep.subr.bf16.mxu0 0
    %2609 = vmatpush2.bf16.msra.mxu0 %v2569
    %2610 = vmatprep.subr.bf16.mxu0 0
    %2611 = vmatpush2.bf16.msra.mxu0 %v2568
    %2612 = vmatprep.subr.bf16.mxu0 0
    %2613 = vmatpush2.bf16.msra.mxu0 %v2567
    %2614 = vmatprep.subr.bf16.mxu0 0
    %2615 = vmatpush2.bf16.msra.mxu0 %v2566
    %2616 = vmatprep.subr.bf16.mxu0 0
    %2617 = vmatpush2.bf16.msra.mxu0 %v2565
    %2618 = vmatprep.subr.bf16.mxu0 0
    %2619 = vmatpush2.bf16.msra.mxu0 %v2564
    %2620 = vmatprep.mubr.bf16.mxu0 %v2409
    %2621 = vmatmul.mubr.bf16.gmra.mxu0 %v2392
    %v2622 = vpop.f32.mrf.mxu0
    %v2623 = vadd.f32 0.0, %v2622
    %v2624 = vpop.f32.mrf.mxu0
    %v2625 = vpop.f32.mrf.mxu0
    %v2626 = vadd.f32 0.0, %v2625
    %v2627 = vpop.f32.mrf.mxu0
    %2628 = vmatprep.mubr.bf16.mxu0 %v2427
    %2629 = vmatmul.mubr.bf16.gmra.mxu0 %v2418
    %v2630 = vpop.f32.mrf.mxu0
    %v2631 = vadd.f32 0.0, %v2630
    %v2632 = vpop.f32.mrf.mxu0
    %v2633 = vpop.f32.mrf.mxu0
    %v2634 = vadd.f32 0.0, %v2633
    %v2635 = vpop.f32.mrf.mxu0
    %2636 = vmatprep.mubr.bf16.mxu0 %v2445
    %2637 = vmatmul.mubr.bf16.gmra.mxu0 %v2436
    %v2638 = vpop.f32.mrf.mxu0
    %v2639 = vadd.f32 0.0, %v2638
    %v2640 = vpop.f32.mrf.mxu0
    %v2641 = vpop.f32.mrf.mxu0
    %v2642 = vadd.f32 0.0, %v2641
    %v2643 = vpop.f32.mrf.mxu0
    %2644 = vmatprep.mubr.bf16.mxu0 %v2463
    %2645 = vmatmul.mubr.bf16.gmra.mxu0 %v2454
    %v2646 = vpop.f32.mrf.mxu0
    %v2647 = vadd.f32 0.0, %v2646
    %v2648 = vpop.f32.mrf.mxu0
    %v2649 = vpop.f32.mrf.mxu0
    %v2650 = vadd.f32 0.0, %v2649
    %v2651 = vpop.f32.mrf.mxu0
    %2652 = vmatprep.mubr.bf16.mxu0 %v2481
    %2653 = vmatmul.mubr.bf16.gmra.mxu0 %v2472
    %v2654 = vpop.f32.mrf.mxu0
    %v2655 = vadd.f32 0.0, %v2654
    %v2656 = vpop.f32.mrf.mxu0
    %v2657 = vpop.f32.mrf.mxu0
    %v2658 = vadd.f32 0.0, %v2657
    %v2659 = vpop.f32.mrf.mxu0
    %2660 = vdwg.mxu0
    %v2661 = vadd.f32 %v2325, %v2623
    %v2662 = vadd.f32 %v2326, %v2626
    %v2663 = vadd.f32 %v2327, %v2631
    %v2664 = vadd.f32 %v2328, %v2634
    %v2665 = vadd.f32 %v2329, %v2639
    %v2666 = vadd.f32 %v2330, %v2642
    %v2667 = vadd.f32 %v2331, %v2647
    %v2668 = vadd.f32 %v2332, %v2650
    %v2669 = vadd.f32 %v2333, %v2655
    %v2670 = vadd.f32 %v2334, %v2658
    %v2671 = vld [vmem:[%s10 + $0x20] sm:$0xc0]
    %v2672 = vld [vmem:[%s10 + $0x28] sm:$0xc0]
    %v2673 = vld [vmem:[%s10 + $0xc0] sm:$0x3f]
    %v2674 = vld [vmem:[%s10 + $0xc8] sm:$0x3f]
    %v2675 = vpack.c.bf16 %v2048, %v2671
    %v2676 = vpack.c.bf16 %v2049, %v2672
    %v2677 = vpack.c.bf16 %v2673, %v2673
    %v2678 = vpack.c.bf16 %v2674, %v2674
    %v2679 = vld [vmem:[%s11 + $0x400] sm:$0xf]
    %v2680 = vld [vmem:[%s11 + $0x404] sm:$0xf]
    %v2681 = vld [vmem:[%s11 + $0x408] sm:$0xf]
    %v2682 = vld [vmem:[%s11 + $0x40c] sm:$0xf]
    %v2683 = vld [vmem:[%s11 + $0x410] sm:$0xf]
    %v2684 = vld [vmem:[%s11 + $0x414] sm:$0xf]
    %v2685 = vld [vmem:[%s11 + $0x418] sm:$0xf]
    %v2686 = vld [vmem:[%s11 + $0x41c] sm:$0xf]
    %v2687 = vld [vmem:[%s11 + $0x420] sm:$0xf]
    %v2688 = vld [vmem:[%s11 + $0x424] sm:$0xf]
    %v2689 = vld [vmem:[%s11 + $0x428] sm:$0xf]
    %v2690 = vld [vmem:[%s11 + $0x42c] sm:$0xf]
    %v2691 = vld [vmem:[%s11 + $0x430] sm:$0xf]
    %v2692 = vld [vmem:[%s11 + $0x434] sm:$0xf]
    %v2693 = vld [vmem:[%s11 + $0x438] sm:$0xf]
    %v2694 = vld [vmem:[%s11 + $0x43c] sm:$0xf]
    %v2695 = vld [vmem:[%s11 + $0x440] sm:$0xf]
    %v2696 = vld [vmem:[%s11 + $0x444] sm:$0xf]
    %v2697 = vld [vmem:[%s11 + $0x448] sm:$0xf]
    %v2698 = vld [vmem:[%s11 + $0x44c] sm:$0xf]
    %v2699 = vld [vmem:[%s11 + $0x450] sm:$0xf]
    %v2700 = vld [vmem:[%s11 + $0x454] sm:$0xf]
    %v2701 = vld [vmem:[%s11 + $0x458] sm:$0xf]
    %v2702 = vld [vmem:[%s11 + $0x45c] sm:$0xf]
    %v2703 = vld [vmem:[%s11 + $0x460] sm:$0xf]
    %v2704 = vld [vmem:[%s11 + $0x464] sm:$0xf]
    %v2705 = vld [vmem:[%s11 + $0x468] sm:$0xf]
    %v2706 = vld [vmem:[%s11 + $0x46c] sm:$0xf]
    %v2707 = vld [vmem:[%s11 + $0x470] sm:$0xf]
    %v2708 = vld [vmem:[%s11 + $0x474] sm:$0xf]
    %v2709 = vld [vmem:[%s11 + $0x478] sm:$0xf]
    %v2710 = vld [vmem:[%s11 + $0x47c] sm:$0xf]
    %vm2715 = vcmask 1044480
    %v2716 = vrot.slane %v2675, 3
    %v2717 = vrot.slane %v2070, 3
    %v2718 = vsel %vm2715, %v2716, %v2717
    %v2719 = vrot.slane %v2676, 3
    %v2720 = vrot.slane %v2071, 3
    %v2721 = vsel %vm2715, %v2719, %v2720
    %v2722 = vrot.slane %v2072, 3
    %v2723 = vsel %vm2715, %v2717, %v2722
    %v2724 = vrot.slane %v2073, 3
    %v2725 = vsel %vm2715, %v2720, %v2724
    %v2726 = vrot.slane %v2074, 3
    %v2727 = vsel %vm2715, %v2722, %v2726
    %v2728 = vrot.slane %v2075, 3
    %v2729 = vsel %vm2715, %v2724, %v2728
    %v2730 = vrot.slane %v2076, 3
    %v2731 = vsel %vm2715, %v2726, %v2730
    %v2732 = vrot.slane %v2077, 3
    %v2733 = vsel %vm2715, %v2728, %v2732
    %v2734 = vrot.slane %v2677, 3
    %v2735 = vsel %vm2715, %v2730, %v2734
    %v2736 = vrot.slane %v2678, 3
    %v2737 = vsel %vm2715, %v2732, %v2736
    %v2780 = vunpack.c.l.b16 %v2679
    %v2781 = vunpack.c.l.b16 %v2680
    %v2782 = vunpack.c.l.b16 %v2681
    %v2783 = vunpack.c.l.b16 %v2682
    %v2784 = vunpack.c.l.b16 %v2683
    %v2785 = vunpack.c.l.b16 %v2684
    %v2786 = vunpack.c.l.b16 %v2685
    %v2787 = vunpack.c.l.b16 %v2686
    %v2788 = vunpack.c.l.b16 %v2687
    %v2789 = vunpack.c.l.b16 %v2688
    %v2790 = vunpack.c.l.b16 %v2689
    %v2791 = vunpack.c.l.b16 %v2690
    %v2792 = vunpack.c.l.b16 %v2691
    %v2793 = vunpack.c.l.b16 %v2692
    %v2794 = vunpack.c.l.b16 %v2693
    %v2795 = vunpack.c.l.b16 %v2694
    %v2796 = vunpack.c.l.b16 %v2695
    %v2797 = vunpack.c.l.b16 %v2696
    %v2798 = vunpack.c.l.b16 %v2697
    %v2799 = vunpack.c.l.b16 %v2698
    %v2800 = vunpack.c.l.b16 %v2699
    %v2801 = vunpack.c.l.b16 %v2700
    %v2802 = vunpack.c.l.b16 %v2701
    %v2803 = vunpack.c.l.b16 %v2702
    %v2804 = vunpack.c.l.b16 %v2703
    %v2805 = vunpack.c.l.b16 %v2704
    %v2806 = vunpack.c.l.b16 %v2705
    %v2807 = vunpack.c.l.b16 %v2706
    %v2808 = vunpack.c.l.b16 %v2707
    %v2809 = vunpack.c.l.b16 %v2708
    %v2810 = vunpack.c.l.b16 %v2709
    %v2811 = vunpack.c.l.b16 %v2710
    %v2812 = vpack.c.b16 %v2781, %v2780
    %v2813 = vpack.c.b16 %v2783, %v2782
    %v2814 = vpack.c.b16 %v2785, %v2784
    %v2815 = vpack.c.b16 %v2787, %v2786
    %v2816 = vpack.c.b16 %v2789, %v2788
    %v2817 = vpack.c.b16 %v2791, %v2790
    %v2818 = vpack.c.b16 %v2793, %v2792
    %v2819 = vpack.c.b16 %v2795, %v2794
    %v2820 = vpack.c.b16 %v2797, %v2796
    %v2821 = vpack.c.b16 %v2799, %v2798
    %v2822 = vpack.c.b16 %v2801, %v2800
    %v2823 = vpack.c.b16 %v2803, %v2802
    %v2824 = vpack.c.b16 %v2805, %v2804
    %v2825 = vpack.c.b16 %v2807, %v2806
    %v2826 = vpack.c.b16 %v2809, %v2808
    %v2827 = vpack.c.b16 %v2811, %v2810
    %2844 = vmatprep.subr.bf16.mxu0 0
    %2845 = vmatpush1.bf16.msra.mxu0 %v2819
    %2846 = vmatprep.subr.bf16.mxu0 0
    %2847 = vmatpush1.bf16.msra.mxu0 %v2818
    %2848 = vmatprep.subr.bf16.mxu0 0
    %2849 = vmatpush1.bf16.msra.mxu0 %v2817
    %2850 = vmatprep.subr.bf16.mxu0 0
    %2851 = vmatpush1.bf16.msra.mxu0 %v2816
    %2852 = vmatprep.subr.bf16.mxu0 0
    %2853 = vmatpush1.bf16.msra.mxu0 %v2815
    %2854 = vmatprep.subr.bf16.mxu0 0
    %2855 = vmatpush1.bf16.msra.mxu0 %v2814
    %2856 = vmatprep.subr.bf16.mxu0 0
    %2857 = vmatpush1.bf16.msra.mxu0 %v2813
    %2858 = vmatprep.subr.bf16.mxu0 0
    %2859 = vmatpush1.bf16.msra.mxu0 %v2812
    %2860 = vmatprep.subr.bf16.mxu0 0
    %2861 = vmatpush2.bf16.msra.mxu0 %v2827
    %2862 = vmatprep.subr.bf16.mxu0 0
    %2863 = vmatpush2.bf16.msra.mxu0 %v2826
    %2864 = vmatprep.subr.bf16.mxu0 0
    %2865 = vmatpush2.bf16.msra.mxu0 %v2825
    %2866 = vmatprep.subr.bf16.mxu0 0
    %2867 = vmatpush2.bf16.msra.mxu0 %v2824
    %2868 = vmatprep.subr.bf16.mxu0 0
    %2869 = vmatpush2.bf16.msra.mxu0 %v2823
    %2870 = vmatprep.subr.bf16.mxu0 0
    %2871 = vmatpush2.bf16.msra.mxu0 %v2822
    %2872 = vmatprep.subr.bf16.mxu0 0
    %2873 = vmatpush2.bf16.msra.mxu0 %v2821
    %2874 = vmatprep.subr.bf16.mxu0 0
    %2875 = vmatpush2.bf16.msra.mxu0 %v2820
    %2876 = vmatprep.mubr.bf16.mxu0 %v2721
    %2877 = vmatmul.mubr.bf16.gmra.mxu0 %v2718
    %v2878 = vpop.f32.mrf.mxu0
    %v2879 = vadd.f32 0.0, %v2878
    %v2880 = vpop.f32.mrf.mxu0
    %v2881 = vpop.f32.mrf.mxu0
    %v2882 = vadd.f32 0.0, %v2881
    %v2883 = vpop.f32.mrf.mxu0
    %2884 = vmatprep.mubr.bf16.mxu0 %v2725
    %2885 = vmatmul.mubr.bf16.gmra.mxu0 %v2723
    %v2886 = vpop.f32.mrf.mxu0
    %v2887 = vadd.f32 0.0, %v2886
    %v2888 = vpop.f32.mrf.mxu0
    %v2889 = vpop.f32.mrf.mxu0
    %v2890 = vadd.f32 0.0, %v2889
    %v2891 = vpop.f32.mrf.mxu0
    %2892 = vmatprep.mubr.bf16.mxu0 %v2729
    %2893 = vmatmul.mubr.bf16.gmra.mxu0 %v2727
    %v2894 = vpop.f32.mrf.mxu0
    %v2895 = vadd.f32 0.0, %v2894
    %v2896 = vpop.f32.mrf.mxu0
    %v2897 = vpop.f32.mrf.mxu0
    %v2898 = vadd.f32 0.0, %v2897
    %v2899 = vpop.f32.mrf.mxu0
    %2900 = vmatprep.mubr.bf16.mxu0 %v2733
    %2901 = vmatmul.mubr.bf16.gmra.mxu0 %v2731
    %v2902 = vpop.f32.mrf.mxu0
    %v2903 = vadd.f32 0.0, %v2902
    %v2904 = vpop.f32.mrf.mxu0
    %v2905 = vpop.f32.mrf.mxu0
    %v2906 = vadd.f32 0.0, %v2905
    %v2907 = vpop.f32.mrf.mxu0
    %2908 = vmatprep.mubr.bf16.mxu0 %v2737
    %2909 = vmatmul.mubr.bf16.gmra.mxu0 %v2735
    %v2910 = vpop.f32.mrf.mxu0
    %v2911 = vadd.f32 0.0, %v2910
    %v2912 = vpop.f32.mrf.mxu0
    %v2913 = vpop.f32.mrf.mxu0
    %v2914 = vadd.f32 0.0, %v2913
    %v2915 = vpop.f32.mrf.mxu0
    %2916 = vdwg.mxu0
    %v2917 = vadd.f32 %v2661, %v2879
    %v2918 = vadd.f32 %v2662, %v2882
    %v2919 = vadd.f32 %v2663, %v2887
    %v2920 = vadd.f32 %v2664, %v2890
    %v2921 = vadd.f32 %v2665, %v2895
    %v2922 = vadd.f32 %v2666, %v2898
    %v2923 = vadd.f32 %v2667, %v2903
    %v2924 = vadd.f32 %v2668, %v2906
    %v2925 = vadd.f32 %v2669, %v2911
    %v2926 = vadd.f32 %v2670, %v2914
    %v2927 = vld [vmem:[%s12] sm:$0x1]
    %v2929 = vlaneseq
    %v2930 = vshrl.u32 %v2929, 7
    %v2931 = vsub.s32 0, %v2930
    %v2932 = vrot.slane %v2927, %v2931
    %v2934 = vadd.f32 %v2917, %v2932
    %v2935 = vadd.f32 %v2918, %v2932
    %v2936 = vadd.f32 %v2919, %v2932
    %v2937 = vadd.f32 %v2920, %v2932
    %v2938 = vadd.f32 %v2921, %v2932
    %v2939 = vadd.f32 %v2922, %v2932
    %v2940 = vadd.f32 %v2923, %v2932
    %v2941 = vadd.f32 %v2924, %v2932
    %v2942 = vadd.f32 %v2925, %v2932
    %v2943 = vadd.f32 %v2926, %v2932
    %v2944 = vlaneseq
    %v2945 = vshrl.u32 %v2944, 7
    %v2946 = vadd.s32 %v2945, 8
    %v2947 = vadd.s32 %v2945, 16
    %v2948 = vadd.s32 %v2945, 24
    %v2949 = vadd.s32 %v2945, 32
    %v2950 = vadd.s32 %v2945, 40
    %v2951 = vadd.s32 %v2945, 48
    %v2952 = vadd.s32 %v2945, 56
    %v2953 = vadd.s32 %v2945, 64
    %v2954 = vadd.s32 %v2945, 72
    %vm2955 = vcmp.lt.s32.totalorder %v2945, 0
    %v2956 = vsub.s32 0, %v2945
    %v2957 = vsel %vm2955, %v2956, %v2945
    %v2958 = vmul.u32.u64.compose %v2957, 3435973837
    %v2959 = vextract.low.u32 %v2958
    %v2960 = vextract.high.u32 %v2958
    %v2961 = vshrl.u32 %v2960, 3
    %v2962 = vmul.u32 %v2961, 10
    %v2963 = vsub.s32 %v2957, %v2962
    %v2964 = vsub.s32 0, %v2963
    %v2965 = vsel %vm2955, %v2964, %v2963
    %vm2966 = vcmp.lt.s32.totalorder %v2946, 0
    %v2967 = vsub.s32 0, %v2946
    %v2968 = vsel %vm2966, %v2967, %v2946
    %v2969 = vmul.u32.u64.compose %v2968, 3435973837
    %v2970 = vextract.low.u32 %v2969
    %v2971 = vextract.high.u32 %v2969
    %v2972 = vshrl.u32 %v2971, 3
    %v2973 = vmul.u32 %v2972, 10
    %v2974 = vsub.s32 %v2968, %v2973
    %v2975 = vsub.s32 0, %v2974
    %v2976 = vsel %vm2966, %v2975, %v2974
    %vm2977 = vcmp.lt.s32.totalorder %v2947, 0
    %v2978 = vsub.s32 0, %v2947
    %v2979 = vsel %vm2977, %v2978, %v2947
    %v2980 = vmul.u32.u64.compose %v2979, 3435973837
    %v2981 = vextract.low.u32 %v2980
    %v2982 = vextract.high.u32 %v2980
    %v2983 = vshrl.u32 %v2982, 3
    %v2984 = vmul.u32 %v2983, 10
    %v2985 = vsub.s32 %v2979, %v2984
    %v2986 = vsub.s32 0, %v2985
    %v2987 = vsel %vm2977, %v2986, %v2985
    %vm2988 = vcmp.lt.s32.totalorder %v2948, 0
    %v2989 = vsub.s32 0, %v2948
    %v2990 = vsel %vm2988, %v2989, %v2948
    %v2991 = vmul.u32.u64.compose %v2990, 3435973837
    %v2992 = vextract.low.u32 %v2991
    %v2993 = vextract.high.u32 %v2991
    %v2994 = vshrl.u32 %v2993, 3
    %v2995 = vmul.u32 %v2994, 10
    %v2996 = vsub.s32 %v2990, %v2995
    %v2997 = vsub.s32 0, %v2996
    %v2998 = vsel %vm2988, %v2997, %v2996
    %vm2999 = vcmp.lt.s32.totalorder %v2949, 0
    %v3000 = vsub.s32 0, %v2949
    %v3001 = vsel %vm2999, %v3000, %v2949
    %v3002 = vmul.u32.u64.compose %v3001, 3435973837
    %v3003 = vextract.low.u32 %v3002
    %v3004 = vextract.high.u32 %v3002
    %v3005 = vshrl.u32 %v3004, 3
    %v3006 = vmul.u32 %v3005, 10
    %v3007 = vsub.s32 %v3001, %v3006
    %v3008 = vsub.s32 0, %v3007
    %v3009 = vsel %vm2999, %v3008, %v3007
    %vm3010 = vcmp.lt.s32.totalorder %v2950, 0
    %v3011 = vsub.s32 0, %v2950
    %v3012 = vsel %vm3010, %v3011, %v2950
    %v3013 = vmul.u32.u64.compose %v3012, 3435973837
    %v3014 = vextract.low.u32 %v3013
    %v3015 = vextract.high.u32 %v3013
    %v3016 = vshrl.u32 %v3015, 3
    %v3017 = vmul.u32 %v3016, 10
    %v3018 = vsub.s32 %v3012, %v3017
    %v3019 = vsub.s32 0, %v3018
    %v3020 = vsel %vm3010, %v3019, %v3018
    %vm3021 = vcmp.lt.s32.totalorder %v2951, 0
    %v3022 = vsub.s32 0, %v2951
    %v3023 = vsel %vm3021, %v3022, %v2951
    %v3024 = vmul.u32.u64.compose %v3023, 3435973837
    %v3025 = vextract.low.u32 %v3024
    %v3026 = vextract.high.u32 %v3024
    %v3027 = vshrl.u32 %v3026, 3
    %v3028 = vmul.u32 %v3027, 10
    %v3029 = vsub.s32 %v3023, %v3028
    %v3030 = vsub.s32 0, %v3029
    %v3031 = vsel %vm3021, %v3030, %v3029
    %vm3032 = vcmp.lt.s32.totalorder %v2952, 0
    %v3033 = vsub.s32 0, %v2952
    %v3034 = vsel %vm3032, %v3033, %v2952
    %v3035 = vmul.u32.u64.compose %v3034, 3435973837
    %v3036 = vextract.low.u32 %v3035
    %v3037 = vextract.high.u32 %v3035
    %v3038 = vshrl.u32 %v3037, 3
    %v3039 = vmul.u32 %v3038, 10
    %v3040 = vsub.s32 %v3034, %v3039
    %v3041 = vsub.s32 0, %v3040
    %v3042 = vsel %vm3032, %v3041, %v3040
    %vm3043 = vcmp.lt.s32.totalorder %v2953, 0
    %v3044 = vsub.s32 0, %v2953
    %v3045 = vsel %vm3043, %v3044, %v2953
    %v3046 = vmul.u32.u64.compose %v3045, 3435973837
    %v3047 = vextract.low.u32 %v3046
    %v3048 = vextract.high.u32 %v3046
    %v3049 = vshrl.u32 %v3048, 3
    %v3050 = vmul.u32 %v3049, 10
    %v3051 = vsub.s32 %v3045, %v3050
    %v3052 = vsub.s32 0, %v3051
    %v3053 = vsel %vm3043, %v3052, %v3051
    %vm3054 = vcmp.lt.s32.totalorder %v2954, 0
    %v3055 = vsub.s32 0, %v2954
    %v3056 = vsel %vm3054, %v3055, %v2954
    %v3057 = vmul.u32.u64.compose %v3056, 3435973837
    %v3058 = vextract.low.u32 %v3057
    %v3059 = vextract.high.u32 %v3057
    %v3060 = vshrl.u32 %v3059, 3
    %v3061 = vmul.u32 %v3060, 10
    %v3062 = vsub.s32 %v3056, %v3061
    %v3063 = vsub.s32 0, %v3062
    %v3064 = vsel %vm3054, %v3063, %v3062
    %vm3065 = vcmp.ne.s32.totalorder %v2965, 0
    %vm3066 = vcmp.ne.s32.totalorder %v2976, 0
    %vm3067 = vcmp.ne.s32.totalorder %v2987, 0
    %vm3068 = vcmp.ne.s32.totalorder %v2998, 0
    %vm3069 = vcmp.ne.s32.totalorder %v3009, 0
    %vm3070 = vcmp.ne.s32.totalorder %v3020, 0
    %vm3071 = vcmp.ne.s32.totalorder %v3031, 0
    %vm3072 = vcmp.ne.s32.totalorder %v3042, 0
    %vm3073 = vcmp.ne.s32.totalorder %v3053, 0
    %vm3074 = vcmp.ne.s32.totalorder %v3064, 0
    %vm3075 = vcmp.lt.s32.totalorder %v2965, 0
    %vm3076 = vcmp.lt.s32.totalorder %v2976, 0
    %vm3077 = vcmp.lt.s32.totalorder %v2987, 0
    %vm3078 = vcmp.lt.s32.totalorder %v2998, 0
    %vm3079 = vcmp.lt.s32.totalorder %v3009, 0
    %vm3080 = vcmp.lt.s32.totalorder %v3020, 0
    %vm3081 = vcmp.lt.s32.totalorder %v3031, 0
    %vm3082 = vcmp.lt.s32.totalorder %v3042, 0
    %vm3083 = vcmp.lt.s32.totalorder %v3053, 0
    %vm3084 = vcmp.lt.s32.totalorder %v3064, 0
    %vm3085 = vmand %vm3075, %vm3065
    %vm3086 = vmand %vm3076, %vm3066
    %vm3087 = vmand %vm3077, %vm3067
    %vm3088 = vmand %vm3078, %vm3068
    %vm3089 = vmand %vm3079, %vm3069
    %vm3090 = vmand %vm3080, %vm3070
    %vm3091 = vmand %vm3081, %vm3071
    %vm3092 = vmand %vm3082, %vm3072
    %vm3093 = vmand %vm3083, %vm3073
    %vm3094 = vmand %vm3084, %vm3074
    %v3095 = vadd.s32 %v2965, 10
    %v3096 = vadd.s32 %v2976, 10
    %v3097 = vadd.s32 %v2987, 10
    %v3098 = vadd.s32 %v2998, 10
    %v3099 = vadd.s32 %v3009, 10
    %v3100 = vadd.s32 %v3020, 10
    %v3101 = vadd.s32 %v3031, 10
    %v3102 = vadd.s32 %v3042, 10
    %v3103 = vadd.s32 %v3053, 10
    %v3104 = vadd.s32 %v3064, 10
    %v3105 = vsel %vm3085, %v3095, %v2965
    %v3106 = vsel %vm3086, %v3096, %v2976
    %v3107 = vsel %vm3087, %v3097, %v2987
    %v3108 = vsel %vm3088, %v3098, %v2998
    %v3109 = vsel %vm3089, %v3099, %v3009
    %v3110 = vsel %vm3090, %v3100, %v3020
    %v3111 = vsel %vm3091, %v3101, %v3031
    %v3112 = vsel %vm3092, %v3102, %v3042
    %v3113 = vsel %vm3093, %v3103, %v3053
    %v3114 = vsel %vm3094, %v3104, %v3064
    %vm3115 = vcmp.lt.s32.totalorder %v3105, 8
    %vm3116 = vcmp.lt.s32.totalorder %v3106, 8
    %vm3117 = vcmp.lt.s32.totalorder %v3107, 8
    %vm3118 = vcmp.lt.s32.totalorder %v3108, 8
    %vm3119 = vcmp.lt.s32.totalorder %v3109, 8
    %vm3120 = vcmp.lt.s32.totalorder %v3110, 8
    %vm3121 = vcmp.lt.s32.totalorder %v3111, 8
    %vm3122 = vcmp.lt.s32.totalorder %v3112, 8
    %vm3123 = vcmp.lt.s32.totalorder %v3113, 8
    %vm3124 = vcmp.lt.s32.totalorder %v3114, 8
    %vm3125 = vcmask 1048568
    %v3126 = vsel %vm3125, %v2934, -inf
    %v3127 = vsel %vm3125, %v2935, -inf
    %v3128 = vsel %vm3125, %v2936, -inf
    %v3129 = vsel %vm3125, %v2937, -inf
    %v3130 = vsel %vm3125, %v2938, -inf
    %v3131 = vmax.f32 %v3126, %v3130
    %v3132 = vsel %vm3125, %v2939, -inf
    %v3133 = vmax.f32 %v3127, %v3132
    %v3134 = vsel %vm3125, %v2940, -inf
    %v3135 = vmax.f32 %v3128, %v3134
    %v3136 = vsel %vm3125, %v2941, -inf
    %v3137 = vmax.f32 %v3129, %v3136
    %v3138 = vsel %vm3125, %v2942, -inf
    %v3139 = vmax.f32 %v3131, %v3138
    %v3140 = vsel %vm3125, %v2943, -inf
    %v3141 = vmax.f32 %v3133, %v3140
    %v3142 = vmax.f32 %v3139, %v3141
    %v3143 = vmax.f32 %v3135, %v3137
    %v3144 = vmax.f32 %v3142, %v3143
    %v3145 = vrot.slane %v3144, 4
    %v3146 = vmax.f32 %v3144, %v3145
    %v3147 = vrot.slane %v3146, 2
    %v3148 = vmax.f32 %v3146, %v3147
    %v3149 = vrot.slane %v3148, 1
    %v3150 = vmax.f32 %v3148, %v3149
    %v3151 = vsub.f32 %v2934, %v3150
    %v3152 = vsub.f32 %v2935, %v3150
    %v3153 = vsub.f32 %v2936, %v3150
    %v3154 = vsub.f32 %v2937, %v3150
    %v3155 = vsub.f32 %v2938, %v3150
    %v3156 = vsub.f32 %v2939, %v3150
    %v3157 = vsub.f32 %v2940, %v3150
    %v3158 = vsub.f32 %v2941, %v3150
    %v3159 = vsub.f32 %v2942, %v3150
    %v3160 = vsub.f32 %v2943, %v3150
    %v3161 = vmul.f32 %v3151, 1.442695
    %v3162 = vpow.pop %v3161
    %v3163 = vmul.f32 %v3152, 1.442695
    %v3164 = vpow.pop %v3163
    %v3165 = vmul.f32 %v3153, 1.442695
    %v3166 = vpow.pop %v3165
    %v3167 = vmul.f32 %v3154, 1.442695
    %v3168 = vpow.pop %v3167
    %v3169 = vmul.f32 %v3155, 1.442695
    %v3170 = vpow.pop %v3169
    %v3171 = vmul.f32 %v3156, 1.442695
    %v3172 = vpow.pop %v3171
    %v3173 = vmul.f32 %v3157, 1.442695
    %v3174 = vpow.pop %v3173
    %v3175 = vmul.f32 %v3158, 1.442695
    %v3176 = vpow.pop %v3175
    %v3177 = vmul.f32 %v3159, 1.442695
    %v3178 = vpow.pop %v3177
    %v3179 = vmul.f32 %v3160, 1.442695
    %v3180 = vpow.pop %v3179
    %v3181 = vsel %vm3115, %v3162, 0.0
    %v3182 = vsel %vm3116, %v3164, 0.0
    %v3183 = vsel %vm3117, %v3166, 0.0
    %v3184 = vsel %vm3118, %v3168, 0.0
    %v3185 = vsel %vm3119, %v3170, 0.0
    %v3186 = vsel %vm3120, %v3172, 0.0
    %v3187 = vsel %vm3121, %v3174, 0.0
    %v3188 = vsel %vm3122, %v3176, 0.0
    %v3189 = vsel %vm3123, %v3178, 0.0
    %v3190 = vsel %vm3124, %v3180, 0.0
    %v3191 = vsel %vm3125, %v3181, 0.0
    %v3192 = vsel %vm3125, %v3182, 0.0
    %v3193 = vadd.f32 %v3191, %v3192
    %v3194 = vsel %vm3125, %v3183, 0.0
    %v3195 = vadd.f32 %v3193, %v3194
    %v3196 = vsel %vm3125, %v3184, 0.0
    %v3197 = vadd.f32 %v3195, %v3196
    %v3198 = vsel %vm3125, %v3185, 0.0
    %v3199 = vadd.f32 %v3197, %v3198
    %v3200 = vsel %vm3125, %v3186, 0.0
    %v3201 = vadd.f32 %v3199, %v3200
    %v3202 = vsel %vm3125, %v3187, 0.0
    %v3203 = vadd.f32 %v3201, %v3202
    %v3204 = vsel %vm3125, %v3188, 0.0
    %v3205 = vadd.f32 %v3203, %v3204
    %v3206 = vsel %vm3125, %v3189, 0.0
    %v3207 = vadd.f32 %v3205, %v3206
    %v3208 = vsel %vm3125, %v3190, 0.0
    %v3209 = vadd.f32 %v3207, %v3208
    %v3210 = vrot.slane %v3209, 4
    %v3211 = vadd.f32 %v3209, %v3210
    %v3212 = vrot.slane %v3211, 2
    %v3213 = vadd.f32 %v3211, %v3212
    %v3214 = vrot.slane %v3213, 1
    %v3215 = vadd.f32 %v3213, %v3214
    %v3216 = vrcp.pop %v3215
    %v3217 = vmul.f32 %v3181, %v3216
    %v3218 = vmul.f32 %v3182, %v3216
    %v3219 = vmul.f32 %v3183, %v3216
    %v3220 = vmul.f32 %v3184, %v3216
    %v3221 = vmul.f32 %v3185, %v3216
    %v3222 = vmul.f32 %v3186, %v3216
    %v3223 = vmul.f32 %v3187, %v3216
    %v3224 = vmul.f32 %v3188, %v3216
    %v3225 = vmul.f32 %v3189, %v3216
    %v3226 = vmul.f32 %v3190, %v3216
    %3228 = vset.pattern.permute.xlu0 127
    %3229 = vperm.xlu0 %3228, %v3217
    %v3230 = vpop.permute.xlu0 %3229
    %3233 = vset.pattern.permute.xlu0 127
    %3234 = vperm.xlu0 %3233, %v3218
    %v3235 = vpop.permute.xlu0 %3234
    %3238 = vset.pattern.permute.xlu0 127
    %3239 = vperm.xlu0 %3238, %v3219
    %v3240 = vpop.permute.xlu0 %3239
    %3243 = vset.pattern.permute.xlu0 127
    %3244 = vperm.xlu0 %3243, %v3220
    %v3245 = vpop.permute.xlu0 %3244
    %3248 = vset.pattern.permute.xlu0 127
    %3249 = vperm.xlu0 %3248, %v3221
    %v3250 = vpop.permute.xlu0 %3249
    %3253 = vset.pattern.permute.xlu0 127
    %3254 = vperm.xlu0 %3253, %v3222
    %v3255 = vpop.permute.xlu0 %3254
    %3258 = vset.pattern.permute.xlu0 127
    %3259 = vperm.xlu0 %3258, %v3223
    %v3260 = vpop.permute.xlu0 %3259
    %3263 = vset.pattern.permute.xlu0 127
    %3264 = vperm.xlu0 %3263, %v3224
    %v3265 = vpop.permute.xlu0 %3264
    %3268 = vset.pattern.permute.xlu0 127
    %3269 = vperm.xlu0 %3268, %v3225
    %v3270 = vpop.permute.xlu0 %3269
    %3273 = vset.pattern.permute.xlu0 127
    %3274 = vperm.xlu0 %3273, %v3226
    %v3275 = vpop.permute.xlu0 %3274
    %v3277 = vmul.f32 %v2934, %v3230
    %v3278 = vmul.f32 %v2935, %v3235
    %v3279 = vmul.f32 %v2936, %v3240
    %v3280 = vmul.f32 %v2937, %v3245
    %v3281 = vmul.f32 %v2938, %v3250
    %v3282 = vmul.f32 %v2939, %v3255
    %v3283 = vmul.f32 %v2940, %v3260
    %v3284 = vmul.f32 %v2941, %v3265
    %v3285 = vmul.f32 %v2942, %v3270
    %v3286 = vmul.f32 %v2943, %v3275
    %v3287 = vadd.f32 %v3277, %v3278
    %v3288 = vadd.f32 %v3287, %v3279
    %v3289 = vadd.f32 %v3288, %v3280
    %v3290 = vadd.f32 %v3289, %v3281
    %v3291 = vadd.f32 %v3290, %v3282
    %v3292 = vadd.f32 %v3291, %v3283
    %v3293 = vadd.f32 %v3292, %v3284
    %v3294 = vadd.f32 %v3293, %v3285
    %v3295 = vadd.f32 %v3294, %v3286
    %v3296 = vrot.slane %v3295, 4
    %v3297 = vadd.f32 %v3295, %v3296
    %v3298 = vrot.slane %v3297, 2
    %v3299 = vadd.f32 %v3297, %v3298
    %v3300 = vrot.slane %v3299, 1
    %v3301 = vadd.f32 %v3299, %v3300
    %v3302 = vadd.f32 %v361, %v3301
    %3303 = vst [vmem:[#allocation2] sm:$0xff] %v3302
    // Predicated region
    $region54: #{_forward.1} parent=1 // pred_check
      _
    $region55: #{_forward.1} parent=1 // pred_check_branch
      %3305 = sbr.rel (0) target = $region57
    $region56: #{_forward.1} parent=1 // pred_region
      %s3307 = ssub.s32 128, 128
      %3308 = vsyncadd [#allocation3], %s3307
      %s3310 = sshll.u32 [#allocation2], 4
      %s3311 = int_to_ptr.vmem [resolvable:$true] %s3310
      %3313 = dma.vmem_to_hbm [thread:$0]  %s3311, 128, %s13, [#allocation3]
    $region57: #{_forward.1} parent=1 // pred_fallthru
      _
    // Predicated region
    $region58: #{_forward.1} parent=1 // pred_check
      _
    $region59: #{_forward.1} parent=1 // pred_check_branch
      %3315 = sbr.rel (0) target = $region61
    $region60: #{_forward.1} parent=1 // pred_region
      %3316 = dma.done [#allocation3], 128
    $region61: #{_forward.1} parent=1 // pred_fallthru
      _
    %3317 = vsyncpa [#allocation3], 1

</llo_original>
